<compile_context>
chip_gen: v5e
topology: v5e:2x2
jax: 0.10.0
libtpu: 0.0.40
codegen_flags: <defaults>
</compile_context>

<pallas_src>
import functools

import jax
import jax.numpy as jnp
from jax.experimental import pallas as pl
from jax.experimental.pallas import tpu as pltpu

# ---------------- config ----------------
VOCAB = 50
MAX_POS = 16
D = 64            # hidden size
H = 4             # attention heads
DH = D // H       # head dim
INTER = 128       # intermediate (FFN) size
LAYERS = 2
PAD_ID = 1        # RoBERTa padding_idx
LN_EPS = 1e-5


def _layernorm(x, g, b):
    """Two-pass LayerNorm over the last dim (f32 math)."""
    mu = jnp.mean(x, axis=-1, keepdims=True)
    xc = x - mu
    var = jnp.mean(xc * xc, axis=-1, keepdims=True)
    return xc * jax.lax.rsqrt(var + LN_EPS) * g + b


# ---------------- fused encoder kernel (one batch element per grid step) ----
def _encoder_kernel(ids_ref, pos_ref, amask_ref,
                    wemb_ref, pemb_ref, temb_ref, eln_g_ref, eln_b_ref,
                    wqkv_ref, bqkv_ref, wo_ref, bo_ref, ln1_g_ref, ln1_b_ref,
                    w1_ref, b1_ref, w2_ref, b2_ref, ln2_g_ref, ln2_b_ref,
                    out_ref, *, S):
    # ---- embeddings: one-hot x table matmuls (bf16 operands on the MXU) ----
    ids = ids_ref[...]                                          # (S, 1) i32
    pos = pos_ref[...]                                          # (S, 1) i32
    iota_v = jax.lax.broadcasted_iota(jnp.int32, (S, VOCAB), 1)
    iota_p = jax.lax.broadcasted_iota(jnp.int32, (S, MAX_POS), 1)
    oh_w = (ids == iota_v).astype(jnp.bfloat16)
    oh_p = (pos == iota_p).astype(jnp.bfloat16)
    emb = (jnp.dot(oh_w, wemb_ref[...], preferred_element_type=jnp.float32)
           + jnp.dot(oh_p, pemb_ref[...], preferred_element_type=jnp.float32)
           + temb_ref[...])
    h = _layernorm(emb, eln_g_ref[...], eln_b_ref[...])         # (S, D) f32
    # dropout: eval-mode identity

    # additive attention mask, broadcast ONCE for all layers / heads
    mask_hqk = jnp.broadcast_to(amask_ref[...], (H, S, S))      # (H, S, S) f32
    scale = 1.0 / (DH ** 0.5)

    # LAYERS=2: static unroll is fine; see TODO at top for real-size layout.
    for l in range(LAYERS):
        # ---- QKV projection: one head-batched matmul, heads already major ----
        hb = jnp.broadcast_to(h.astype(jnp.bfloat16), (3 * H, S, D))
        qkv = (jnp.einsum("gsd,gde->gse", hb, wqkv_ref[l],
                          preferred_element_type=jnp.float32)
               + bqkv_ref[l])                                    # (3H, S, DH)
        q = qkv[0:H] * scale          # fold 1/sqrt(Dh) into q once per layer
        k = qkv[H:2 * H]
        v = qkv[2 * H:3 * H]

        # ---- attention: single batched contraction over all heads ----
        s = jnp.einsum("hqd,hkd->hqk", q.astype(jnp.bfloat16),
                       k.astype(jnp.bfloat16),
                       preferred_element_type=jnp.float32)       # (H, S, S)
        s = s + mask_hqk
        s = s - jnp.max(s, axis=-1, keepdims=True)
        p = jnp.exp(s)
        p = p * pl.reciprocal(jnp.sum(p, axis=-1, keepdims=True), approx=True)
        ctx = jnp.einsum("hqk,hkd->hqd", p.astype(jnp.bfloat16),
                         v.astype(jnp.bfloat16),
                         preferred_element_type=jnp.float32)     # (H, S, DH)

        # ---- output projection (head-batched) + residual + LayerNorm ----
        attn_h = jnp.einsum("hsd,hde->hse", ctx.astype(jnp.bfloat16),
                            wo_ref[l],
                            preferred_element_type=jnp.float32)  # (H, S, D)
        attn = jnp.sum(attn_h, axis=0) + bo_ref[l]               # (S, D)
        h = _layernorm(attn + h, ln1_g_ref[l], ln1_b_ref[l])

        # ---- FFN + residual + LayerNorm ----
        ff = (jnp.dot(h.astype(jnp.bfloat16), w1_ref[l],
                      preferred_element_type=jnp.float32) + b1_ref[l])
        # TODO(synk): HF RoBERTa uses exact (erf) GELU; tanh approximation kept
        # for Mosaic-safe lowering (~1e-3 elementwise difference).
        ff = jax.nn.gelu(ff, approximate=True)
        ff = (jnp.dot(ff.astype(jnp.bfloat16), w2_ref[l],
                      preferred_element_type=jnp.float32) + b2_ref[l])
        h = _layernorm(ff + h, ln2_g_ref[l], ln2_b_ref[l])

    # ---- only this batch element's CLS row leaves VMEM (direct store) ----
    out_ref[...] = h[0:1, :].reshape(1, 1, D)


# ---------------- wrapper ----------------
def _rep_spec(a):
    """Full-array block, same block for every grid step (weights stay resident)."""
    nd = a.ndim
    return pl.BlockSpec(a.shape, lambda b, _nd=nd: (0,) * _nd)


def _per_head(w):
    """(L, D, D) with columns grouped per head -> (L, H, D, DH)."""
    return w.reshape(LAYERS, D, H, DH).transpose(0, 2, 1, 3)


def distilroberta_encoder_forward(params, ids, mask=None):
    B, S = ids.shape
    if mask is None:
        mask = jnp.ones((B, S), jnp.float32)
    mask = mask.astype(jnp.float32)

    # tiny integer glue: RoBERTa position ids + HF additive attention mask
    ne = (ids != PAD_ID).astype(jnp.int32)
    pos_ids = jnp.cumsum(ne, axis=1) * ne + PAD_ID
    ids2 = ids.reshape(B * S, 1).astype(jnp.int32)
    pos2 = pos_ids.reshape(B * S, 1).astype(jnp.int32)
    add_mask = ((1.0 - mask) * -1e9).reshape(B, 1, S)

    bf = lambda x: x.astype(jnp.bfloat16)

    # Pack Q/K/V/O weights head-major in the wrapper so the kernel never
    # slices the lane axis or transposes activations.
    wqkv = jnp.concatenate([_per_head(params["wq"]),
                            _per_head(params["wk"]),
                            _per_head(params["wv"])], axis=1)      # (L, 3H, D, DH)
    bqkv = jnp.concatenate([params["bq"].reshape(LAYERS, H, 1, DH),
                            params["bk"].reshape(LAYERS, H, 1, DH),
                            params["bv"].reshape(LAYERS, H, 1, DH)],
                           axis=1)                                 # (L, 3H, 1, DH)
    wo = params["wo"].reshape(LAYERS, H, DH, D)                    # (L, H, DH, D)

    weights = [
        bf(params["word_emb"]), bf(params["pos_emb"]), params["type_emb"],
        params["emb_ln_g"], params["emb_ln_b"],
        bf(wqkv), bqkv, bf(wo), params["bo"],
        params["ln1_g"], params["ln1_b"],
        bf(params["w1"]), params["b1"], bf(params["w2"]), params["b2"],
        params["ln2_g"], params["ln2_b"],
    ]
    inputs = [ids2, pos2, add_mask] + weights

    in_specs = ([pl.BlockSpec((S, 1), lambda b: (b, 0)),          # ids (per batch)
                 pl.BlockSpec((S, 1), lambda b: (b, 0)),          # pos (per batch)
                 pl.BlockSpec((1, 1, S), lambda b: (b, 0, 0))]    # mask (per batch)
                + [_rep_spec(w) for w in weights])

    feat = pl.pallas_call(
        functools.partial(_encoder_kernel, S=S),
        out_shape=jax.ShapeDtypeStruct((B, 1, D), jnp.float32),
        grid=(B,),
        in_specs=in_specs,
        out_specs=pl.BlockSpec((1, 1, D), lambda b: (b, 0, 0)),
        compiler_params=pltpu.CompilerParams(
            dimension_semantics=("parallel",),        # shard batch over TCs (v7x)
            vmem_limit_bytes=32 * 1024 * 1024),
    )(*inputs)
    return feat.reshape(B, D)


# ---------------- parameters (deterministic synthetic init) ----------------
def init_params(key):
    def nrm(k, shape):
        return 0.02 * jax.random.normal(k, shape, jnp.float32)

    keys = iter(jax.random.split(key, 32))
    p = {
        "word_emb": nrm(next(keys), (VOCAB, D)),
        "pos_emb": nrm(next(keys), (MAX_POS, D)),
        "type_emb": nrm(next(keys), (1, D)),
        "emb_ln_g": jnp.ones((1, D), jnp.float32),
        "emb_ln_b": jnp.zeros((1, D), jnp.float32),
    }

    def layer_stack(shape):
        return jnp.stack([nrm(next(keys), shape) for _ in range(LAYERS)])

    p.update({
        "wq": layer_stack((D, D)), "wk": layer_stack((D, D)),
        "wv": layer_stack((D, D)), "wo": layer_stack((D, D)),
        "bq": jnp.zeros((LAYERS, D), jnp.float32),
        "bk": jnp.zeros((LAYERS, D), jnp.float32),
        "bv": jnp.zeros((LAYERS, D), jnp.float32),
        "bo": jnp.zeros((LAYERS, 1, D), jnp.float32),
        "ln1_g": jnp.ones((LAYERS, 1, D), jnp.float32),
        "ln1_b": jnp.zeros((LAYERS, 1, D), jnp.float32),
        "w1": layer_stack((D, INTER)),
        "b1": jnp.zeros((LAYERS, 1, INTER), jnp.float32),
        "w2": layer_stack((INTER, D)),
        "b2": jnp.zeros((LAYERS, 1, D), jnp.float32),
        "ln2_g": jnp.ones((LAYERS, 1, D), jnp.float32),
        "ln2_b": jnp.zeros((LAYERS, 1, D), jnp.float32),
    })
    return p


# ---------------- main ----------------
if __name__ == "__main__":
    B, S = 2, 8
    key = jax.random.PRNGKey(0)
    k_ids, k_params = jax.random.split(key)
    ids = jax.random.randint(k_ids, (B, S), 3, VOCAB, dtype=jnp.int32)
    mask = jnp.ones((B, S), jnp.float32)      # equivalent to mask=None in PyTorch

    params = init_params(k_params)

    fwd = jax.jit(distilroberta_encoder_forward)
    feat = fwd(params, ids, mask)
    feat = jax.block_until_ready(feat)
    assert feat.shape == (B, D) and feat.dtype == jnp.float32
    assert bool(jnp.all(jnp.isfinite(feat)))
    print("KERNEL_OK")
</pallas_src>

<mosaic_0001>
module attributes {stable_mosaic.version = 11 : i64} {
  func.func @_encoder_kernel(%arg0: i32, %arg1: memref<8x1xi32, #tpu.memory_space<vmem>>, %arg2: memref<8x1xi32, #tpu.memory_space<vmem>>, %arg3: memref<1x1x8xf32, #tpu.memory_space<vmem>>, %arg4: memref<50x64xbf16, #tpu.memory_space<vmem>>, %arg5: memref<16x64xbf16, #tpu.memory_space<vmem>>, %arg6: memref<1x64xf32, #tpu.memory_space<vmem>>, %arg7: memref<1x64xf32, #tpu.memory_space<vmem>>, %arg8: memref<1x64xf32, #tpu.memory_space<vmem>>, %arg9: memref<2x12x64x16xbf16, #tpu.memory_space<vmem>>, %arg10: memref<2x12x1x16xf32, #tpu.memory_space<vmem>>, %arg11: memref<2x4x16x64xbf16, #tpu.memory_space<vmem>>, %arg12: memref<2x1x64xf32, #tpu.memory_space<vmem>>, %arg13: memref<2x1x64xf32, #tpu.memory_space<vmem>>, %arg14: memref<2x1x64xf32, #tpu.memory_space<vmem>>, %arg15: memref<2x64x128xbf16, #tpu.memory_space<vmem>>, %arg16: memref<2x1x128xf32, #tpu.memory_space<vmem>>, %arg17: memref<2x128x64xbf16, #tpu.memory_space<vmem>>, %arg18: memref<2x1x64xf32, #tpu.memory_space<vmem>>, %arg19: memref<2x1x64xf32, #tpu.memory_space<vmem>>, %arg20: memref<2x1x64xf32, #tpu.memory_space<vmem>>, %arg21: memref<1x1x64xf32, #tpu.memory_space<vmem>>) attributes {dimension_semantics = [#tpu.dimension_semantics<parallel>], iteration_bounds = array<i64: 2>, scalar_prefetch = 0 : i64, scratch_operands = 0 : i64, tpu.core_type = #tpu.core_type<tc>, window_params = [{transform_indices = @transform_0, window_bounds = array<i64: 8, 1>}, {transform_indices = @transform_1, window_bounds = array<i64: 8, 1>}, {transform_indices = @transform_2, window_bounds = array<i64: 1, 1, 8>}, {pipeline_mode = #tpu.pipeline_mode<synchronous>, transform_indices = @transform_3, window_bounds = array<i64: 50, 64>}, {pipeline_mode = #tpu.pipeline_mode<synchronous>, transform_indices = @transform_4, window_bounds = array<i64: 16, 64>}, {pipeline_mode = #tpu.pipeline_mode<synchronous>, transform_indices = @transform_5, window_bounds = array<i64: 1, 64>}, {pipeline_mode = #tpu.pipeline_mode<synchronous>, transform_indices = @transform_6, window_bounds = array<i64: 1, 64>}, {pipeline_mode = #tpu.pipeline_mode<synchronous>, transform_indices = @transform_7, window_bounds = array<i64: 1, 64>}, {pipeline_mode = #tpu.pipeline_mode<synchronous>, transform_indices = @transform_8, window_bounds = array<i64: 2, 12, 64, 16>}, {pipeline_mode = #tpu.pipeline_mode<synchronous>, transform_indices = @transform_9, window_bounds = array<i64: 2, 12, 1, 16>}, {pipeline_mode = #tpu.pipeline_mode<synchronous>, transform_indices = @transform_10, window_bounds = array<i64: 2, 4, 16, 64>}, {pipeline_mode = #tpu.pipeline_mode<synchronous>, transform_indices = @transform_11, window_bounds = array<i64: 2, 1, 64>}, {pipeline_mode = #tpu.pipeline_mode<synchronous>, transform_indices = @transform_12, window_bounds = array<i64: 2, 1, 64>}, {pipeline_mode = #tpu.pipeline_mode<synchronous>, transform_indices = @transform_13, window_bounds = array<i64: 2, 1, 64>}, {pipeline_mode = #tpu.pipeline_mode<synchronous>, transform_indices = @transform_14, window_bounds = array<i64: 2, 64, 128>}, {pipeline_mode = #tpu.pipeline_mode<synchronous>, transform_indices = @transform_15, window_bounds = array<i64: 2, 1, 128>}, {pipeline_mode = #tpu.pipeline_mode<synchronous>, transform_indices = @transform_16, window_bounds = array<i64: 2, 128, 64>}, {pipeline_mode = #tpu.pipeline_mode<synchronous>, transform_indices = @transform_17, window_bounds = array<i64: 2, 1, 64>}, {pipeline_mode = #tpu.pipeline_mode<synchronous>, transform_indices = @transform_18, window_bounds = array<i64: 2, 1, 64>}, {pipeline_mode = #tpu.pipeline_mode<synchronous>, transform_indices = @transform_19, window_bounds = array<i64: 2, 1, 64>}, {transform_indices = @transform_20, window_bounds = array<i64: 1, 1, 64>}]} {
    %c0 = arith.constant 0 : index
    %c0_0 = arith.constant 0 : index
    %0 = vector.load %arg1[%c0, %c0_0] : memref<8x1xi32, #tpu.memory_space<vmem>>, vector<8x1xi32>
    %c0_1 = arith.constant 0 : index
    %c0_2 = arith.constant 0 : index
    %1 = vector.load %arg2[%c0_1, %c0_2] : memref<8x1xi32, #tpu.memory_space<vmem>>, vector<8x1xi32>
    %2 = tpu.iota {dimensions = array<i32: 1>} : vector<8x50xi32>
    %3 = tpu.iota {dimensions = array<i32: 1>} : vector<8x16xi32>
    %4 = vector.broadcast %0 : vector<8x1xi32> to vector<8x50xi32>
    %5 = arith.cmpi eq, %4, %2 : vector<8x50xi32>
    %6 = arith.extui %5 : vector<8x50xi1> to vector<8x50xi32>
    %7 = arith.sitofp %6 : vector<8x50xi32> to vector<8x50xf32>
    %8 = arith.truncf %7 : vector<8x50xf32> to vector<8x50xbf16>
    %9 = vector.broadcast %1 : vector<8x1xi32> to vector<8x16xi32>
    %10 = arith.cmpi eq, %9, %3 : vector<8x16xi32>
    %11 = arith.extui %10 : vector<8x16xi1> to vector<8x16xi32>
    %12 = arith.sitofp %11 : vector<8x16xi32> to vector<8x16xf32>
    %13 = arith.truncf %12 : vector<8x16xf32> to vector<8x16xbf16>
    %c0_3 = arith.constant 0 : index
    %c0_4 = arith.constant 0 : index
    %14 = vector.load %arg4[%c0_3, %c0_4] : memref<50x64xbf16, #tpu.memory_space<vmem>>, vector<50x64xbf16>
    %cst = arith.constant dense<0.000000e+00> : vector<8x64xf32>
    %15 = tpu.matmul %8, %14, %cst {dimension_numbers = #tpu.dot_dimension_numbers<[1], [0], [0], [1], [0, 0, 1, 1], [], []>} : vector<8x50xbf16>, vector<50x64xbf16>, vector<8x64xf32> -> vector<8x64xf32>
    %c0_5 = arith.constant 0 : index
    %c0_6 = arith.constant 0 : index
    %16 = vector.load %arg5[%c0_5, %c0_6] : memref<16x64xbf16, #tpu.memory_space<vmem>>, vector<16x64xbf16>
    %cst_7 = arith.constant dense<0.000000e+00> : vector<8x64xf32>
    %17 = tpu.matmul %13, %16, %cst_7 {dimension_numbers = #tpu.dot_dimension_numbers<[1], [0], [0], [1], [0, 0, 1, 1], [], []>} : vector<8x16xbf16>, vector<16x64xbf16>, vector<8x64xf32> -> vector<8x64xf32>
    %18 = arith.addf %15, %17 : vector<8x64xf32>
    %c0_8 = arith.constant 0 : index
    %c0_9 = arith.constant 0 : index
    %19 = vector.load %arg6[%c0_8, %c0_9] : memref<1x64xf32, #tpu.memory_space<vmem>>, vector<1x64xf32>
    %20 = vector.broadcast %19 : vector<1x64xf32> to vector<8x64xf32>
    %21 = arith.addf %18, %20 : vector<8x64xf32>
    %c0_10 = arith.constant 0 : index
    %c0_11 = arith.constant 0 : index
    %22 = vector.load %arg7[%c0_10, %c0_11] : memref<1x64xf32, #tpu.memory_space<vmem>>, vector<1x64xf32>
    %c0_12 = arith.constant 0 : index
    %c0_13 = arith.constant 0 : index
    %23 = vector.load %arg8[%c0_12, %c0_13] : memref<1x64xf32, #tpu.memory_space<vmem>>, vector<1x64xf32>
    %cst_14 = arith.constant dense<0.000000e+00> : vector<8xf32>
    %24 = vector.multi_reduction <add>, %21, %cst_14 [1] : vector<8x64xf32> to vector<8xf32>
    %25 = vector.shape_cast %24 : vector<8xf32> to vector<8x1xf32>
    %cst_15 = arith.constant 6.400000e+01 : f32
    %26 = vector.broadcast %cst_15 : f32 to vector<8x1xf32>
    %27 = arith.divf %25, %26 : vector<8x1xf32>
    %28 = vector.broadcast %27 : vector<8x1xf32> to vector<8x64xf32>
    %29 = arith.subf %21, %28 : vector<8x64xf32>
    %30 = arith.mulf %29, %29 : vector<8x64xf32>
    %cst_16 = arith.constant dense<0.000000e+00> : vector<8xf32>
    %31 = vector.multi_reduction <add>, %30, %cst_16 [1] : vector<8x64xf32> to vector<8xf32>
    %32 = vector.shape_cast %31 : vector<8xf32> to vector<8x1xf32>
    %cst_17 = arith.constant 6.400000e+01 : f32
    %33 = vector.broadcast %cst_17 : f32 to vector<8x1xf32>
    %34 = arith.divf %32, %33 : vector<8x1xf32>
    %cst_18 = arith.constant 9.99999974E-6 : f32
    %35 = vector.broadcast %cst_18 : f32 to vector<8x1xf32>
    %36 = arith.addf %34, %35 : vector<8x1xf32>
    %37 = math.rsqrt %36 : vector<8x1xf32>
    %38 = vector.broadcast %37 : vector<8x1xf32> to vector<8x64xf32>
    %39 = arith.mulf %29, %38 : vector<8x64xf32>
    %40 = vector.broadcast %22 : vector<1x64xf32> to vector<8x64xf32>
    %41 = arith.mulf %39, %40 : vector<8x64xf32>
    %42 = vector.broadcast %23 : vector<1x64xf32> to vector<8x64xf32>
    %43 = arith.addf %41, %42 : vector<8x64xf32>
    %c0_19 = arith.constant 0 : index
    %c0_20 = arith.constant 0 : index
    %c0_21 = arith.constant 0 : index
    %44 = vector.load %arg3[%c0_19, %c0_20, %c0_21] : memref<1x1x8xf32, #tpu.memory_space<vmem>>, vector<1x1x8xf32>
    %45 = vector.shape_cast %44 : vector<1x1x8xf32> to vector<1x1x8xf32>
    %46 = vector.broadcast %45 : vector<1x1x8xf32> to vector<4x8x8xf32>
    %47 = arith.truncf %43 : vector<8x64xf32> to vector<8x64xbf16>
    %48 = vector.shape_cast %47 : vector<8x64xbf16> to vector<1x8x64xbf16>
    %49 = vector.broadcast %48 : vector<1x8x64xbf16> to vector<12x8x64xbf16>
    %c0_22 = arith.constant 0 : index
    %c0_23 = arith.constant 0 : index
    %c0_24 = arith.constant 0 : index
    %c0_25 = arith.constant 0 : index
    %50 = vector.load %arg9[%c0_22, %c0_23, %c0_24, %c0_25] : memref<2x12x64x16xbf16, #tpu.memory_space<vmem>>, vector<1x12x64x16xbf16>
    %51 = vector.shape_cast %50 : vector<1x12x64x16xbf16> to vector<12x64x16xbf16>
    "tpu.trace_start"() <{level = 10 : i32, message = "gsd,gde->gse"}> : () -> ()
    %cst_26 = arith.constant dense<0.000000e+00> : vector<12x8x16xf32>
    %52 = tpu.matmul %49, %51, %cst_26 {dimension_numbers = #tpu.dot_dimension_numbers<[2], [1], [1], [2], [0, 0, 0, 1, 1, 2], [0], [0]>} : vector<12x8x64xbf16>, vector<12x64x16xbf16>, vector<12x8x16xf32> -> vector<12x8x16xf32>
    "tpu.trace_stop"() : () -> ()
    %c0_27 = arith.constant 0 : index
    %c0_28 = arith.constant 0 : index
    %c0_29 = arith.constant 0 : index
    %c0_30 = arith.constant 0 : index
    %53 = vector.load %arg10[%c0_27, %c0_28, %c0_29, %c0_30] : memref<2x12x1x16xf32, #tpu.memory_space<vmem>>, vector<1x12x1x16xf32>
    %54 = vector.shape_cast %53 : vector<1x12x1x16xf32> to vector<12x1x16xf32>
    %55 = vector.broadcast %54 : vector<12x1x16xf32> to vector<12x8x16xf32>
    %56 = arith.addf %52, %55 : vector<12x8x16xf32>
    %57 = vector.extract_strided_slice %56 {offsets = [0, 0, 0], sizes = [4, 8, 16], strides = [1, 1, 1]} : vector<12x8x16xf32> to vector<4x8x16xf32>
    %cst_31 = arith.constant 2.500000e-01 : f32
    %58 = vector.broadcast %cst_31 : f32 to vector<4x8x16xf32>
    %59 = arith.mulf %57, %58 : vector<4x8x16xf32>
    %60 = vector.extract_strided_slice %56 {offsets = [4, 0, 0], sizes = [4, 8, 16], strides = [1, 1, 1]} : vector<12x8x16xf32> to vector<4x8x16xf32>
    %61 = vector.extract_strided_slice %56 {offsets = [8, 0, 0], sizes = [4, 8, 16], strides = [1, 1, 1]} : vector<12x8x16xf32> to vector<4x8x16xf32>
    %62 = arith.truncf %59 : vector<4x8x16xf32> to vector<4x8x16xbf16>
    %63 = arith.truncf %60 : vector<4x8x16xf32> to vector<4x8x16xbf16>
    "tpu.trace_start"() <{level = 10 : i32, message = "hqd,hkd->hqk"}> : () -> ()
    %cst_32 = arith.constant dense<0.000000e+00> : vector<4x8x8xf32>
    %64 = tpu.matmul %62, %63, %cst_32 {dimension_numbers = #tpu.dot_dimension_numbers<[2], [2], [1], [1], [0, 0, 0, 1, 1, 1], [0], [0]>} : vector<4x8x16xbf16>, vector<4x8x16xbf16>, vector<4x8x8xf32> -> vector<4x8x8xf32>
    "tpu.trace_stop"() : () -> ()
    %65 = arith.addf %64, %46 : vector<4x8x8xf32>
    %cst_33 = arith.constant dense<0xFF800000> : vector<4x8xf32>
    %66 = vector.multi_reduction <maximumf>, %65, %cst_33 [2] : vector<4x8x8xf32> to vector<4x8xf32>
    %67 = vector.shape_cast %66 : vector<4x8xf32> to vector<4x8x1xf32>
    %68 = vector.broadcast %67 : vector<4x8x1xf32> to vector<4x8x8xf32>
    %69 = arith.subf %65, %68 : vector<4x8x8xf32>
    %70 = math.exp %69 : vector<4x8x8xf32>
    %cst_34 = arith.constant dense<0.000000e+00> : vector<4x8xf32>
    %71 = vector.multi_reduction <add>, %70, %cst_34 [2] : vector<4x8x8xf32> to vector<4x8xf32>
    %72 = vector.shape_cast %71 : vector<4x8xf32> to vector<4x8x1xf32>
    %73 = tpu.reciprocal %72 {approx = true} : vector<4x8x1xf32> -> vector<4x8x1xf32>
    %74 = vector.broadcast %73 : vector<4x8x1xf32> to vector<4x8x8xf32>
    %75 = arith.mulf %70, %74 : vector<4x8x8xf32>
    %76 = arith.truncf %75 : vector<4x8x8xf32> to vector<4x8x8xbf16>
    %77 = arith.truncf %61 : vector<4x8x16xf32> to vector<4x8x16xbf16>
    "tpu.trace_start"() <{level = 10 : i32, message = "hqk,hkd->hqd"}> : () -> ()
    %cst_35 = arith.constant dense<0.000000e+00> : vector<4x8x16xf32>
    %78 = tpu.matmul %76, %77, %cst_35 {dimension_numbers = #tpu.dot_dimension_numbers<[2], [1], [1], [2], [0, 0, 0, 1, 1, 2], [0], [0]>} : vector<4x8x8xbf16>, vector<4x8x16xbf16>, vector<4x8x16xf32> -> vector<4x8x16xf32>
    "tpu.trace_stop"() : () -> ()
    %79 = arith.truncf %78 : vector<4x8x16xf32> to vector<4x8x16xbf16>
    %c0_36 = arith.constant 0 : index
    %c0_37 = arith.constant 0 : index
    %c0_38 = arith.constant 0 : index
    %c0_39 = arith.constant 0 : index
    %80 = vector.load %arg11[%c0_36, %c0_37, %c0_38, %c0_39] : memref<2x4x16x64xbf16, #tpu.memory_space<vmem>>, vector<1x4x16x64xbf16>
    %81 = vector.shape_cast %80 : vector<1x4x16x64xbf16> to vector<4x16x64xbf16>
    "tpu.trace_start"() <{level = 10 : i32, message = "hsd,hde->hse"}> : () -> ()
    %cst_40 = arith.constant dense<0.000000e+00> : vector<4x8x64xf32>
    %82 = tpu.matmul %79, %81, %cst_40 {dimension_numbers = #tpu.dot_dimension_numbers<[2], [1], [1], [2], [0, 0, 0, 1, 1, 2], [0], [0]>} : vector<4x8x16xbf16>, vector<4x16x64xbf16>, vector<4x8x64xf32> -> vector<4x8x64xf32>
    "tpu.trace_stop"() : () -> ()
    %cst_41 = arith.constant dense<0.000000e+00> : vector<8x64xf32>
    %83 = vector.multi_reduction <add>, %82, %cst_41 [0] : vector<4x8x64xf32> to vector<8x64xf32>
    %c0_42 = arith.constant 0 : index
    %c0_43 = arith.constant 0 : index
    %c0_44 = arith.constant 0 : index
    %84 = vector.load %arg12[%c0_42, %c0_43, %c0_44] : memref<2x1x64xf32, #tpu.memory_space<vmem>>, vector<1x1x64xf32>
    %85 = vector.shape_cast %84 : vector<1x1x64xf32> to vector<1x64xf32>
    %86 = vector.broadcast %85 : vector<1x64xf32> to vector<8x64xf32>
    %87 = arith.addf %83, %86 : vector<8x64xf32>
    %88 = arith.addf %87, %43 : vector<8x64xf32>
    %c0_45 = arith.constant 0 : index
    %c0_46 = arith.constant 0 : index
    %c0_47 = arith.constant 0 : index
    %89 = vector.load %arg13[%c0_45, %c0_46, %c0_47] : memref<2x1x64xf32, #tpu.memory_space<vmem>>, vector<1x1x64xf32>
    %90 = vector.shape_cast %89 : vector<1x1x64xf32> to vector<1x64xf32>
    %c0_48 = arith.constant 0 : index
    %c0_49 = arith.constant 0 : index
    %c0_50 = arith.constant 0 : index
    %91 = vector.load %arg14[%c0_48, %c0_49, %c0_50] : memref<2x1x64xf32, #tpu.memory_space<vmem>>, vector<1x1x64xf32>
    %92 = vector.shape_cast %91 : vector<1x1x64xf32> to vector<1x64xf32>
    %cst_51 = arith.constant dense<0.000000e+00> : vector<8xf32>
    %93 = vector.multi_reduction <add>, %88, %cst_51 [1] : vector<8x64xf32> to vector<8xf32>
    %94 = vector.shape_cast %93 : vector<8xf32> to vector<8x1xf32>
    %cst_52 = arith.constant 6.400000e+01 : f32
    %95 = vector.broadcast %cst_52 : f32 to vector<8x1xf32>
    %96 = arith.divf %94, %95 : vector<8x1xf32>
    %97 = vector.broadcast %96 : vector<8x1xf32> to vector<8x64xf32>
    %98 = arith.subf %88, %97 : vector<8x64xf32>
    %99 = arith.mulf %98, %98 : vector<8x64xf32>
    %cst_53 = arith.constant dense<0.000000e+00> : vector<8xf32>
    %100 = vector.multi_reduction <add>, %99, %cst_53 [1] : vector<8x64xf32> to vector<8xf32>
    %101 = vector.shape_cast %100 : vector<8xf32> to vector<8x1xf32>
    %cst_54 = arith.constant 6.400000e+01 : f32
    %102 = vector.broadcast %cst_54 : f32 to vector<8x1xf32>
    %103 = arith.divf %101, %102 : vector<8x1xf32>
    %cst_55 = arith.constant 9.99999974E-6 : f32
    %104 = vector.broadcast %cst_55 : f32 to vector<8x1xf32>
    %105 = arith.addf %103, %104 : vector<8x1xf32>
    %106 = math.rsqrt %105 : vector<8x1xf32>
    %107 = vector.broadcast %106 : vector<8x1xf32> to vector<8x64xf32>
    %108 = arith.mulf %98, %107 : vector<8x64xf32>
    %109 = vector.broadcast %90 : vector<1x64xf32> to vector<8x64xf32>
    %110 = arith.mulf %108, %109 : vector<8x64xf32>
    %111 = vector.broadcast %92 : vector<1x64xf32> to vector<8x64xf32>
    %112 = arith.addf %110, %111 : vector<8x64xf32>
    %113 = arith.truncf %112 : vector<8x64xf32> to vector<8x64xbf16>
    %c0_56 = arith.constant 0 : index
    %c0_57 = arith.constant 0 : index
    %c0_58 = arith.constant 0 : index
    %114 = vector.load %arg15[%c0_56, %c0_57, %c0_58] : memref<2x64x128xbf16, #tpu.memory_space<vmem>>, vector<1x64x128xbf16>
    %115 = vector.shape_cast %114 : vector<1x64x128xbf16> to vector<64x128xbf16>
    %cst_59 = arith.constant dense<0.000000e+00> : vector<8x128xf32>
    %116 = tpu.matmul %113, %115, %cst_59 {dimension_numbers = #tpu.dot_dimension_numbers<[1], [0], [0], [1], [0, 0, 1, 1], [], []>} : vector<8x64xbf16>, vector<64x128xbf16>, vector<8x128xf32> -> vector<8x128xf32>
    %c0_60 = arith.constant 0 : index
    %c0_61 = arith.constant 0 : index
    %c0_62 = arith.constant 0 : index
    %117 = vector.load %arg16[%c0_60, %c0_61, %c0_62] : memref<2x1x128xf32, #tpu.memory_space<vmem>>, vector<1x1x128xf32>
    %118 = vector.shape_cast %117 : vector<1x1x128xf32> to vector<1x128xf32>
    %119 = vector.broadcast %118 : vector<1x128xf32> to vector<8x128xf32>
    %120 = arith.addf %116, %119 : vector<8x128xf32>
    %121 = arith.mulf %120, %120 : vector<8x128xf32>
    %122 = arith.mulf %120, %121 : vector<8x128xf32>
    %cst_63 = arith.constant 4.471500e-02 : f32
    %123 = vector.broadcast %cst_63 : f32 to vector<8x128xf32>
    %124 = arith.mulf %123, %122 : vector<8x128xf32>
    %125 = arith.addf %120, %124 : vector<8x128xf32>
    %cst_64 = arith.constant 0.797884583 : f32
    %126 = vector.broadcast %cst_64 : f32 to vector<8x128xf32>
    %127 = arith.mulf %126, %125 : vector<8x128xf32>
    %128 = math.tanh %127 : vector<8x128xf32>
    %cst_65 = arith.constant 1.000000e+00 : f32
    %129 = vector.broadcast %cst_65 : f32 to vector<8x128xf32>
    %130 = arith.addf %129, %128 : vector<8x128xf32>
    %cst_66 = arith.constant 5.000000e-01 : f32
    %131 = vector.broadcast %cst_66 : f32 to vector<8x128xf32>
    %132 = arith.mulf %131, %130 : vector<8x128xf32>
    %133 = arith.mulf %120, %132 : vector<8x128xf32>
    %134 = arith.truncf %133 : vector<8x128xf32> to vector<8x128xbf16>
    %c0_67 = arith.constant 0 : index
    %c0_68 = arith.constant 0 : index
    %c0_69 = arith.constant 0 : index
    %135 = vector.load %arg17[%c0_67, %c0_68, %c0_69] : memref<2x128x64xbf16, #tpu.memory_space<vmem>>, vector<1x128x64xbf16>
    %136 = vector.shape_cast %135 : vector<1x128x64xbf16> to vector<128x64xbf16>
    %cst_70 = arith.constant dense<0.000000e+00> : vector<8x64xf32>
    %137 = tpu.matmul %134, %136, %cst_70 {dimension_numbers = #tpu.dot_dimension_numbers<[1], [0], [0], [1], [0, 0, 1, 1], [], []>} : vector<8x128xbf16>, vector<128x64xbf16>, vector<8x64xf32> -> vector<8x64xf32>
    %c0_71 = arith.constant 0 : index
    %c0_72 = arith.constant 0 : index
    %c0_73 = arith.constant 0 : index
    %138 = vector.load %arg18[%c0_71, %c0_72, %c0_73] : memref<2x1x64xf32, #tpu.memory_space<vmem>>, vector<1x1x64xf32>
    %139 = vector.shape_cast %138 : vector<1x1x64xf32> to vector<1x64xf32>
    %140 = vector.broadcast %139 : vector<1x64xf32> to vector<8x64xf32>
    %141 = arith.addf %137, %140 : vector<8x64xf32>
    %142 = arith.addf %141, %112 : vector<8x64xf32>
    %c0_74 = arith.constant 0 : index
    %c0_75 = arith.constant 0 : index
    %c0_76 = arith.constant 0 : index
    %143 = vector.load %arg19[%c0_74, %c0_75, %c0_76] : memref<2x1x64xf32, #tpu.memory_space<vmem>>, vector<1x1x64xf32>
    %144 = vector.shape_cast %143 : vector<1x1x64xf32> to vector<1x64xf32>
    %c0_77 = arith.constant 0 : index
    %c0_78 = arith.constant 0 : index
    %c0_79 = arith.constant 0 : index
    %145 = vector.load %arg20[%c0_77, %c0_78, %c0_79] : memref<2x1x64xf32, #tpu.memory_space<vmem>>, vector<1x1x64xf32>
    %146 = vector.shape_cast %145 : vector<1x1x64xf32> to vector<1x64xf32>
    %cst_80 = arith.constant dense<0.000000e+00> : vector<8xf32>
    %147 = vector.multi_reduction <add>, %142, %cst_80 [1] : vector<8x64xf32> to vector<8xf32>
    %148 = vector.shape_cast %147 : vector<8xf32> to vector<8x1xf32>
    %cst_81 = arith.constant 6.400000e+01 : f32
    %149 = vector.broadcast %cst_81 : f32 to vector<8x1xf32>
    %150 = arith.divf %148, %149 : vector<8x1xf32>
    %151 = vector.broadcast %150 : vector<8x1xf32> to vector<8x64xf32>
    %152 = arith.subf %142, %151 : vector<8x64xf32>
    %153 = arith.mulf %152, %152 : vector<8x64xf32>
    %cst_82 = arith.constant dense<0.000000e+00> : vector<8xf32>
    %154 = vector.multi_reduction <add>, %153, %cst_82 [1] : vector<8x64xf32> to vector<8xf32>
    %155 = vector.shape_cast %154 : vector<8xf32> to vector<8x1xf32>
    %cst_83 = arith.constant 6.400000e+01 : f32
    %156 = vector.broadcast %cst_83 : f32 to vector<8x1xf32>
    %157 = arith.divf %155, %156 : vector<8x1xf32>
    %cst_84 = arith.constant 9.99999974E-6 : f32
    %158 = vector.broadcast %cst_84 : f32 to vector<8x1xf32>
    %159 = arith.addf %157, %158 : vector<8x1xf32>
    %160 = math.rsqrt %159 : vector<8x1xf32>
    %161 = vector.broadcast %160 : vector<8x1xf32> to vector<8x64xf32>
    %162 = arith.mulf %152, %161 : vector<8x64xf32>
    %163 = vector.broadcast %144 : vector<1x64xf32> to vector<8x64xf32>
    %164 = arith.mulf %162, %163 : vector<8x64xf32>
    %165 = vector.broadcast %146 : vector<1x64xf32> to vector<8x64xf32>
    %166 = arith.addf %164, %165 : vector<8x64xf32>
    %167 = arith.truncf %166 : vector<8x64xf32> to vector<8x64xbf16>
    %168 = vector.shape_cast %167 : vector<8x64xbf16> to vector<1x8x64xbf16>
    %169 = vector.broadcast %168 : vector<1x8x64xbf16> to vector<12x8x64xbf16>
    %c1 = arith.constant 1 : index
    %c0_85 = arith.constant 0 : index
    %c0_86 = arith.constant 0 : index
    %c0_87 = arith.constant 0 : index
    %170 = vector.load %arg9[%c1, %c0_85, %c0_86, %c0_87] : memref<2x12x64x16xbf16, #tpu.memory_space<vmem>>, vector<1x12x64x16xbf16>
    %171 = vector.shape_cast %170 : vector<1x12x64x16xbf16> to vector<12x64x16xbf16>
    "tpu.trace_start"() <{level = 10 : i32, message = "gsd,gde->gse"}> : () -> ()
    %cst_88 = arith.constant dense<0.000000e+00> : vector<12x8x16xf32>
    %172 = tpu.matmul %169, %171, %cst_88 {dimension_numbers = #tpu.dot_dimension_numbers<[2], [1], [1], [2], [0, 0, 0, 1, 1, 2], [0], [0]>} : vector<12x8x64xbf16>, vector<12x64x16xbf16>, vector<12x8x16xf32> -> vector<12x8x16xf32>
    "tpu.trace_stop"() : () -> ()
    %c1_89 = arith.constant 1 : index
    %c0_90 = arith.constant 0 : index
    %c0_91 = arith.constant 0 : index
    %c0_92 = arith.constant 0 : index
    %173 = vector.load %arg10[%c1_89, %c0_90, %c0_91, %c0_92] : memref<2x12x1x16xf32, #tpu.memory_space<vmem>>, vector<1x12x1x16xf32>
    %174 = vector.shape_cast %173 : vector<1x12x1x16xf32> to vector<12x1x16xf32>
    %175 = vector.broadcast %174 : vector<12x1x16xf32> to vector<12x8x16xf32>
    %176 = arith.addf %172, %175 : vector<12x8x16xf32>
    %177 = vector.extract_strided_slice %176 {offsets = [0, 0, 0], sizes = [4, 8, 16], strides = [1, 1, 1]} : vector<12x8x16xf32> to vector<4x8x16xf32>
    %cst_93 = arith.constant 2.500000e-01 : f32
    %178 = vector.broadcast %cst_93 : f32 to vector<4x8x16xf32>
    %179 = arith.mulf %177, %178 : vector<4x8x16xf32>
    %180 = vector.extract_strided_slice %176 {offsets = [4, 0, 0], sizes = [4, 8, 16], strides = [1, 1, 1]} : vector<12x8x16xf32> to vector<4x8x16xf32>
    %181 = vector.extract_strided_slice %176 {offsets = [8, 0, 0], sizes = [4, 8, 16], strides = [1, 1, 1]} : vector<12x8x16xf32> to vector<4x8x16xf32>
    %182 = arith.truncf %179 : vector<4x8x16xf32> to vector<4x8x16xbf16>
    %183 = arith.truncf %180 : vector<4x8x16xf32> to vector<4x8x16xbf16>
    "tpu.trace_start"() <{level = 10 : i32, message = "hqd,hkd->hqk"}> : () -> ()
    %cst_94 = arith.constant dense<0.000000e+00> : vector<4x8x8xf32>
    %184 = tpu.matmul %182, %183, %cst_94 {dimension_numbers = #tpu.dot_dimension_numbers<[2], [2], [1], [1], [0, 0, 0, 1, 1, 1], [0], [0]>} : vector<4x8x16xbf16>, vector<4x8x16xbf16>, vector<4x8x8xf32> -> vector<4x8x8xf32>
    "tpu.trace_stop"() : () -> ()
    %185 = arith.addf %184, %46 : vector<4x8x8xf32>
    %cst_95 = arith.constant dense<0xFF800000> : vector<4x8xf32>
    %186 = vector.multi_reduction <maximumf>, %185, %cst_95 [2] : vector<4x8x8xf32> to vector<4x8xf32>
    %187 = vector.shape_cast %186 : vector<4x8xf32> to vector<4x8x1xf32>
    %188 = vector.broadcast %187 : vector<4x8x1xf32> to vector<4x8x8xf32>
    %189 = arith.subf %185, %188 : vector<4x8x8xf32>
    %190 = math.exp %189 : vector<4x8x8xf32>
    %cst_96 = arith.constant dense<0.000000e+00> : vector<4x8xf32>
    %191 = vector.multi_reduction <add>, %190, %cst_96 [2] : vector<4x8x8xf32> to vector<4x8xf32>
    %192 = vector.shape_cast %191 : vector<4x8xf32> to vector<4x8x1xf32>
    %193 = tpu.reciprocal %192 {approx = true} : vector<4x8x1xf32> -> vector<4x8x1xf32>
    %194 = vector.broadcast %193 : vector<4x8x1xf32> to vector<4x8x8xf32>
    %195 = arith.mulf %190, %194 : vector<4x8x8xf32>
    %196 = arith.truncf %195 : vector<4x8x8xf32> to vector<4x8x8xbf16>
    %197 = arith.truncf %181 : vector<4x8x16xf32> to vector<4x8x16xbf16>
    "tpu.trace_start"() <{level = 10 : i32, message = "hqk,hkd->hqd"}> : () -> ()
    %cst_97 = arith.constant dense<0.000000e+00> : vector<4x8x16xf32>
    %198 = tpu.matmul %196, %197, %cst_97 {dimension_numbers = #tpu.dot_dimension_numbers<[2], [1], [1], [2], [0, 0, 0, 1, 1, 2], [0], [0]>} : vector<4x8x8xbf16>, vector<4x8x16xbf16>, vector<4x8x16xf32> -> vector<4x8x16xf32>
    "tpu.trace_stop"() : () -> ()
    %199 = arith.truncf %198 : vector<4x8x16xf32> to vector<4x8x16xbf16>
    %c1_98 = arith.constant 1 : index
    %c0_99 = arith.constant 0 : index
    %c0_100 = arith.constant 0 : index
    %c0_101 = arith.constant 0 : index
    %200 = vector.load %arg11[%c1_98, %c0_99, %c0_100, %c0_101] : memref<2x4x16x64xbf16, #tpu.memory_space<vmem>>, vector<1x4x16x64xbf16>
    %201 = vector.shape_cast %200 : vector<1x4x16x64xbf16> to vector<4x16x64xbf16>
    "tpu.trace_start"() <{level = 10 : i32, message = "hsd,hde->hse"}> : () -> ()
    %cst_102 = arith.constant dense<0.000000e+00> : vector<4x8x64xf32>
    %202 = tpu.matmul %199, %201, %cst_102 {dimension_numbers = #tpu.dot_dimension_numbers<[2], [1], [1], [2], [0, 0, 0, 1, 1, 2], [0], [0]>} : vector<4x8x16xbf16>, vector<4x16x64xbf16>, vector<4x8x64xf32> -> vector<4x8x64xf32>
    "tpu.trace_stop"() : () -> ()
    %cst_103 = arith.constant dense<0.000000e+00> : vector<8x64xf32>
    %203 = vector.multi_reduction <add>, %202, %cst_103 [0] : vector<4x8x64xf32> to vector<8x64xf32>
    %c1_104 = arith.constant 1 : index
    %c0_105 = arith.constant 0 : index
    %c0_106 = arith.constant 0 : index
    %204 = vector.load %arg12[%c1_104, %c0_105, %c0_106] : memref<2x1x64xf32, #tpu.memory_space<vmem>>, vector<1x1x64xf32>
    %205 = vector.shape_cast %204 : vector<1x1x64xf32> to vector<1x64xf32>
    %206 = vector.broadcast %205 : vector<1x64xf32> to vector<8x64xf32>
    %207 = arith.addf %203, %206 : vector<8x64xf32>
    %208 = arith.addf %207, %166 : vector<8x64xf32>
    %c1_107 = arith.constant 1 : index
    %c0_108 = arith.constant 0 : index
    %c0_109 = arith.constant 0 : index
    %209 = vector.load %arg13[%c1_107, %c0_108, %c0_109] : memref<2x1x64xf32, #tpu.memory_space<vmem>>, vector<1x1x64xf32>
    %210 = vector.shape_cast %209 : vector<1x1x64xf32> to vector<1x64xf32>
    %c1_110 = arith.constant 1 : index
    %c0_111 = arith.constant 0 : index
    %c0_112 = arith.constant 0 : index
    %211 = vector.load %arg14[%c1_110, %c0_111, %c0_112] : memref<2x1x64xf32, #tpu.memory_space<vmem>>, vector<1x1x64xf32>
    %212 = vector.shape_cast %211 : vector<1x1x64xf32> to vector<1x64xf32>
    %cst_113 = arith.constant dense<0.000000e+00> : vector<8xf32>
    %213 = vector.multi_reduction <add>, %208, %cst_113 [1] : vector<8x64xf32> to vector<8xf32>
    %214 = vector.shape_cast %213 : vector<8xf32> to vector<8x1xf32>
    %cst_114 = arith.constant 6.400000e+01 : f32
    %215 = vector.broadcast %cst_114 : f32 to vector<8x1xf32>
    %216 = arith.divf %214, %215 : vector<8x1xf32>
    %217 = vector.broadcast %216 : vector<8x1xf32> to vector<8x64xf32>
    %218 = arith.subf %208, %217 : vector<8x64xf32>
    %219 = arith.mulf %218, %218 : vector<8x64xf32>
    %cst_115 = arith.constant dense<0.000000e+00> : vector<8xf32>
    %220 = vector.multi_reduction <add>, %219, %cst_115 [1] : vector<8x64xf32> to vector<8xf32>
    %221 = vector.shape_cast %220 : vector<8xf32> to vector<8x1xf32>
    %cst_116 = arith.constant 6.400000e+01 : f32
    %222 = vector.broadcast %cst_116 : f32 to vector<8x1xf32>
    %223 = arith.divf %221, %222 : vector<8x1xf32>
    %cst_117 = arith.constant 9.99999974E-6 : f32
    %224 = vector.broadcast %cst_117 : f32 to vector<8x1xf32>
    %225 = arith.addf %223, %224 : vector<8x1xf32>
    %226 = math.rsqrt %225 : vector<8x1xf32>
    %227 = vector.broadcast %226 : vector<8x1xf32> to vector<8x64xf32>
    %228 = arith.mulf %218, %227 : vector<8x64xf32>
    %229 = vector.broadcast %210 : vector<1x64xf32> to vector<8x64xf32>
    %230 = arith.mulf %228, %229 : vector<8x64xf32>
    %231 = vector.broadcast %212 : vector<1x64xf32> to vector<8x64xf32>
    %232 = arith.addf %230, %231 : vector<8x64xf32>
    %233 = arith.truncf %232 : vector<8x64xf32> to vector<8x64xbf16>
    %c1_118 = arith.constant 1 : index
    %c0_119 = arith.constant 0 : index
    %c0_120 = arith.constant 0 : index
    %234 = vector.load %arg15[%c1_118, %c0_119, %c0_120] : memref<2x64x128xbf16, #tpu.memory_space<vmem>>, vector<1x64x128xbf16>
    %235 = vector.shape_cast %234 : vector<1x64x128xbf16> to vector<64x128xbf16>
    %cst_121 = arith.constant dense<0.000000e+00> : vector<8x128xf32>
    %236 = tpu.matmul %233, %235, %cst_121 {dimension_numbers = #tpu.dot_dimension_numbers<[1], [0], [0], [1], [0, 0, 1, 1], [], []>} : vector<8x64xbf16>, vector<64x128xbf16>, vector<8x128xf32> -> vector<8x128xf32>
    %c1_122 = arith.constant 1 : index
    %c0_123 = arith.constant 0 : index
    %c0_124 = arith.constant 0 : index
    %237 = vector.load %arg16[%c1_122, %c0_123, %c0_124] : memref<2x1x128xf32, #tpu.memory_space<vmem>>, vector<1x1x128xf32>
    %238 = vector.shape_cast %237 : vector<1x1x128xf32> to vector<1x128xf32>
    %239 = vector.broadcast %238 : vector<1x128xf32> to vector<8x128xf32>
    %240 = arith.addf %236, %239 : vector<8x128xf32>
    %241 = arith.mulf %240, %240 : vector<8x128xf32>
    %242 = arith.mulf %240, %241 : vector<8x128xf32>
    %cst_125 = arith.constant 4.471500e-02 : f32
    %243 = vector.broadcast %cst_125 : f32 to vector<8x128xf32>
    %244 = arith.mulf %243, %242 : vector<8x128xf32>
    %245 = arith.addf %240, %244 : vector<8x128xf32>
    %cst_126 = arith.constant 0.797884583 : f32
    %246 = vector.broadcast %cst_126 : f32 to vector<8x128xf32>
    %247 = arith.mulf %246, %245 : vector<8x128xf32>
    %248 = math.tanh %247 : vector<8x128xf32>
    %cst_127 = arith.constant 1.000000e+00 : f32
    %249 = vector.broadcast %cst_127 : f32 to vector<8x128xf32>
    %250 = arith.addf %249, %248 : vector<8x128xf32>
    %cst_128 = arith.constant 5.000000e-01 : f32
    %251 = vector.broadcast %cst_128 : f32 to vector<8x128xf32>
    %252 = arith.mulf %251, %250 : vector<8x128xf32>
    %253 = arith.mulf %240, %252 : vector<8x128xf32>
    %254 = arith.truncf %253 : vector<8x128xf32> to vector<8x128xbf16>
    %c1_129 = arith.constant 1 : index
    %c0_130 = arith.constant 0 : index
    %c0_131 = arith.constant 0 : index
    %255 = vector.load %arg17[%c1_129, %c0_130, %c0_131] : memref<2x128x64xbf16, #tpu.memory_space<vmem>>, vector<1x128x64xbf16>
    %256 = vector.shape_cast %255 : vector<1x128x64xbf16> to vector<128x64xbf16>
    %cst_132 = arith.constant dense<0.000000e+00> : vector<8x64xf32>
    %257 = tpu.matmul %254, %256, %cst_132 {dimension_numbers = #tpu.dot_dimension_numbers<[1], [0], [0], [1], [0, 0, 1, 1], [], []>} : vector<8x128xbf16>, vector<128x64xbf16>, vector<8x64xf32> -> vector<8x64xf32>
    %c1_133 = arith.constant 1 : index
    %c0_134 = arith.constant 0 : index
    %c0_135 = arith.constant 0 : index
    %258 = vector.load %arg18[%c1_133, %c0_134, %c0_135] : memref<2x1x64xf32, #tpu.memory_space<vmem>>, vector<1x1x64xf32>
    %259 = vector.shape_cast %258 : vector<1x1x64xf32> to vector<1x64xf32>
    %260 = vector.broadcast %259 : vector<1x64xf32> to vector<8x64xf32>
    %261 = arith.addf %257, %260 : vector<8x64xf32>
    %262 = arith.addf %261, %232 : vector<8x64xf32>
    %c1_136 = arith.constant 1 : index
    %c0_137 = arith.constant 0 : index
    %c0_138 = arith.constant 0 : index
    %263 = vector.load %arg19[%c1_136, %c0_137, %c0_138] : memref<2x1x64xf32, #tpu.memory_space<vmem>>, vector<1x1x64xf32>
    %264 = vector.shape_cast %263 : vector<1x1x64xf32> to vector<1x64xf32>
    %c1_139 = arith.constant 1 : index
    %c0_140 = arith.constant 0 : index
    %c0_141 = arith.constant 0 : index
    %265 = vector.load %arg20[%c1_139, %c0_140, %c0_141] : memref<2x1x64xf32, #tpu.memory_space<vmem>>, vector<1x1x64xf32>
    %266 = vector.shape_cast %265 : vector<1x1x64xf32> to vector<1x64xf32>
    %cst_142 = arith.constant dense<0.000000e+00> : vector<8xf32>
    %267 = vector.multi_reduction <add>, %262, %cst_142 [1] : vector<8x64xf32> to vector<8xf32>
    %268 = vector.shape_cast %267 : vector<8xf32> to vector<8x1xf32>
    %cst_143 = arith.constant 6.400000e+01 : f32
    %269 = vector.broadcast %cst_143 : f32 to vector<8x1xf32>
    %270 = arith.divf %268, %269 : vector<8x1xf32>
    %271 = vector.broadcast %270 : vector<8x1xf32> to vector<8x64xf32>
    %272 = arith.subf %262, %271 : vector<8x64xf32>
    %273 = arith.mulf %272, %272 : vector<8x64xf32>
    %cst_144 = arith.constant dense<0.000000e+00> : vector<8xf32>
    %274 = vector.multi_reduction <add>, %273, %cst_144 [1] : vector<8x64xf32> to vector<8xf32>
    %275 = vector.shape_cast %274 : vector<8xf32> to vector<8x1xf32>
    %cst_145 = arith.constant 6.400000e+01 : f32
    %276 = vector.broadcast %cst_145 : f32 to vector<8x1xf32>
    %277 = arith.divf %275, %276 : vector<8x1xf32>
    %cst_146 = arith.constant 9.99999974E-6 : f32
    %278 = vector.broadcast %cst_146 : f32 to vector<8x1xf32>
    %279 = arith.addf %277, %278 : vector<8x1xf32>
    %280 = math.rsqrt %279 : vector<8x1xf32>
    %281 = vector.broadcast %280 : vector<8x1xf32> to vector<8x64xf32>
    %282 = arith.mulf %272, %281 : vector<8x64xf32>
    %283 = vector.broadcast %264 : vector<1x64xf32> to vector<8x64xf32>
    %284 = arith.mulf %282, %283 : vector<8x64xf32>
    %285 = vector.broadcast %266 : vector<1x64xf32> to vector<8x64xf32>
    %286 = arith.addf %284, %285 : vector<8x64xf32>
    %287 = vector.extract_strided_slice %286 {offsets = [0, 0], sizes = [1, 64], strides = [1, 1]} : vector<8x64xf32> to vector<1x64xf32>
    %288 = vector.shape_cast %287 : vector<1x64xf32> to vector<1x1x64xf32>
    %c0_147 = arith.constant 0 : index
    %c0_148 = arith.constant 0 : index
    %c0_149 = arith.constant 0 : index
    %289 = vector.load %arg21[%c0_147, %c0_148, %c0_149] : memref<1x1x64xf32, #tpu.memory_space<vmem>>, vector<1x1x64xf32>
    tpu.vector_store %arg21[%c0_147, %c0_148, %c0_149], %288 {strides = array<i32>} : memref<1x1x64xf32, #tpu.memory_space<vmem>>, vector<1x1x64xf32>,
    return
  }
  func.func @transform_0(%arg0: i32) -> (i32, i32) {
    %c0_i32 = arith.constant 0 : i32
    %c0_i32_0 = arith.constant 0 : i32
    return %arg0, %c0_i32 : i32, i32
  }
  func.func @transform_1(%arg0: i32) -> (i32, i32) {
    %c0_i32 = arith.constant 0 : i32
    %c0_i32_0 = arith.constant 0 : i32
    return %arg0, %c0_i32 : i32, i32
  }
  func.func @transform_2(%arg0: i32) -> (i32, i32, i32) {
    %c0_i32 = arith.constant 0 : i32
    %c0_i32_0 = arith.constant 0 : i32
    %c0_i32_1 = arith.constant 0 : i32
    return %arg0, %c0_i32, %c0_i32_0 : i32, i32, i32
  }
  func.func @transform_3(%arg0: i32) -> (i32, i32) {
    %c0_i32 = arith.constant 0 : i32
    %c0_i32_0 = arith.constant 0 : i32
    %c0_i32_1 = arith.constant 0 : i32
    return %c0_i32, %c0_i32_0 : i32, i32
  }
  func.func @transform_4(%arg0: i32) -> (i32, i32) {
    %c0_i32 = arith.constant 0 : i32
    %c0_i32_0 = arith.constant 0 : i32
    %c0_i32_1 = arith.constant 0 : i32
    return %c0_i32, %c0_i32_0 : i32, i32
  }
  func.func @transform_5(%arg0: i32) -> (i32, i32) {
    %c0_i32 = arith.constant 0 : i32
    %c0_i32_0 = arith.constant 0 : i32
    %c0_i32_1 = arith.constant 0 : i32
    return %c0_i32, %c0_i32_0 : i32, i32
  }
  func.func @transform_6(%arg0: i32) -> (i32, i32) {
    %c0_i32 = arith.constant 0 : i32
    %c0_i32_0 = arith.constant 0 : i32
    %c0_i32_1 = arith.constant 0 : i32
    return %c0_i32, %c0_i32_0 : i32, i32
  }
  func.func @transform_7(%arg0: i32) -> (i32, i32) {
    %c0_i32 = arith.constant 0 : i32
    %c0_i32_0 = arith.constant 0 : i32
    %c0_i32_1 = arith.constant 0 : i32
    return %c0_i32, %c0_i32_0 : i32, i32
  }
  func.func @transform_8(%arg0: i32) -> (i32, i32, i32, i32) {
    %c0_i32 = arith.constant 0 : i32
    %c0_i32_0 = arith.constant 0 : i32
    %c0_i32_1 = arith.constant 0 : i32
    %c0_i32_2 = arith.constant 0 : i32
    %c0_i32_3 = arith.constant 0 : i32
    return %c0_i32, %c0_i32_0, %c0_i32_1, %c0_i32_2 : i32, i32, i32, i32
  }
  func.func @transform_9(%arg0: i32) -> (i32, i32, i32, i32) {
    %c0_i32 = arith.constant 0 : i32
    %c0_i32_0 = arith.constant 0 : i32
    %c0_i32_1 = arith.constant 0 : i32
    %c0_i32_2 = arith.constant 0 : i32
    %c0_i32_3 = arith.constant 0 : i32
    return %c0_i32, %c0_i32_0, %c0_i32_1, %c0_i32_2 : i32, i32, i32, i32
  }
  func.func @transform_10(%arg0: i32) -> (i32, i32, i32, i32) {
    %c0_i32 = arith.constant 0 : i32
    %c0_i32_0 = arith.constant 0 : i32
    %c0_i32_1 = arith.constant 0 : i32
    %c0_i32_2 = arith.constant 0 : i32
    %c0_i32_3 = arith.constant 0 : i32
    return %c0_i32, %c0_i32_0, %c0_i32_1, %c0_i32_2 : i32, i32, i32, i32
  }
  func.func @transform_11(%arg0: i32) -> (i32, i32, i32) {
    %c0_i32 = arith.constant 0 : i32
    %c0_i32_0 = arith.constant 0 : i32
    %c0_i32_1 = arith.constant 0 : i32
    %c0_i32_2 = arith.constant 0 : i32
    return %c0_i32, %c0_i32_0, %c0_i32_1 : i32, i32, i32
  }
  func.func @transform_12(%arg0: i32) -> (i32, i32, i32) {
    %c0_i32 = arith.constant 0 : i32
    %c0_i32_0 = arith.constant 0 : i32
    %c0_i32_1 = arith.constant 0 : i32
    %c0_i32_2 = arith.constant 0 : i32
    return %c0_i32, %c0_i32_0, %c0_i32_1 : i32, i32, i32
  }
  func.func @transform_13(%arg0: i32) -> (i32, i32, i32) {
    %c0_i32 = arith.constant 0 : i32
    %c0_i32_0 = arith.constant 0 : i32
    %c0_i32_1 = arith.constant 0 : i32
    %c0_i32_2 = arith.constant 0 : i32
    return %c0_i32, %c0_i32_0, %c0_i32_1 : i32, i32, i32
  }
  func.func @transform_14(%arg0: i32) -> (i32, i32, i32) {
    %c0_i32 = arith.constant 0 : i32
    %c0_i32_0 = arith.constant 0 : i32
    %c0_i32_1 = arith.constant 0 : i32
    %c0_i32_2 = arith.constant 0 : i32
    return %c0_i32, %c0_i32_0, %c0_i32_1 : i32, i32, i32
  }
  func.func @transform_15(%arg0: i32) -> (i32, i32, i32) {
    %c0_i32 = arith.constant 0 : i32
    %c0_i32_0 = arith.constant 0 : i32
    %c0_i32_1 = arith.constant 0 : i32
    %c0_i32_2 = arith.constant 0 : i32
    return %c0_i32, %c0_i32_0, %c0_i32_1 : i32, i32, i32
  }
  func.func @transform_16(%arg0: i32) -> (i32, i32, i32) {
    %c0_i32 = arith.constant 0 : i32
    %c0_i32_0 = arith.constant 0 : i32
    %c0_i32_1 = arith.constant 0 : i32
    %c0_i32_2 = arith.constant 0 : i32
    return %c0_i32, %c0_i32_0, %c0_i32_1 : i32, i32, i32
  }
  func.func @transform_17(%arg0: i32) -> (i32, i32, i32) {
    %c0_i32 = arith.constant 0 : i32
    %c0_i32_0 = arith.constant 0 : i32
    %c0_i32_1 = arith.constant 0 : i32
    %c0_i32_2 = arith.constant 0 : i32
    return %c0_i32, %c0_i32_0, %c0_i32_1 : i32, i32, i32
  }
  func.func @transform_18(%arg0: i32) -> (i32, i32, i32) {
    %c0_i32 = arith.constant 0 : i32
    %c0_i32_0 = arith.constant 0 : i32
    %c0_i32_1 = arith.constant 0 : i32
    %c0_i32_2 = arith.constant 0 : i32
    return %c0_i32, %c0_i32_0, %c0_i32_1 : i32, i32, i32
  }
  func.func @transform_19(%arg0: i32) -> (i32, i32, i32) {
    %c0_i32 = arith.constant 0 : i32
    %c0_i32_0 = arith.constant 0 : i32
    %c0_i32_1 = arith.constant 0 : i32
    %c0_i32_2 = arith.constant 0 : i32
    return %c0_i32, %c0_i32_0, %c0_i32_1 : i32, i32, i32
  }
  func.func @transform_20(%arg0: i32) -> (i32, i32, i32) {
    %c0_i32 = arith.constant 0 : i32
    %c0_i32_0 = arith.constant 0 : i32
    %c0_i32_1 = arith.constant 0 : i32
    return %arg0, %c0_i32, %c0_i32_0 : i32, i32, i32
  }
}

</mosaic_0001>

<llo_original>
// kernel: distilroberta_encoder_forward.1
$region0: #{distilroberta_encoder_forward.1}
  #allocation0 [shape = 'u32[]', space=smem, size = 0x4, offset = 0x4, fixed_abs, tag = 'smem constant byte address 0x4 - core index']
  #allocation1 [shape = 'u32[72,128]{1,0:T(1,128)}', space=vmem, size = 0x9000, scoped, tag = 'internal scratch']
  %s0 = inlined_call_operand.vmem [shape: s32[16,1], index: 0, kind: input, shape index: {}]
  %s1 = inlined_call_operand.vmem [shape: s32[16,1], index: 1, kind: input, shape index: {}]
  %s2 = inlined_call_operand.vmem [shape: f32[2,1,8], index: 2, kind: input, shape index: {}]
  %s3 = inlined_call_operand.vmem [shape: bf16[50,64], index: 3, kind: input, shape index: {}]
  %s4 = inlined_call_operand.vmem [shape: bf16[16,64], index: 4, kind: input, shape index: {}]
  %s5 = inlined_call_operand.vmem [shape: f32[1,64], index: 5, kind: input, shape index: {}]
  %s6 = inlined_call_operand.vmem [shape: f32[1,64], index: 6, kind: input, shape index: {}]
  %s7 = inlined_call_operand.vmem [shape: f32[1,64], index: 7, kind: input, shape index: {}]
  %s8 = inlined_call_operand.vmem [shape: bf16[2,12,64,16], index: 8, kind: input, shape index: {}]
  %s9 = inlined_call_operand.vmem [shape: f32[2,12,1,16], index: 9, kind: input, shape index: {}]
  %s10 = inlined_call_operand.vmem [shape: bf16[2,4,16,64], index: 10, kind: input, shape index: {}]
  %s11 = inlined_call_operand.vmem [shape: f32[2,1,64], index: 11, kind: input, shape index: {}]
  %s12 = inlined_call_operand.vmem [shape: f32[2,1,64], index: 12, kind: input, shape index: {}]
  %s13 = inlined_call_operand.vmem [shape: f32[2,1,64], index: 13, kind: input, shape index: {}]
  %s14 = inlined_call_operand.vmem [shape: bf16[2,64,128], index: 14, kind: input, shape index: {}]
  %s15 = inlined_call_operand.vmem [shape: f32[2,1,128], index: 15, kind: input, shape index: {}]
  %s16 = inlined_call_operand.vmem [shape: bf16[2,128,64], index: 16, kind: input, shape index: {}]
  %s17 = inlined_call_operand.vmem [shape: f32[2,1,64], index: 17, kind: input, shape index: {}]
  %s18 = inlined_call_operand.vmem [shape: f32[2,1,64], index: 18, kind: input, shape index: {}]
  %s19 = inlined_call_operand.vmem [shape: f32[2,1,64], index: 19, kind: input, shape index: {}]
  %s20 = inlined_call_operand.hbm [shape: f32[2,1,64], index: 20, kind: output, shape index: {}]
  %s21 = sld [smem:[#allocation0]]
  $region113: #{distilroberta_encoder_forward.1} parent=0
    _
  %s23 = ssub.s32 1, %s21
  %s24 = scalar_select 0, %s23, %s21
  $region1: #{distilroberta_encoder_forward.1} parent=0
    #allocation2 [shape = 'u8[1024]{0}', space=vmem, size = 0x400, scoped, tag = 'output window, operand 0']
    #allocation3 [shape = 's32[2]{0}', space=sflag, size = 0x8, scoped, tag = 'scoped memory for distilroberta_encoder_forward.1']
    %25 = vsyncpa [#allocation3], 0
    %s26 = scalar_lea.sflag [#allocation3], 1
    %27 = vsyncpa %s26, 0
    loop: start=0, step=1, limit=4
    $region2: #{distilroberta_encoder_forward.1} parent=1 // loop_pre_header
      _
    $region3: #{distilroberta_encoder_forward.1} parent=1 // loop_header
      %s29 = sphi 0, %s33
      %p30 = scmp.ge.s32.totalorder %s29, 4
      %s39 = sphi 0, %s41
      %s42 = sphi 0, %s39
      %s43 = sphi 0, %s42
      %s59 = sphi 0, %s43
      %s65 = sphi 0, %s67
      %s68 = sphi 0, %s65
      %s69 = sphi 0, %s68
      %s85 = sphi 0, %s69
      %s91 = sphi 0, %s93
      %s94 = sphi 0, %s91
      %s95 = sphi 0, %s94
      %s111 = sphi 0, %s95
      %s115 = sphi 0, %s115
      %s117 = sphi 0, %s115
      %s118 = sphi 0, %s117
      %s132 = sphi 0, %s118
      %s136 = sphi 0, %s136
      %s138 = sphi 0, %s136
      %s139 = sphi 0, %s138
      %s153 = sphi 0, %s139
      %s157 = sphi 0, %s157
      %s159 = sphi 0, %s157
      %s160 = sphi 0, %s159
      %s174 = sphi 0, %s160
      %s178 = sphi 0, %s178
      %s180 = sphi 0, %s178
      %s181 = sphi 0, %s180
      %s195 = sphi 0, %s181
      %s199 = sphi 0, %s199
      %s201 = sphi 0, %s199
      %s202 = sphi 0, %s201
      %s216 = sphi 0, %s202
      %s220 = sphi 0, %s220
      %s222 = sphi 0, %s220
      %s223 = sphi 0, %s222
      %s237 = sphi 0, %s223
      %s241 = sphi 0, %s241
      %s243 = sphi 0, %s241
      %s244 = sphi 0, %s243
      %s258 = sphi 0, %s244
      %s262 = sphi 0, %s262
      %s264 = sphi 0, %s262
      %s265 = sphi 0, %s264
      %s279 = sphi 0, %s265
      %s283 = sphi 0, %s283
      %s285 = sphi 0, %s283
      %s286 = sphi 0, %s285
      %s300 = sphi 0, %s286
      %s304 = sphi 0, %s304
      %s306 = sphi 0, %s304
      %s307 = sphi 0, %s306
      %s321 = sphi 0, %s307
      %s325 = sphi 0, %s325
      %s327 = sphi 0, %s325
      %s328 = sphi 0, %s327
      %s342 = sphi 0, %s328
      %s346 = sphi 0, %s346
      %s348 = sphi 0, %s346
      %s349 = sphi 0, %s348
      %s363 = sphi 0, %s349
      %s367 = sphi 0, %s367
      %s369 = sphi 0, %s367
      %s370 = sphi 0, %s369
      %s384 = sphi 0, %s370
      %s388 = sphi 0, %s388
      %s390 = sphi 0, %s388
      %s391 = sphi 0, %s390
      %s405 = sphi 0, %s391
      %s409 = sphi 0, %s409
      %s411 = sphi 0, %s409
      %s412 = sphi 0, %s411
      %s426 = sphi 0, %s412
      %s430 = sphi 0, %s430
      %s432 = sphi 0, %s430
      %s433 = sphi 0, %s432
      %s447 = sphi 0, %s433
      %s451 = sphi 0, %s451
      %s453 = sphi 0, %s451
      %s454 = sphi 0, %s453
      %s468 = sphi 0, %s454
      %s474 = sphi 0, %s476
      %s477 = sphi 0, %s474
      %s478 = sphi 0, %s477
      %s494 = sphi 0, %s478
    $region4: #{distilroberta_encoder_forward.1} parent=1 // loop_header_branch
      %32 = sbr.rel (%p30) target = $region8
    $region5: #{distilroberta_encoder_forward.1} parent=1 // loop_body
      %s34 = ssub.s32 %s29, 1
      %s35 = ssub.s32 %s29, 2
      %s36 = sadd.s32 %s29, 1
      %s37 = ssub.s32 %s29, %s36
      %p38 = scmp.eq.s32.totalorder %s37, 0
      %s40 = sadd.s32 %s39, 1
      %s41 = scalar_select %p38, %s39, %s40
      %p44 = pneg %p38
      %p45 = scmp.eq.s32.totalorder %s29, 1
      %p46 = por %p44, %p45
      %p47 = scmp.ne.s32.totalorder %s39, %s42
      %p48 = scmp.eq.s32.totalorder %s29, 0
      %p49 = por %p47, %p48
      %p50 = scmp.ne.s32.totalorder %s39, %s42
      %p51 = scmp.eq.s32.totalorder %s34, 1
      %p52 = por %p50, %p51
      %p53 = scmp.ne.s32.totalorder %s42, %s43
      %p54 = scmp.eq.s32.totalorder %s34, 0
      %p55 = por %p53, %p54
      %p56 = scmp.ne.s32.totalorder %s42, %s43
      %p57 = scmp.eq.s32.totalorder %s35, 1
      %p58 = por %p56, %p57
      %p60 = scmp.ne.s32.totalorder %s43, %s59
      %p61 = scmp.eq.s32.totalorder %s35, 0
      %p62 = por %p60, %p61
      %s63 = ssub.s32 %s29, %s36
      %p64 = scmp.eq.s32.totalorder %s63, 0
      %s66 = sadd.s32 %s65, 1
      %s67 = scalar_select %p64, %s65, %s66
      %p70 = pneg %p64
      %p71 = scmp.eq.s32.totalorder %s29, 1
      %p72 = por %p70, %p71
      %p73 = scmp.ne.s32.totalorder %s65, %s68
      %p74 = scmp.eq.s32.totalorder %s29, 0
      %p75 = por %p73, %p74
      %p76 = scmp.ne.s32.totalorder %s65, %s68
      %p77 = scmp.eq.s32.totalorder %s34, 1
      %p78 = por %p76, %p77
      %p79 = scmp.ne.s32.totalorder %s68, %s69
      %p80 = scmp.eq.s32.totalorder %s34, 0
      %p81 = por %p79, %p80
      %p82 = scmp.ne.s32.totalorder %s68, %s69
      %p83 = scmp.eq.s32.totalorder %s35, 1
      %p84 = por %p82, %p83
      %p86 = scmp.ne.s32.totalorder %s69, %s85
      %p87 = scmp.eq.s32.totalorder %s35, 0
      %p88 = por %p86, %p87
      %s89 = ssub.s32 %s29, %s36
      %p90 = scmp.eq.s32.totalorder %s89, 0
      %s92 = sadd.s32 %s91, 1
      %s93 = scalar_select %p90, %s91, %s92
      %p96 = pneg %p90
      %p97 = scmp.eq.s32.totalorder %s29, 1
      %p98 = por %p96, %p97
      %p99 = scmp.ne.s32.totalorder %s91, %s94
      %p100 = scmp.eq.s32.totalorder %s29, 0
      %p101 = por %p99, %p100
      %p102 = scmp.ne.s32.totalorder %s91, %s94
      %p103 = scmp.eq.s32.totalorder %s34, 1
      %p104 = por %p102, %p103
      %p105 = scmp.ne.s32.totalorder %s94, %s95
      %p106 = scmp.eq.s32.totalorder %s34, 0
      %p107 = por %p105, %p106
      %p108 = scmp.ne.s32.totalorder %s94, %s95
      %p109 = scmp.eq.s32.totalorder %s35, 1
      %p110 = por %p108, %p109
      %p112 = scmp.ne.s32.totalorder %s95, %s111
      %p113 = scmp.eq.s32.totalorder %s35, 0
      %p114 = por %p112, %p113
      %s116 = sadd.s32 %s115, 1
      %p119 = scmp.eq.s32.totalorder %s29, 1
      %p120 = scmp.ne.s32.totalorder %s115, %s117
      %p121 = scmp.eq.s32.totalorder %s29, 0
      %p122 = por %p120, %p121
      %p123 = scmp.ne.s32.totalorder %s115, %s117
      %p124 = scmp.eq.s32.totalorder %s34, 1
      %p125 = por %p123, %p124
      %p126 = scmp.ne.s32.totalorder %s117, %s118
      %p127 = scmp.eq.s32.totalorder %s34, 0
      %p128 = por %p126, %p127
      %p129 = scmp.ne.s32.totalorder %s117, %s118
      %p130 = scmp.eq.s32.totalorder %s35, 1
      %p131 = por %p129, %p130
      %p133 = scmp.ne.s32.totalorder %s118, %s132
      %p134 = scmp.eq.s32.totalorder %s35, 0
      %p135 = por %p133, %p134
      %s137 = sadd.s32 %s136, 1
      %p140 = scmp.eq.s32.totalorder %s29, 1
      %p141 = scmp.ne.s32.totalorder %s136, %s138
      %p142 = scmp.eq.s32.totalorder %s29, 0
      %p143 = por %p141, %p142
      %p144 = scmp.ne.s32.totalorder %s136, %s138
      %p145 = scmp.eq.s32.totalorder %s34, 1
      %p146 = por %p144, %p145
      %p147 = scmp.ne.s32.totalorder %s138, %s139
      %p148 = scmp.eq.s32.totalorder %s34, 0
      %p149 = por %p147, %p148
      %p150 = scmp.ne.s32.totalorder %s138, %s139
      %p151 = scmp.eq.s32.totalorder %s35, 1
      %p152 = por %p150, %p151
      %p154 = scmp.ne.s32.totalorder %s139, %s153
      %p155 = scmp.eq.s32.totalorder %s35, 0
      %p156 = por %p154, %p155
      %s158 = sadd.s32 %s157, 1
      %p161 = scmp.eq.s32.totalorder %s29, 1
      %p162 = scmp.ne.s32.totalorder %s157, %s159
      %p163 = scmp.eq.s32.totalorder %s29, 0
      %p164 = por %p162, %p163
      %p165 = scmp.ne.s32.totalorder %s157, %s159
      %p166 = scmp.eq.s32.totalorder %s34, 1
      %p167 = por %p165, %p166
      %p168 = scmp.ne.s32.totalorder %s159, %s160
      %p169 = scmp.eq.s32.totalorder %s34, 0
      %p170 = por %p168, %p169
      %p171 = scmp.ne.s32.totalorder %s159, %s160
      %p172 = scmp.eq.s32.totalorder %s35, 1
      %p173 = por %p171, %p172
      %p175 = scmp.ne.s32.totalorder %s160, %s174
      %p176 = scmp.eq.s32.totalorder %s35, 0
      %p177 = por %p175, %p176
      %s179 = sadd.s32 %s178, 1
      %p182 = scmp.eq.s32.totalorder %s29, 1
      %p183 = scmp.ne.s32.totalorder %s178, %s180
      %p184 = scmp.eq.s32.totalorder %s29, 0
      %p185 = por %p183, %p184
      %p186 = scmp.ne.s32.totalorder %s178, %s180
      %p187 = scmp.eq.s32.totalorder %s34, 1
      %p188 = por %p186, %p187
      %p189 = scmp.ne.s32.totalorder %s180, %s181
      %p190 = scmp.eq.s32.totalorder %s34, 0
      %p191 = por %p189, %p190
      %p192 = scmp.ne.s32.totalorder %s180, %s181
      %p193 = scmp.eq.s32.totalorder %s35, 1
      %p194 = por %p192, %p193
      %p196 = scmp.ne.s32.totalorder %s181, %s195
      %p197 = scmp.eq.s32.totalorder %s35, 0
      %p198 = por %p196, %p197
      %s200 = sadd.s32 %s199, 1
      %p203 = scmp.eq.s32.totalorder %s29, 1
      %p204 = scmp.ne.s32.totalorder %s199, %s201
      %p205 = scmp.eq.s32.totalorder %s29, 0
      %p206 = por %p204, %p205
      %p207 = scmp.ne.s32.totalorder %s199, %s201
      %p208 = scmp.eq.s32.totalorder %s34, 1
      %p209 = por %p207, %p208
      %p210 = scmp.ne.s32.totalorder %s201, %s202
      %p211 = scmp.eq.s32.totalorder %s34, 0
      %p212 = por %p210, %p211
      %p213 = scmp.ne.s32.totalorder %s201, %s202
      %p214 = scmp.eq.s32.totalorder %s35, 1
      %p215 = por %p213, %p214
      %p217 = scmp.ne.s32.totalorder %s202, %s216
      %p218 = scmp.eq.s32.totalorder %s35, 0
      %p219 = por %p217, %p218
      %s221 = sadd.s32 %s220, 1
      %p224 = scmp.eq.s32.totalorder %s29, 1
      %p225 = scmp.ne.s32.totalorder %s220, %s222
      %p226 = scmp.eq.s32.totalorder %s29, 0
      %p227 = por %p225, %p226
      %p228 = scmp.ne.s32.totalorder %s220, %s222
      %p229 = scmp.eq.s32.totalorder %s34, 1
      %p230 = por %p228, %p229
      %p231 = scmp.ne.s32.totalorder %s222, %s223
      %p232 = scmp.eq.s32.totalorder %s34, 0
      %p233 = por %p231, %p232
      %p234 = scmp.ne.s32.totalorder %s222, %s223
      %p235 = scmp.eq.s32.totalorder %s35, 1
      %p236 = por %p234, %p235
      %p238 = scmp.ne.s32.totalorder %s223, %s237
      %p239 = scmp.eq.s32.totalorder %s35, 0
      %p240 = por %p238, %p239
      %s242 = sadd.s32 %s241, 1
      %p245 = scmp.eq.s32.totalorder %s29, 1
      %p246 = scmp.ne.s32.totalorder %s241, %s243
      %p247 = scmp.eq.s32.totalorder %s29, 0
      %p248 = por %p246, %p247
      %p249 = scmp.ne.s32.totalorder %s241, %s243
      %p250 = scmp.eq.s32.totalorder %s34, 1
      %p251 = por %p249, %p250
      %p252 = scmp.ne.s32.totalorder %s243, %s244
      %p253 = scmp.eq.s32.totalorder %s34, 0
      %p254 = por %p252, %p253
      %p255 = scmp.ne.s32.totalorder %s243, %s244
      %p256 = scmp.eq.s32.totalorder %s35, 1
      %p257 = por %p255, %p256
      %p259 = scmp.ne.s32.totalorder %s244, %s258
      %p260 = scmp.eq.s32.totalorder %s35, 0
      %p261 = por %p259, %p260
      %s263 = sadd.s32 %s262, 1
      %p266 = scmp.eq.s32.totalorder %s29, 1
      %p267 = scmp.ne.s32.totalorder %s262, %s264
      %p268 = scmp.eq.s32.totalorder %s29, 0
      %p269 = por %p267, %p268
      %p270 = scmp.ne.s32.totalorder %s262, %s264
      %p271 = scmp.eq.s32.totalorder %s34, 1
      %p272 = por %p270, %p271
      %p273 = scmp.ne.s32.totalorder %s264, %s265
      %p274 = scmp.eq.s32.totalorder %s34, 0
      %p275 = por %p273, %p274
      %p276 = scmp.ne.s32.totalorder %s264, %s265
      %p277 = scmp.eq.s32.totalorder %s35, 1
      %p278 = por %p276, %p277
      %p280 = scmp.ne.s32.totalorder %s265, %s279
      %p281 = scmp.eq.s32.totalorder %s35, 0
      %p282 = por %p280, %p281
      %s284 = sadd.s32 %s283, 1
      %p287 = scmp.eq.s32.totalorder %s29, 1
      %p288 = scmp.ne.s32.totalorder %s283, %s285
      %p289 = scmp.eq.s32.totalorder %s29, 0
      %p290 = por %p288, %p289
      %p291 = scmp.ne.s32.totalorder %s283, %s285
      %p292 = scmp.eq.s32.totalorder %s34, 1
      %p293 = por %p291, %p292
      %p294 = scmp.ne.s32.totalorder %s285, %s286
      %p295 = scmp.eq.s32.totalorder %s34, 0
      %p296 = por %p294, %p295
      %p297 = scmp.ne.s32.totalorder %s285, %s286
      %p298 = scmp.eq.s32.totalorder %s35, 1
      %p299 = por %p297, %p298
      %p301 = scmp.ne.s32.totalorder %s286, %s300
      %p302 = scmp.eq.s32.totalorder %s35, 0
      %p303 = por %p301, %p302
      %s305 = sadd.s32 %s304, 1
      %p308 = scmp.eq.s32.totalorder %s29, 1
      %p309 = scmp.ne.s32.totalorder %s304, %s306
      %p310 = scmp.eq.s32.totalorder %s29, 0
      %p311 = por %p309, %p310
      %p312 = scmp.ne.s32.totalorder %s304, %s306
      %p313 = scmp.eq.s32.totalorder %s34, 1
      %p314 = por %p312, %p313
      %p315 = scmp.ne.s32.totalorder %s306, %s307
      %p316 = scmp.eq.s32.totalorder %s34, 0
      %p317 = por %p315, %p316
      %p318 = scmp.ne.s32.totalorder %s306, %s307
      %p319 = scmp.eq.s32.totalorder %s35, 1
      %p320 = por %p318, %p319
      %p322 = scmp.ne.s32.totalorder %s307, %s321
      %p323 = scmp.eq.s32.totalorder %s35, 0
      %p324 = por %p322, %p323
      %s326 = sadd.s32 %s325, 1
      %p329 = scmp.eq.s32.totalorder %s29, 1
      %p330 = scmp.ne.s32.totalorder %s325, %s327
      %p331 = scmp.eq.s32.totalorder %s29, 0
      %p332 = por %p330, %p331
      %p333 = scmp.ne.s32.totalorder %s325, %s327
      %p334 = scmp.eq.s32.totalorder %s34, 1
      %p335 = por %p333, %p334
      %p336 = scmp.ne.s32.totalorder %s327, %s328
      %p337 = scmp.eq.s32.totalorder %s34, 0
      %p338 = por %p336, %p337
      %p339 = scmp.ne.s32.totalorder %s327, %s328
      %p340 = scmp.eq.s32.totalorder %s35, 1
      %p341 = por %p339, %p340
      %p343 = scmp.ne.s32.totalorder %s328, %s342
      %p344 = scmp.eq.s32.totalorder %s35, 0
      %p345 = por %p343, %p344
      %s347 = sadd.s32 %s346, 1
      %p350 = scmp.eq.s32.totalorder %s29, 1
      %p351 = scmp.ne.s32.totalorder %s346, %s348
      %p352 = scmp.eq.s32.totalorder %s29, 0
      %p353 = por %p351, %p352
      %p354 = scmp.ne.s32.totalorder %s346, %s348
      %p355 = scmp.eq.s32.totalorder %s34, 1
      %p356 = por %p354, %p355
      %p357 = scmp.ne.s32.totalorder %s348, %s349
      %p358 = scmp.eq.s32.totalorder %s34, 0
      %p359 = por %p357, %p358
      %p360 = scmp.ne.s32.totalorder %s348, %s349
      %p361 = scmp.eq.s32.totalorder %s35, 1
      %p362 = por %p360, %p361
      %p364 = scmp.ne.s32.totalorder %s349, %s363
      %p365 = scmp.eq.s32.totalorder %s35, 0
      %p366 = por %p364, %p365
      %s368 = sadd.s32 %s367, 1
      %p371 = scmp.eq.s32.totalorder %s29, 1
      %p372 = scmp.ne.s32.totalorder %s367, %s369
      %p373 = scmp.eq.s32.totalorder %s29, 0
      %p374 = por %p372, %p373
      %p375 = scmp.ne.s32.totalorder %s367, %s369
      %p376 = scmp.eq.s32.totalorder %s34, 1
      %p377 = por %p375, %p376
      %p378 = scmp.ne.s32.totalorder %s369, %s370
      %p379 = scmp.eq.s32.totalorder %s34, 0
      %p380 = por %p378, %p379
      %p381 = scmp.ne.s32.totalorder %s369, %s370
      %p382 = scmp.eq.s32.totalorder %s35, 1
      %p383 = por %p381, %p382
      %p385 = scmp.ne.s32.totalorder %s370, %s384
      %p386 = scmp.eq.s32.totalorder %s35, 0
      %p387 = por %p385, %p386
      %s389 = sadd.s32 %s388, 1
      %p392 = scmp.eq.s32.totalorder %s29, 1
      %p393 = scmp.ne.s32.totalorder %s388, %s390
      %p394 = scmp.eq.s32.totalorder %s29, 0
      %p395 = por %p393, %p394
      %p396 = scmp.ne.s32.totalorder %s388, %s390
      %p397 = scmp.eq.s32.totalorder %s34, 1
      %p398 = por %p396, %p397
      %p399 = scmp.ne.s32.totalorder %s390, %s391
      %p400 = scmp.eq.s32.totalorder %s34, 0
      %p401 = por %p399, %p400
      %p402 = scmp.ne.s32.totalorder %s390, %s391
      %p403 = scmp.eq.s32.totalorder %s35, 1
      %p404 = por %p402, %p403
      %p406 = scmp.ne.s32.totalorder %s391, %s405
      %p407 = scmp.eq.s32.totalorder %s35, 0
      %p408 = por %p406, %p407
      %s410 = sadd.s32 %s409, 1
      %p413 = scmp.eq.s32.totalorder %s29, 1
      %p414 = scmp.ne.s32.totalorder %s409, %s411
      %p415 = scmp.eq.s32.totalorder %s29, 0
      %p416 = por %p414, %p415
      %p417 = scmp.ne.s32.totalorder %s409, %s411
      %p418 = scmp.eq.s32.totalorder %s34, 1
      %p419 = por %p417, %p418
      %p420 = scmp.ne.s32.totalorder %s411, %s412
      %p421 = scmp.eq.s32.totalorder %s34, 0
      %p422 = por %p420, %p421
      %p423 = scmp.ne.s32.totalorder %s411, %s412
      %p424 = scmp.eq.s32.totalorder %s35, 1
      %p425 = por %p423, %p424
      %p427 = scmp.ne.s32.totalorder %s412, %s426
      %p428 = scmp.eq.s32.totalorder %s35, 0
      %p429 = por %p427, %p428
      %s431 = sadd.s32 %s430, 1
      %p434 = scmp.eq.s32.totalorder %s29, 1
      %p435 = scmp.ne.s32.totalorder %s430, %s432
      %p436 = scmp.eq.s32.totalorder %s29, 0
      %p437 = por %p435, %p436
      %p438 = scmp.ne.s32.totalorder %s430, %s432
      %p439 = scmp.eq.s32.totalorder %s34, 1
      %p440 = por %p438, %p439
      %p441 = scmp.ne.s32.totalorder %s432, %s433
      %p442 = scmp.eq.s32.totalorder %s34, 0
      %p443 = por %p441, %p442
      %p444 = scmp.ne.s32.totalorder %s432, %s433
      %p445 = scmp.eq.s32.totalorder %s35, 1
      %p446 = por %p444, %p445
      %p448 = scmp.ne.s32.totalorder %s433, %s447
      %p449 = scmp.eq.s32.totalorder %s35, 0
      %p450 = por %p448, %p449
      %s452 = sadd.s32 %s451, 1
      %p455 = scmp.eq.s32.totalorder %s29, 1
      %p456 = scmp.ne.s32.totalorder %s451, %s453
      %p457 = scmp.eq.s32.totalorder %s29, 0
      %p458 = por %p456, %p457
      %p459 = scmp.ne.s32.totalorder %s451, %s453
      %p460 = scmp.eq.s32.totalorder %s34, 1
      %p461 = por %p459, %p460
      %p462 = scmp.ne.s32.totalorder %s453, %s454
      %p463 = scmp.eq.s32.totalorder %s34, 0
      %p464 = por %p462, %p463
      %p465 = scmp.ne.s32.totalorder %s453, %s454
      %p466 = scmp.eq.s32.totalorder %s35, 1
      %p467 = por %p465, %p466
      %p469 = scmp.ne.s32.totalorder %s454, %s468
      %p470 = scmp.eq.s32.totalorder %s35, 0
      %p471 = por %p469, %p470
      %s472 = ssub.s32 %s29, %s36
      %p473 = scmp.eq.s32.totalorder %s472, 0
      %s475 = sadd.s32 %s474, 1
      %s476 = scalar_select %p473, %s474, %s475
      %p479 = pneg %p473
      %p480 = scmp.eq.s32.totalorder %s29, 1
      %p481 = por %p479, %p480
      %p482 = scmp.ne.s32.totalorder %s474, %s477
      %p483 = scmp.eq.s32.totalorder %s29, 0
      %p484 = por %p482, %p483
      %p485 = scmp.ne.s32.totalorder %s474, %s477
      %p486 = scmp.eq.s32.totalorder %s34, 1
      %p487 = por %p485, %p486
      %p488 = scmp.ne.s32.totalorder %s477, %s478
      %p489 = scmp.eq.s32.totalorder %s34, 0
      %p490 = por %p488, %p489
      %p491 = scmp.ne.s32.totalorder %s477, %s478
      %p492 = scmp.eq.s32.totalorder %s35, 1
      %p493 = por %p491, %p492
      %p495 = scmp.ne.s32.totalorder %s478, %s494
      %p496 = scmp.eq.s32.totalorder %s35, 0
      %p497 = por %p495, %p496
      %p498 = scmp.le.s32.totalorder 1, %s29
      %p499 = scmp.lt.s32.totalorder %s29, 3
      %p500 = pnand %p498, %p499
      %p501 = pneg %p500
      // Predicated region
      $region9: #{distilroberta_encoder_forward.1} parent=5 // pred_check
        _
      $region10: #{distilroberta_encoder_forward.1} parent=5 // pred_check_branch
        %503 = sbr.rel (%p500) target = $region12
      $region11: #{distilroberta_encoder_forward.1} parent=5 // pred_region
        %s504 = ssub.s32 %s29, 1
        // Predicated region
        $region13: #{distilroberta_encoder_forward.1} parent=11 // pred_check
          %p505 = pneg %p128
        $region14: #{distilroberta_encoder_forward.1} parent=11 // pred_check_branch
          %507 = sbr.rel (%p505) target = $region16
        $region15: #{distilroberta_encoder_forward.1} parent=11 // pred_region
          _
        $region16: #{distilroberta_encoder_forward.1} parent=11 // pred_fallthru
          _
        // Predicated region
        $region17: #{distilroberta_encoder_forward.1} parent=11 // pred_check
          %p508 = pneg %p149
        $region18: #{distilroberta_encoder_forward.1} parent=11 // pred_check_branch
          %510 = sbr.rel (%p508) target = $region20
        $region19: #{distilroberta_encoder_forward.1} parent=11 // pred_region
          _
        $region20: #{distilroberta_encoder_forward.1} parent=11 // pred_fallthru
          _
        // Predicated region
        $region21: #{distilroberta_encoder_forward.1} parent=11 // pred_check
          %p511 = pneg %p170
        $region22: #{distilroberta_encoder_forward.1} parent=11 // pred_check_branch
          %513 = sbr.rel (%p511) target = $region24
        $region23: #{distilroberta_encoder_forward.1} parent=11 // pred_region
          _
        $region24: #{distilroberta_encoder_forward.1} parent=11 // pred_fallthru
          _
        // Predicated region
        $region25: #{distilroberta_encoder_forward.1} parent=11 // pred_check
          %p514 = pneg %p191
        $region26: #{distilroberta_encoder_forward.1} parent=11 // pred_check_branch
          %516 = sbr.rel (%p514) target = $region28
        $region27: #{distilroberta_encoder_forward.1} parent=11 // pred_region
          _
        $region28: #{distilroberta_encoder_forward.1} parent=11 // pred_fallthru
          _
        // Predicated region
        $region29: #{distilroberta_encoder_forward.1} parent=11 // pred_check
          %p517 = pneg %p212
        $region30: #{distilroberta_encoder_forward.1} parent=11 // pred_check_branch
          %519 = sbr.rel (%p517) target = $region32
        $region31: #{distilroberta_encoder_forward.1} parent=11 // pred_region
          _
        $region32: #{distilroberta_encoder_forward.1} parent=11 // pred_fallthru
          _
        // Predicated region
        $region33: #{distilroberta_encoder_forward.1} parent=11 // pred_check
          %p520 = pneg %p233
        $region34: #{distilroberta_encoder_forward.1} parent=11 // pred_check_branch
          %522 = sbr.rel (%p520) target = $region36
        $region35: #{distilroberta_encoder_forward.1} parent=11 // pred_region
          _
        $region36: #{distilroberta_encoder_forward.1} parent=11 // pred_fallthru
          _
        // Predicated region
        $region37: #{distilroberta_encoder_forward.1} parent=11 // pred_check
          %p523 = pneg %p254
        $region38: #{distilroberta_encoder_forward.1} parent=11 // pred_check_branch
          %525 = sbr.rel (%p523) target = $region40
        $region39: #{distilroberta_encoder_forward.1} parent=11 // pred_region
          _
        $region40: #{distilroberta_encoder_forward.1} parent=11 // pred_fallthru
          _
        // Predicated region
        $region41: #{distilroberta_encoder_forward.1} parent=11 // pred_check
          %p526 = pneg %p275
        $region42: #{distilroberta_encoder_forward.1} parent=11 // pred_check_branch
          %528 = sbr.rel (%p526) target = $region44
        $region43: #{distilroberta_encoder_forward.1} parent=11 // pred_region
          _
        $region44: #{distilroberta_encoder_forward.1} parent=11 // pred_fallthru
          _
        // Predicated region
        $region45: #{distilroberta_encoder_forward.1} parent=11 // pred_check
          %p529 = pneg %p296
        $region46: #{distilroberta_encoder_forward.1} parent=11 // pred_check_branch
          %531 = sbr.rel (%p529) target = $region48
        $region47: #{distilroberta_encoder_forward.1} parent=11 // pred_region
          _
        $region48: #{distilroberta_encoder_forward.1} parent=11 // pred_fallthru
          _
        // Predicated region
        $region49: #{distilroberta_encoder_forward.1} parent=11 // pred_check
          %p532 = pneg %p317
        $region50: #{distilroberta_encoder_forward.1} parent=11 // pred_check_branch
          %534 = sbr.rel (%p532) target = $region52
        $region51: #{distilroberta_encoder_forward.1} parent=11 // pred_region
          _
        $region52: #{distilroberta_encoder_forward.1} parent=11 // pred_fallthru
          _
        // Predicated region
        $region53: #{distilroberta_encoder_forward.1} parent=11 // pred_check
          %p535 = pneg %p338
        $region54: #{distilroberta_encoder_forward.1} parent=11 // pred_check_branch
          %537 = sbr.rel (%p535) target = $region56
        $region55: #{distilroberta_encoder_forward.1} parent=11 // pred_region
          _
        $region56: #{distilroberta_encoder_forward.1} parent=11 // pred_fallthru
          _
        // Predicated region
        $region57: #{distilroberta_encoder_forward.1} parent=11 // pred_check
          %p538 = pneg %p359
        $region58: #{distilroberta_encoder_forward.1} parent=11 // pred_check_branch
          %540 = sbr.rel (%p538) target = $region60
        $region59: #{distilroberta_encoder_forward.1} parent=11 // pred_region
          _
        $region60: #{distilroberta_encoder_forward.1} parent=11 // pred_fallthru
          _
        // Predicated region
        $region61: #{distilroberta_encoder_forward.1} parent=11 // pred_check
          %p541 = pneg %p380
        $region62: #{distilroberta_encoder_forward.1} parent=11 // pred_check_branch
          %543 = sbr.rel (%p541) target = $region64
        $region63: #{distilroberta_encoder_forward.1} parent=11 // pred_region
          _
        $region64: #{distilroberta_encoder_forward.1} parent=11 // pred_fallthru
          _
        // Predicated region
        $region65: #{distilroberta_encoder_forward.1} parent=11 // pred_check
          %p544 = pneg %p401
        $region66: #{distilroberta_encoder_forward.1} parent=11 // pred_check_branch
          %546 = sbr.rel (%p544) target = $region68
        $region67: #{distilroberta_encoder_forward.1} parent=11 // pred_region
          _
        $region68: #{distilroberta_encoder_forward.1} parent=11 // pred_fallthru
          _
        // Predicated region
        $region69: #{distilroberta_encoder_forward.1} parent=11 // pred_check
          %p547 = pneg %p422
        $region70: #{distilroberta_encoder_forward.1} parent=11 // pred_check_branch
          %549 = sbr.rel (%p547) target = $region72
        $region71: #{distilroberta_encoder_forward.1} parent=11 // pred_region
          _
        $region72: #{distilroberta_encoder_forward.1} parent=11 // pred_fallthru
          _
        // Predicated region
        $region73: #{distilroberta_encoder_forward.1} parent=11 // pred_check
          %p550 = pneg %p443
        $region74: #{distilroberta_encoder_forward.1} parent=11 // pred_check_branch
          %552 = sbr.rel (%p550) target = $region76
        $region75: #{distilroberta_encoder_forward.1} parent=11 // pred_region
          _
        $region76: #{distilroberta_encoder_forward.1} parent=11 // pred_fallthru
          _
        // Predicated region
        $region77: #{distilroberta_encoder_forward.1} parent=11 // pred_check
          %p553 = pneg %p464
        $region78: #{distilroberta_encoder_forward.1} parent=11 // pred_check_branch
          %555 = sbr.rel (%p553) target = $region80
        $region79: #{distilroberta_encoder_forward.1} parent=11 // pred_region
          _
        $region80: #{distilroberta_encoder_forward.1} parent=11 // pred_fallthru
          _
      $region12: #{distilroberta_encoder_forward.1} parent=5 // pred_fallthru
        _
      %p556 = scmp.lt.s32.totalorder %s29, 2
      // Predicated region
      $region81: #{distilroberta_encoder_forward.1} parent=5 // pred_check
        %p557 = pneg %p556
      $region82: #{distilroberta_encoder_forward.1} parent=5 // pred_check_branch
        %559 = sbr.rel (%p557) target = $region84
      $region83: #{distilroberta_encoder_forward.1} parent=5 // pred_region
        // Predicated region
        $region85: #{distilroberta_encoder_forward.1} parent=83 // pred_check
          %p560 = pneg %p49
        $region86: #{distilroberta_encoder_forward.1} parent=83 // pred_check_branch
          %562 = sbr.rel (%p560) target = $region88
        $region87: #{distilroberta_encoder_forward.1} parent=83 // pred_region
          %p563 = scmp.lt.s32.totalorder %s29, 1
          %s564 = scalar_select %p563, %s29, 1
          %s565 = smul.addr %s564, 8
          %s566 = scalar_lea.vmem %s0, %s565
        $region88: #{distilroberta_encoder_forward.1} parent=83 // pred_fallthru
          _
        // Predicated region
        $region89: #{distilroberta_encoder_forward.1} parent=83 // pred_check
          %p567 = pneg %p75
        $region90: #{distilroberta_encoder_forward.1} parent=83 // pred_check_branch
          %569 = sbr.rel (%p567) target = $region92
        $region91: #{distilroberta_encoder_forward.1} parent=83 // pred_region
          %p570 = scmp.lt.s32.totalorder %s29, 1
          %s571 = scalar_select %p570, %s29, 1
          %s572 = smul.addr %s571, 8
          %s573 = scalar_lea.vmem %s1, %s572
        $region92: #{distilroberta_encoder_forward.1} parent=83 // pred_fallthru
          _
        // Predicated region
        $region93: #{distilroberta_encoder_forward.1} parent=83 // pred_check
          %p574 = pneg %p101
        $region94: #{distilroberta_encoder_forward.1} parent=83 // pred_check_branch
          %576 = sbr.rel (%p574) target = $region96
        $region95: #{distilroberta_encoder_forward.1} parent=83 // pred_region
          %p577 = scmp.lt.s32.totalorder %s29, 1
          %s578 = scalar_select %p577, %s29, 1
          %s579 = scalar_lea.vmem %s2, %s578
        $region96: #{distilroberta_encoder_forward.1} parent=83 // pred_fallthru
          _
      $region84: #{distilroberta_encoder_forward.1} parent=5 // pred_fallthru
        _
      %p580 = scmp.le.s32.totalorder 1, %s29
      %p581 = scmp.lt.s32.totalorder %s29, 3
      %p582 = pnand %p580, %p581
      %p583 = pneg %p582
      // Predicated region
      $region97: #{distilroberta_encoder_forward.1} parent=5 // pred_check
        _
      $region98: #{distilroberta_encoder_forward.1} parent=5 // pred_check_branch
        %585 = sbr.rel (%p582) target = $region100
      $region99: #{distilroberta_encoder_forward.1} parent=5 // pred_region
        %s586 = ssub.s32 %s29, 1
        %p587 = scmp.lt.s32.totalorder %s34, 1
        %s588 = scalar_select %p587, %s34, 1
        %s589 = smul.addr %s588, 8
        %s590 = scalar_lea.vmem %s0, %s589
        %p591 = pneg %p55
        %p592 = pneg %p52
        %p593 = scmp.lt.s32.totalorder %s34, 1
        %s594 = scalar_select %p593, %s34, 1
        %s595 = smul.addr %s594, 8
        %s596 = scalar_lea.vmem %s1, %s595
        %p597 = pneg %p81
        %p598 = pneg %p78
        %p599 = scmp.lt.s32.totalorder %s34, 1
        %s600 = scalar_select %p599, %s34, 1
        %s601 = scalar_lea.vmem %s2, %s600
        %p602 = pneg %p107
        %p603 = pneg %p104
        %p604 = pneg %p128
        %p605 = pneg %p125
        %p606 = pneg %p149
        %p607 = pneg %p146
        %p608 = pneg %p170
        %p609 = pneg %p167
        %p610 = pneg %p191
        %p611 = pneg %p188
        %p612 = pneg %p212
        %p613 = pneg %p209
        %p614 = pneg %p233
        %p615 = pneg %p230
        %p616 = pneg %p254
        %p617 = pneg %p251
        %p618 = pneg %p275
        %p619 = pneg %p272
        %p620 = pneg %p296
        %p621 = pneg %p293
        %p622 = pneg %p317
        %p623 = pneg %p314
        %p624 = pneg %p338
        %p625 = pneg %p335
        %p626 = pneg %p359
        %p627 = pneg %p356
        %p628 = pneg %p380
        %p629 = pneg %p377
        %p630 = pneg %p401
        %p631 = pneg %p398
        %p632 = pneg %p422
        %p633 = pneg %p419
        %p634 = pneg %p443
        %p635 = pneg %p440
        %p636 = pneg %p464
        %p637 = pneg %p461
        %p638 = pneg %p490
        %p639 = pneg %p487
        %s640 = sand.u32 %s477, 1
        %s641 = scalar_lea.sflag [#allocation3], %s640
        %s642 = sand.u32 %s477, 1
        %s643 = scalar_lea.vmem [#allocation2], %s642
        %p644 = scmp.lt.s32.totalorder %s34, 1
        %s645 = scalar_select %p644, %s34, 1
        %s646 = smul.addr %s645, 8
        %s647 = scalar_lea.vmem %s0, %s646
        %p648 = scmp.lt.s32.totalorder %s34, 1
        %s649 = scalar_select %p648, %s34, 1
        %s650 = smul.addr %s649, 8
        %s651 = scalar_lea.vmem %s1, %s650
        %p652 = scmp.lt.s32.totalorder %s34, 1
        %s653 = scalar_select %p652, %s34, 1
        %s654 = scalar_lea.vmem %s2, %s653
        %v656 = vld [vmem:[%s647] sm:$0xff]
        %v657 = vld [vmem:[%s651] sm:$0xff]
        %v658 = vlaneseq
        %v659 = vand.u32 %v658, 127
        %660 = vset.pattern.permute.xlu0 0
        %661 = vperm.xlu0 %660, %v656
        %v662 = vpop.permute.xlu0 %661
        %vm663 = vcmp.eq.s32.totalorder %v662, %v659
        %v664 = vsel %vm663, 1, 0
        %v665 = vcvt.s32.f32 %v664
        %v666 = vpack.c.bf16 %v665, %v665
        %667 = vset.pattern.permute.xlu0 0
        %668 = vperm.xlu0 %667, %v657
        %v669 = vpop.permute.xlu0 %668
        %vm670 = vcmp.eq.s32.totalorder %v669, %v659
        %v671 = vsel %vm670, 1, 0
        %v672 = vcvt.s32.f32 %v671
        %v673 = vpack.c.bf16 %v672, %v672
        %v674 = vld [vmem:[%s3] sm:$0xf]
        %v675 = vld [vmem:[%s3 + $0x4] sm:$0xf]
        %v676 = vld [vmem:[%s3 + $0x8] sm:$0xf]
        %v677 = vld [vmem:[%s3 + $0xc] sm:$0xf]
        %v678 = vld [vmem:[%s3 + $0x10] sm:$0xf]
        %v679 = vld [vmem:[%s3 + $0x14] sm:$0xf]
        %v680 = vld [vmem:[%s3 + $0x18] sm:$0x1]
        %v681 = vld [vmem:[%s4] sm:$0xf]
        %v682 = vld [vmem:[%s4 + $0x4] sm:$0xf]
        %v685 = vunpack.c.l.b16 %v681
        %v686 = vunpack.c.l.b16 %v682
        %v687 = vpack.c.b16 %v686, %v685
        %vm689 = vcmask 130048
        %v691 = vsel %vm689, %v673, 0
        %693 = vmatpush.bf16.msra.mxu0 0
        %694 = vmatpush.bf16.msra.mxu0 0
        %695 = vmatpush.bf16.msra.mxu0 0
        %696 = vmatpush.bf16.msra.mxu0 0
        %697 = vmatpush.bf16.msra.mxu0 0
        %698 = vmatpush.bf16.msra.mxu0 0
        %699 = vmatpush.bf16.msra.mxu0 0
        %700 = vmatpush.bf16.msra.mxu0 %v687
        %701 = vmatmul.bf16.gmra.mxu0 %v691
        %v702 = vpop.f32.mrf.mxu0
        %v703 = vadd.f32 0.0, %v702
        %v704 = vpop.f32.mrf.mxu0
        %705 = vdwg.mxu0
        %v713 = vunpack.c.l.b16 %v674
        %v714 = vunpack.c.l.b16 %v675
        %v715 = vunpack.c.l.b16 %v676
        %v716 = vunpack.c.l.b16 %v677
        %v717 = vunpack.c.l.b16 %v678
        %v718 = vunpack.c.l.b16 %v679
        %v719 = vunpack.c.l.b16 %v680
        %v720 = vpack.c.b16 %v714, %v713
        %v721 = vpack.c.b16 %v716, %v715
        %v722 = vpack.c.b16 %v718, %v717
        %v723 = vpack.c.b16 %v719, %v719
        %vm727 = vcmask 408576
        %v729 = vsel %vm727, %v666, 0
        %vm731 = vcmask 1040384
        %v733 = vsel %vm731, %v723, 0
        %735 = vmatpush.bf16.msra.mxu0 0
        %736 = vmatpush.bf16.msra.mxu0 0
        %737 = vmatpush.bf16.msra.mxu0 0
        %738 = vmatpush.bf16.msra.mxu0 0
        %739 = vmatpush.bf16.msra.mxu0 %v733
        %740 = vmatpush.bf16.msra.mxu0 %v722
        %741 = vmatpush.bf16.msra.mxu0 %v721
        %742 = vmatpush.bf16.msra.mxu0 %v720
        %743 = vmatmul.bf16.gmra.mxu0 %v729
        %v744 = vpop.f32.mrf.mxu0
        %v745 = vadd.f32 %v703, %v744
        %v746 = vpop.f32.mrf.mxu0
        %747 = vdwg.mxu0
        %v748 = vld [vmem:[%s5] sm:$0x1]
        %v750 = vperm.slane %v748, 0
        %v752 = vadd.f32 %v745, %v750
        %v753 = vld [vmem:[%s6] sm:$0x1]
        %v754 = vld [vmem:[%s7] sm:$0x1]
        %vm755 = vcmask 523264
        %v756 = vsel %vm755, %v752, 0.0
        %757 = vadd.xlane.f32.xlu0 %v756
        %v758 = vpop.xlane.xlu0 %757
        %v759 = vrcp.pop 64.0
        %v760 = vmul.f32 64.0, %v759
        %v761 = vsub.f32 1.0, %v760
        %v762 = vmul.f32 %v759, %v761
        %v763 = vadd.f32 %v759, %v762
        %vm764 = vweird.f32 %v759
        %v765 = vsel %vm764, %v759, %v763
        %v766 = vmul.f32 %v758, %v765
        %v767 = vsub.f32 %v752, %v766
        %v768 = vmul.f32 %v767, %v767
        %v769 = vsel %vm755, %v768, 0.0
        %770 = vadd.xlane.f32.xlu0 %v769
        %v771 = vpop.xlane.xlu0 %770
        %v772 = vmul.f32 %v771, %v765
        %v773 = vadd.f32 %v772, 1e-05
        %v774 = vrsqrt.pop %v773
        %v775 = vmul.f32 %v774, %v773
        %v776 = vmul.f32 %v775, %v774
        %v777 = vmul.f32 0.5, %v776
        %v778 = vsub.f32 1.5, %v777
        %v779 = vmul.f32 %v774, %v778
        %vm780 = vweird.f32 %v773
        %vm781 = vweird.f32 %v774
        %vm782 = vmor %vm780, %vm781
        %v783 = vsel %vm782, %v774, %v779
        %v784 = vmul.f32 %v767, %v783
        %v786 = vperm.slane %v753, 0
        %v788 = vmul.f32 %v784, %v786
        %v790 = vperm.slane %v754, 0
        %v792 = vadd.f32 %v788, %v790
        %v793 = vld [vmem:[%s654] sm:$0x1]
        %v795 = vperm.slane %v793, 0
        %v797 = vpack.c.bf16 %v792, %v792
        %v798 = vld [vmem:[%s8] sm:$0xf]
        %v799 = vld [vmem:[%s8 + $0x4] sm:$0xf]
        %v800 = vld [vmem:[%s8 + $0x8] sm:$0xf]
        %v801 = vld [vmem:[%s8 + $0xc] sm:$0xf]
        %v802 = vld [vmem:[%s8 + $0x10] sm:$0xf]
        %v803 = vld [vmem:[%s8 + $0x14] sm:$0xf]
        %v804 = vld [vmem:[%s8 + $0x18] sm:$0xf]
        %v805 = vld [vmem:[%s8 + $0x1c] sm:$0xf]
        %v806 = vld [vmem:[%s8 + $0x20] sm:$0xf]
        %v807 = vld [vmem:[%s8 + $0x24] sm:$0xf]
        %v808 = vld [vmem:[%s8 + $0x28] sm:$0xf]
        %v809 = vld [vmem:[%s8 + $0x2c] sm:$0xf]
        %v810 = vld [vmem:[%s8 + $0x30] sm:$0xf]
        %v811 = vld [vmem:[%s8 + $0x34] sm:$0xf]
        %v812 = vld [vmem:[%s8 + $0x38] sm:$0xf]
        %v813 = vld [vmem:[%s8 + $0x3c] sm:$0xf]
        %v814 = vld [vmem:[%s8 + $0x40] sm:$0xf]
        %v815 = vld [vmem:[%s8 + $0x44] sm:$0xf]
        %v816 = vld [vmem:[%s8 + $0x48] sm:$0xf]
        %v817 = vld [vmem:[%s8 + $0x4c] sm:$0xf]
        %v818 = vld [vmem:[%s8 + $0x50] sm:$0xf]
        %v819 = vld [vmem:[%s8 + $0x54] sm:$0xf]
        %v820 = vld [vmem:[%s8 + $0x58] sm:$0xf]
        %v821 = vld [vmem:[%s8 + $0x5c] sm:$0xf]
        %v822 = vld [vmem:[%s8 + $0x60] sm:$0xf]
        %v823 = vld [vmem:[%s8 + $0x64] sm:$0xf]
        %v824 = vld [vmem:[%s8 + $0x68] sm:$0xf]
        %v825 = vld [vmem:[%s8 + $0x6c] sm:$0xf]
        %v826 = vld [vmem:[%s8 + $0x70] sm:$0xf]
        %v827 = vld [vmem:[%s8 + $0x74] sm:$0xf]
        %v828 = vld [vmem:[%s8 + $0x78] sm:$0xf]
        %v829 = vld [vmem:[%s8 + $0x7c] sm:$0xf]
        %v830 = vld [vmem:[%s8 + $0x80] sm:$0xf]
        %v831 = vld [vmem:[%s8 + $0x84] sm:$0xf]
        %v832 = vld [vmem:[%s8 + $0x88] sm:$0xf]
        %v833 = vld [vmem:[%s8 + $0x8c] sm:$0xf]
        %v834 = vld [vmem:[%s8 + $0x90] sm:$0xf]
        %v835 = vld [vmem:[%s8 + $0x94] sm:$0xf]
        %v836 = vld [vmem:[%s8 + $0x98] sm:$0xf]
        %v837 = vld [vmem:[%s8 + $0x9c] sm:$0xf]
        %v838 = vld [vmem:[%s8 + $0xa0] sm:$0xf]
        %v839 = vld [vmem:[%s8 + $0xa4] sm:$0xf]
        %v840 = vld [vmem:[%s8 + $0xa8] sm:$0xf]
        %v841 = vld [vmem:[%s8 + $0xac] sm:$0xf]
        %v842 = vld [vmem:[%s8 + $0xb0] sm:$0xf]
        %v843 = vld [vmem:[%s8 + $0xb4] sm:$0xf]
        %v844 = vld [vmem:[%s8 + $0xb8] sm:$0xf]
        %v845 = vld [vmem:[%s8 + $0xbc] sm:$0xf]
        %v846 = vld [vmem:[%s8 + $0xc0] sm:$0xf]
        %v847 = vld [vmem:[%s8 + $0xc4] sm:$0xf]
        %v848 = vld [vmem:[%s8 + $0xc8] sm:$0xf]
        %v849 = vld [vmem:[%s8 + $0xcc] sm:$0xf]
        %v850 = vld [vmem:[%s8 + $0xd0] sm:$0xf]
        %v851 = vld [vmem:[%s8 + $0xd4] sm:$0xf]
        %v852 = vld [vmem:[%s8 + $0xd8] sm:$0xf]
        %v853 = vld [vmem:[%s8 + $0xdc] sm:$0xf]
        %v854 = vld [vmem:[%s8 + $0xe0] sm:$0xf]
        %v855 = vld [vmem:[%s8 + $0xe4] sm:$0xf]
        %v856 = vld [vmem:[%s8 + $0xe8] sm:$0xf]
        %v857 = vld [vmem:[%s8 + $0xec] sm:$0xf]
        %v858 = vld [vmem:[%s8 + $0xf0] sm:$0xf]
        %v859 = vld [vmem:[%s8 + $0xf4] sm:$0xf]
        %v860 = vld [vmem:[%s8 + $0xf8] sm:$0xf]
        %v861 = vld [vmem:[%s8 + $0xfc] sm:$0xf]
        %v862 = vld [vmem:[%s8 + $0x100] sm:$0xf]
        %v863 = vld [vmem:[%s8 + $0x104] sm:$0xf]
        %v864 = vld [vmem:[%s8 + $0x108] sm:$0xf]
        %v865 = vld [vmem:[%s8 + $0x10c] sm:$0xf]
        %v866 = vld [vmem:[%s8 + $0x110] sm:$0xf]
        %v867 = vld [vmem:[%s8 + $0x114] sm:$0xf]
        %v868 = vld [vmem:[%s8 + $0x118] sm:$0xf]
        %v869 = vld [vmem:[%s8 + $0x11c] sm:$0xf]
        %v870 = vld [vmem:[%s8 + $0x120] sm:$0xf]
        %v871 = vld [vmem:[%s8 + $0x124] sm:$0xf]
        %v872 = vld [vmem:[%s8 + $0x128] sm:$0xf]
        %v873 = vld [vmem:[%s8 + $0x12c] sm:$0xf]
        %v874 = vld [vmem:[%s8 + $0x130] sm:$0xf]
        %v875 = vld [vmem:[%s8 + $0x134] sm:$0xf]
        %v876 = vld [vmem:[%s8 + $0x138] sm:$0xf]
        %v877 = vld [vmem:[%s8 + $0x13c] sm:$0xf]
        %v878 = vld [vmem:[%s8 + $0x140] sm:$0xf]
        %v879 = vld [vmem:[%s8 + $0x144] sm:$0xf]
        %v880 = vld [vmem:[%s8 + $0x148] sm:$0xf]
        %v881 = vld [vmem:[%s8 + $0x14c] sm:$0xf]
        %v882 = vld [vmem:[%s8 + $0x150] sm:$0xf]
        %v883 = vld [vmem:[%s8 + $0x154] sm:$0xf]
        %v884 = vld [vmem:[%s8 + $0x158] sm:$0xf]
        %v885 = vld [vmem:[%s8 + $0x15c] sm:$0xf]
        %v886 = vld [vmem:[%s8 + $0x160] sm:$0xf]
        %v887 = vld [vmem:[%s8 + $0x164] sm:$0xf]
        %v888 = vld [vmem:[%s8 + $0x168] sm:$0xf]
        %v889 = vld [vmem:[%s8 + $0x16c] sm:$0xf]
        %v890 = vld [vmem:[%s8 + $0x170] sm:$0xf]
        %v891 = vld [vmem:[%s8 + $0x174] sm:$0xf]
        %v892 = vld [vmem:[%s8 + $0x178] sm:$0xf]
        %v893 = vld [vmem:[%s8 + $0x17c] sm:$0xf]
        %v894 = vld [vmem:[%s9] sm:$0x1]
        %v895 = vld [vmem:[%s9 + $0x1] sm:$0x1]
        %v896 = vld [vmem:[%s9 + $0x2] sm:$0x1]
        %v897 = vld [vmem:[%s9 + $0x3] sm:$0x1]
        %v898 = vld [vmem:[%s9 + $0x4] sm:$0x1]
        %v899 = vld [vmem:[%s9 + $0x5] sm:$0x1]
        %v900 = vld [vmem:[%s9 + $0x6] sm:$0x1]
        %v901 = vld [vmem:[%s9 + $0x7] sm:$0x1]
        %v902 = vld [vmem:[%s9 + $0x8] sm:$0x1]
        %v903 = vld [vmem:[%s9 + $0x9] sm:$0x1]
        %v904 = vld [vmem:[%s9 + $0xa] sm:$0x1]
        %v905 = vld [vmem:[%s9 + $0xb] sm:$0x1]
        %v918 = vperm.slane %v894, 0
        %v919 = vperm.slane %v895, 0
        %v920 = vperm.slane %v896, 0
        %v921 = vperm.slane %v897, 0
        %v922 = vperm.slane %v898, 0
        %v923 = vperm.slane %v899, 0
        %v924 = vperm.slane %v900, 0
        %v925 = vperm.slane %v901, 0
        %v926 = vperm.slane %v902, 0
        %v927 = vperm.slane %v903, 0
        %v928 = vperm.slane %v904, 0
        %v929 = vperm.slane %v905, 0
        %v950 = vunpack.c.l.b16 %v798
        %v951 = vunpack.c.l.b16 %v799
        %v952 = vunpack.c.l.b16 %v800
        %v953 = vunpack.c.l.b16 %v801
        %v954 = vunpack.c.l.b16 %v802
        %v955 = vunpack.c.l.b16 %v803
        %v956 = vunpack.c.l.b16 %v804
        %v957 = vunpack.c.l.b16 %v805
        %v958 = vpack.c.b16 %v951, %v950
        %v959 = vpack.c.b16 %v953, %v952
        %v960 = vpack.c.b16 %v955, %v954
        %v961 = vpack.c.b16 %v957, %v956
        %v967 = vsel %vm755, %v797, 0
        %969 = vmatpush.bf16.msra.mxu0 0
        %970 = vmatpush.bf16.msra.mxu0 0
        %971 = vmatpush.bf16.msra.mxu0 0
        %972 = vmatpush.bf16.msra.mxu0 0
        %973 = vmatpush.bf16.msra.mxu0 %v961
        %974 = vmatpush.bf16.msra.mxu0 %v960
        %975 = vmatpush.bf16.msra.mxu0 %v959
        %976 = vmatpush.bf16.msra.mxu0 %v958
        %977 = vmatmul.bf16.gmra.mxu0 %v967
        %v978 = vpop.f32.mrf.mxu0
        %v979 = vadd.f32 %v918, %v978
        %v980 = vpop.f32.mrf.mxu0
        %981 = vdwg.mxu0
        %v990 = vunpack.c.l.b16 %v806
        %v991 = vunpack.c.l.b16 %v807
        %v992 = vunpack.c.l.b16 %v808
        %v993 = vunpack.c.l.b16 %v809
        %v994 = vunpack.c.l.b16 %v810
        %v995 = vunpack.c.l.b16 %v811
        %v996 = vunpack.c.l.b16 %v812
        %v997 = vunpack.c.l.b16 %v813
        %v998 = vpack.c.b16 %v991, %v990
        %v999 = vpack.c.b16 %v993, %v992
        %v1000 = vpack.c.b16 %v995, %v994
        %v1001 = vpack.c.b16 %v997, %v996
        %1006 = vmatpush.bf16.msra.mxu0 0
        %1007 = vmatpush.bf16.msra.mxu0 0
        %1008 = vmatpush.bf16.msra.mxu0 0
        %1009 = vmatpush.bf16.msra.mxu0 0
        %1010 = vmatpush.bf16.msra.mxu0 %v1001
        %1011 = vmatpush.bf16.msra.mxu0 %v1000
        %1012 = vmatpush.bf16.msra.mxu0 %v999
        %1013 = vmatpush.bf16.msra.mxu0 %v998
        %1014 = vmatmul.bf16.gmra.mxu0 %v967
        %v1015 = vpop.f32.mrf.mxu0
        %v1016 = vadd.f32 %v919, %v1015
        %v1017 = vpop.f32.mrf.mxu0
        %1018 = vdwg.mxu0
        %v1027 = vunpack.c.l.b16 %v814
        %v1028 = vunpack.c.l.b16 %v815
        %v1029 = vunpack.c.l.b16 %v816
        %v1030 = vunpack.c.l.b16 %v817
        %v1031 = vunpack.c.l.b16 %v818
        %v1032 = vunpack.c.l.b16 %v819
        %v1033 = vunpack.c.l.b16 %v820
        %v1034 = vunpack.c.l.b16 %v821
        %v1035 = vpack.c.b16 %v1028, %v1027
        %v1036 = vpack.c.b16 %v1030, %v1029
        %v1037 = vpack.c.b16 %v1032, %v1031
        %v1038 = vpack.c.b16 %v1034, %v1033
        %1043 = vmatpush.bf16.msra.mxu0 0
        %1044 = vmatpush.bf16.msra.mxu0 0
        %1045 = vmatpush.bf16.msra.mxu0 0
        %1046 = vmatpush.bf16.msra.mxu0 0
        %1047 = vmatpush.bf16.msra.mxu0 %v1038
        %1048 = vmatpush.bf16.msra.mxu0 %v1037
        %1049 = vmatpush.bf16.msra.mxu0 %v1036
        %1050 = vmatpush.bf16.msra.mxu0 %v1035
        %1051 = vmatmul.bf16.gmra.mxu0 %v967
        %v1052 = vpop.f32.mrf.mxu0
        %v1053 = vadd.f32 %v920, %v1052
        %v1054 = vpop.f32.mrf.mxu0
        %1055 = vdwg.mxu0
        %v1064 = vunpack.c.l.b16 %v822
        %v1065 = vunpack.c.l.b16 %v823
        %v1066 = vunpack.c.l.b16 %v824
        %v1067 = vunpack.c.l.b16 %v825
        %v1068 = vunpack.c.l.b16 %v826
        %v1069 = vunpack.c.l.b16 %v827
        %v1070 = vunpack.c.l.b16 %v828
        %v1071 = vunpack.c.l.b16 %v829
        %v1072 = vpack.c.b16 %v1065, %v1064
        %v1073 = vpack.c.b16 %v1067, %v1066
        %v1074 = vpack.c.b16 %v1069, %v1068
        %v1075 = vpack.c.b16 %v1071, %v1070
        %1080 = vmatpush.bf16.msra.mxu0 0
        %1081 = vmatpush.bf16.msra.mxu0 0
        %1082 = vmatpush.bf16.msra.mxu0 0
        %1083 = vmatpush.bf16.msra.mxu0 0
        %1084 = vmatpush.bf16.msra.mxu0 %v1075
        %1085 = vmatpush.bf16.msra.mxu0 %v1074
        %1086 = vmatpush.bf16.msra.mxu0 %v1073
        %1087 = vmatpush.bf16.msra.mxu0 %v1072
        %1088 = vmatmul.bf16.gmra.mxu0 %v967
        %v1089 = vpop.f32.mrf.mxu0
        %v1090 = vadd.f32 %v921, %v1089
        %v1091 = vpop.f32.mrf.mxu0
        %1092 = vdwg.mxu0
        %v1101 = vunpack.c.l.b16 %v830
        %v1102 = vunpack.c.l.b16 %v831
        %v1103 = vunpack.c.l.b16 %v832
        %v1104 = vunpack.c.l.b16 %v833
        %v1105 = vunpack.c.l.b16 %v834
        %v1106 = vunpack.c.l.b16 %v835
        %v1107 = vunpack.c.l.b16 %v836
        %v1108 = vunpack.c.l.b16 %v837
        %v1109 = vpack.c.b16 %v1102, %v1101
        %v1110 = vpack.c.b16 %v1104, %v1103
        %v1111 = vpack.c.b16 %v1106, %v1105
        %v1112 = vpack.c.b16 %v1108, %v1107
        %1117 = vmatpush.bf16.msra.mxu0 0
        %1118 = vmatpush.bf16.msra.mxu0 0
        %1119 = vmatpush.bf16.msra.mxu0 0
        %1120 = vmatpush.bf16.msra.mxu0 0
        %1121 = vmatpush.bf16.msra.mxu0 %v1112
        %1122 = vmatpush.bf16.msra.mxu0 %v1111
        %1123 = vmatpush.bf16.msra.mxu0 %v1110
        %1124 = vmatpush.bf16.msra.mxu0 %v1109
        %1125 = vmatmul.bf16.gmra.mxu0 %v967
        %v1126 = vpop.f32.mrf.mxu0
        %v1127 = vadd.f32 %v922, %v1126
        %v1128 = vpop.f32.mrf.mxu0
        %1129 = vdwg.mxu0
        %v1138 = vunpack.c.l.b16 %v838
        %v1139 = vunpack.c.l.b16 %v839
        %v1140 = vunpack.c.l.b16 %v840
        %v1141 = vunpack.c.l.b16 %v841
        %v1142 = vunpack.c.l.b16 %v842
        %v1143 = vunpack.c.l.b16 %v843
        %v1144 = vunpack.c.l.b16 %v844
        %v1145 = vunpack.c.l.b16 %v845
        %v1146 = vpack.c.b16 %v1139, %v1138
        %v1147 = vpack.c.b16 %v1141, %v1140
        %v1148 = vpack.c.b16 %v1143, %v1142
        %v1149 = vpack.c.b16 %v1145, %v1144
        %1154 = vmatpush.bf16.msra.mxu0 0
        %1155 = vmatpush.bf16.msra.mxu0 0
        %1156 = vmatpush.bf16.msra.mxu0 0
        %1157 = vmatpush.bf16.msra.mxu0 0
        %1158 = vmatpush.bf16.msra.mxu0 %v1149
        %1159 = vmatpush.bf16.msra.mxu0 %v1148
        %1160 = vmatpush.bf16.msra.mxu0 %v1147
        %1161 = vmatpush.bf16.msra.mxu0 %v1146
        %1162 = vmatmul.bf16.gmra.mxu0 %v967
        %v1163 = vpop.f32.mrf.mxu0
        %v1164 = vadd.f32 %v923, %v1163
        %v1165 = vpop.f32.mrf.mxu0
        %1166 = vdwg.mxu0
        %v1175 = vunpack.c.l.b16 %v846
        %v1176 = vunpack.c.l.b16 %v847
        %v1177 = vunpack.c.l.b16 %v848
        %v1178 = vunpack.c.l.b16 %v849
        %v1179 = vunpack.c.l.b16 %v850
        %v1180 = vunpack.c.l.b16 %v851
        %v1181 = vunpack.c.l.b16 %v852
        %v1182 = vunpack.c.l.b16 %v853
        %v1183 = vpack.c.b16 %v1176, %v1175
        %v1184 = vpack.c.b16 %v1178, %v1177
        %v1185 = vpack.c.b16 %v1180, %v1179
        %v1186 = vpack.c.b16 %v1182, %v1181
        %1191 = vmatpush.bf16.msra.mxu0 0
        %1192 = vmatpush.bf16.msra.mxu0 0
        %1193 = vmatpush.bf16.msra.mxu0 0
        %1194 = vmatpush.bf16.msra.mxu0 0
        %1195 = vmatpush.bf16.msra.mxu0 %v1186
        %1196 = vmatpush.bf16.msra.mxu0 %v1185
        %1197 = vmatpush.bf16.msra.mxu0 %v1184
        %1198 = vmatpush.bf16.msra.mxu0 %v1183
        %1199 = vmatmul.bf16.gmra.mxu0 %v967
        %v1200 = vpop.f32.mrf.mxu0
        %v1201 = vadd.f32 %v924, %v1200
        %v1202 = vpop.f32.mrf.mxu0
        %1203 = vdwg.mxu0
        %v1212 = vunpack.c.l.b16 %v854
        %v1213 = vunpack.c.l.b16 %v855
        %v1214 = vunpack.c.l.b16 %v856
        %v1215 = vunpack.c.l.b16 %v857
        %v1216 = vunpack.c.l.b16 %v858
        %v1217 = vunpack.c.l.b16 %v859
        %v1218 = vunpack.c.l.b16 %v860
        %v1219 = vunpack.c.l.b16 %v861
        %v1220 = vpack.c.b16 %v1213, %v1212
        %v1221 = vpack.c.b16 %v1215, %v1214
        %v1222 = vpack.c.b16 %v1217, %v1216
        %v1223 = vpack.c.b16 %v1219, %v1218
        %1228 = vmatpush.bf16.msra.mxu0 0
        %1229 = vmatpush.bf16.msra.mxu0 0
        %1230 = vmatpush.bf16.msra.mxu0 0
        %1231 = vmatpush.bf16.msra.mxu0 0
        %1232 = vmatpush.bf16.msra.mxu0 %v1223
        %1233 = vmatpush.bf16.msra.mxu0 %v1222
        %1234 = vmatpush.bf16.msra.mxu0 %v1221
        %1235 = vmatpush.bf16.msra.mxu0 %v1220
        %1236 = vmatmul.bf16.gmra.mxu0 %v967
        %v1237 = vpop.f32.mrf.mxu0
        %v1238 = vadd.f32 %v925, %v1237
        %v1239 = vpop.f32.mrf.mxu0
        %1240 = vdwg.mxu0
        %v1249 = vunpack.c.l.b16 %v862
        %v1250 = vunpack.c.l.b16 %v863
        %v1251 = vunpack.c.l.b16 %v864
        %v1252 = vunpack.c.l.b16 %v865
        %v1253 = vunpack.c.l.b16 %v866
        %v1254 = vunpack.c.l.b16 %v867
        %v1255 = vunpack.c.l.b16 %v868
        %v1256 = vunpack.c.l.b16 %v869
        %v1257 = vpack.c.b16 %v1250, %v1249
        %v1258 = vpack.c.b16 %v1252, %v1251
        %v1259 = vpack.c.b16 %v1254, %v1253
        %v1260 = vpack.c.b16 %v1256, %v1255
        %1265 = vmatpush.bf16.msra.mxu0 0
        %1266 = vmatpush.bf16.msra.mxu0 0
        %1267 = vmatpush.bf16.msra.mxu0 0
        %1268 = vmatpush.bf16.msra.mxu0 0
        %1269 = vmatpush.bf16.msra.mxu0 %v1260
        %1270 = vmatpush.bf16.msra.mxu0 %v1259
        %1271 = vmatpush.bf16.msra.mxu0 %v1258
        %1272 = vmatpush.bf16.msra.mxu0 %v1257
        %1273 = vmatmul.bf16.gmra.mxu0 %v967
        %v1274 = vpop.f32.mrf.mxu0
        %v1275 = vadd.f32 %v926, %v1274
        %v1276 = vpop.f32.mrf.mxu0
        %1277 = vdwg.mxu0
        %v1286 = vunpack.c.l.b16 %v870
        %v1287 = vunpack.c.l.b16 %v871
        %v1288 = vunpack.c.l.b16 %v872
        %v1289 = vunpack.c.l.b16 %v873
        %v1290 = vunpack.c.l.b16 %v874
        %v1291 = vunpack.c.l.b16 %v875
        %v1292 = vunpack.c.l.b16 %v876
        %v1293 = vunpack.c.l.b16 %v877
        %v1294 = vpack.c.b16 %v1287, %v1286
        %v1295 = vpack.c.b16 %v1289, %v1288
        %v1296 = vpack.c.b16 %v1291, %v1290
        %v1297 = vpack.c.b16 %v1293, %v1292
        %1302 = vmatpush.bf16.msra.mxu0 0
        %1303 = vmatpush.bf16.msra.mxu0 0
        %1304 = vmatpush.bf16.msra.mxu0 0
        %1305 = vmatpush.bf16.msra.mxu0 0
        %1306 = vmatpush.bf16.msra.mxu0 %v1297
        %1307 = vmatpush.bf16.msra.mxu0 %v1296
        %1308 = vmatpush.bf16.msra.mxu0 %v1295
        %1309 = vmatpush.bf16.msra.mxu0 %v1294
        %1310 = vmatmul.bf16.gmra.mxu0 %v967
        %v1311 = vpop.f32.mrf.mxu0
        %v1312 = vadd.f32 %v927, %v1311
        %v1313 = vpop.f32.mrf.mxu0
        %1314 = vdwg.mxu0
        %v1323 = vunpack.c.l.b16 %v878
        %v1324 = vunpack.c.l.b16 %v879
        %v1325 = vunpack.c.l.b16 %v880
        %v1326 = vunpack.c.l.b16 %v881
        %v1327 = vunpack.c.l.b16 %v882
        %v1328 = vunpack.c.l.b16 %v883
        %v1329 = vunpack.c.l.b16 %v884
        %v1330 = vunpack.c.l.b16 %v885
        %v1331 = vpack.c.b16 %v1324, %v1323
        %v1332 = vpack.c.b16 %v1326, %v1325
        %v1333 = vpack.c.b16 %v1328, %v1327
        %v1334 = vpack.c.b16 %v1330, %v1329
        %1339 = vmatpush.bf16.msra.mxu0 0
        %1340 = vmatpush.bf16.msra.mxu0 0
        %1341 = vmatpush.bf16.msra.mxu0 0
        %1342 = vmatpush.bf16.msra.mxu0 0
        %1343 = vmatpush.bf16.msra.mxu0 %v1334
        %1344 = vmatpush.bf16.msra.mxu0 %v1333
        %1345 = vmatpush.bf16.msra.mxu0 %v1332
        %1346 = vmatpush.bf16.msra.mxu0 %v1331
        %1347 = vmatmul.bf16.gmra.mxu0 %v967
        %v1348 = vpop.f32.mrf.mxu0
        %v1349 = vadd.f32 %v928, %v1348
        %v1350 = vpop.f32.mrf.mxu0
        %1351 = vdwg.mxu0
        %v1360 = vunpack.c.l.b16 %v886
        %v1361 = vunpack.c.l.b16 %v887
        %v1362 = vunpack.c.l.b16 %v888
        %v1363 = vunpack.c.l.b16 %v889
        %v1364 = vunpack.c.l.b16 %v890
        %v1365 = vunpack.c.l.b16 %v891
        %v1366 = vunpack.c.l.b16 %v892
        %v1367 = vunpack.c.l.b16 %v893
        %v1368 = vpack.c.b16 %v1361, %v1360
        %v1369 = vpack.c.b16 %v1363, %v1362
        %v1370 = vpack.c.b16 %v1365, %v1364
        %v1371 = vpack.c.b16 %v1367, %v1366
        %1376 = vmatpush.bf16.msra.mxu0 0
        %1377 = vmatpush.bf16.msra.mxu0 0
        %1378 = vmatpush.bf16.msra.mxu0 0
        %1379 = vmatpush.bf16.msra.mxu0 0
        %1380 = vmatpush.bf16.msra.mxu0 %v1371
        %1381 = vmatpush.bf16.msra.mxu0 %v1370
        %1382 = vmatpush.bf16.msra.mxu0 %v1369
        %1383 = vmatpush.bf16.msra.mxu0 %v1368
        %1384 = vmatmul.bf16.gmra.mxu0 %v967
        %v1385 = vpop.f32.mrf.mxu0
        %v1386 = vadd.f32 %v929, %v1385
        %v1387 = vpop.f32.mrf.mxu0
        %1388 = vdwg.mxu0
        %v1389 = vmul.f32 %v979, 0.25
        %v1390 = vmul.f32 %v1016, 0.25
        %v1391 = vmul.f32 %v1053, 0.25
        %v1392 = vmul.f32 %v1090, 0.25
        %v1393 = vpack.c.bf16 %v1389, %v1389
        %v1394 = vpack.c.bf16 %v1390, %v1390
        %v1395 = vpack.c.bf16 %v1391, %v1391
        %v1396 = vpack.c.bf16 %v1392, %v1392
        %v1397 = vpack.c.bf16 %v1127, %v1127
        %v1398 = vpack.c.bf16 %v1164, %v1164
        %v1399 = vpack.c.bf16 %v1201, %v1201
        %v1400 = vpack.c.bf16 %v1238, %v1238
        %v1402 = vsel %vm689, %v1393, 0
        %v1405 = vsel %vm689, %v1397, 0
        %1407 = vmatpush.bf16.xpose.msra.mxu0 0
        %1408 = vmatpush.bf16.xpose.msra.mxu0 0
        %1409 = vmatpush.bf16.xpose.msra.mxu0 0
        %1410 = vmatpush.bf16.xpose.msra.mxu0 0
        %1411 = vmatpush.bf16.xpose.msra.mxu0 0
        %1412 = vmatpush.bf16.xpose.msra.mxu0 0
        %1413 = vmatpush.bf16.xpose.msra.mxu0 0
        %1414 = vmatpush.bf16.xpose.msra.mxu0 %v1405
        %1415 = vmatmul.bf16.gmra.mxu0 %v1402
        %v1416 = vpop.f32.mrf.mxu0
        %v1417 = vadd.f32 %v795, %v1416
        %v1418 = vpop.f32.mrf.mxu0
        %1419 = vdwg.mxu0
        %v1421 = vsel %vm689, %v1394, 0
        %v1424 = vsel %vm689, %v1398, 0
        %1426 = vmatpush.bf16.xpose.msra.mxu0 0
        %1427 = vmatpush.bf16.xpose.msra.mxu0 0
        %1428 = vmatpush.bf16.xpose.msra.mxu0 0
        %1429 = vmatpush.bf16.xpose.msra.mxu0 0
        %1430 = vmatpush.bf16.xpose.msra.mxu0 0
        %1431 = vmatpush.bf16.xpose.msra.mxu0 0
        %1432 = vmatpush.bf16.xpose.msra.mxu0 0
        %1433 = vmatpush.bf16.xpose.msra.mxu0 %v1424
        %1434 = vmatmul.bf16.gmra.mxu0 %v1421
        %v1435 = vpop.f32.mrf.mxu0
        %v1436 = vadd.f32 %v795, %v1435
        %v1437 = vpop.f32.mrf.mxu0
        %1438 = vdwg.mxu0
        %v1440 = vsel %vm689, %v1395, 0
        %v1443 = vsel %vm689, %v1399, 0
        %1445 = vmatpush.bf16.xpose.msra.mxu0 0
        %1446 = vmatpush.bf16.xpose.msra.mxu0 0
        %1447 = vmatpush.bf16.xpose.msra.mxu0 0
        %1448 = vmatpush.bf16.xpose.msra.mxu0 0
        %1449 = vmatpush.bf16.xpose.msra.mxu0 0
        %1450 = vmatpush.bf16.xpose.msra.mxu0 0
        %1451 = vmatpush.bf16.xpose.msra.mxu0 0
        %1452 = vmatpush.bf16.xpose.msra.mxu0 %v1443
        %1453 = vmatmul.bf16.gmra.mxu0 %v1440
        %v1454 = vpop.f32.mrf.mxu0
        %v1455 = vadd.f32 %v795, %v1454
        %v1456 = vpop.f32.mrf.mxu0
        %1457 = vdwg.mxu0
        %v1459 = vsel %vm689, %v1396, 0
        %v1462 = vsel %vm689, %v1400, 0
        %1464 = vmatpush.bf16.xpose.msra.mxu0 0
        %1465 = vmatpush.bf16.xpose.msra.mxu0 0
        %1466 = vmatpush.bf16.xpose.msra.mxu0 0
        %1467 = vmatpush.bf16.xpose.msra.mxu0 0
        %1468 = vmatpush.bf16.xpose.msra.mxu0 0
        %1469 = vmatpush.bf16.xpose.msra.mxu0 0
        %1470 = vmatpush.bf16.xpose.msra.mxu0 0
        %1471 = vmatpush.bf16.xpose.msra.mxu0 %v1462
        %1472 = vmatmul.bf16.gmra.mxu0 %v1459
        %v1473 = vpop.f32.mrf.mxu0
        %v1474 = vadd.f32 %v795, %v1473
        %v1475 = vpop.f32.mrf.mxu0
        %1476 = vdwg.mxu0
        %vm1477 = vcmask 64512
        %v1478 = vsel %vm1477, %v1417, -inf
        %1479 = vmax.xlane.f32.xlu0 %v1478
        %v1480 = vpop.xlane.xlu0 %1479
        %v1481 = vsel %vm1477, %v1436, -inf
        %1482 = vmax.xlane.f32.xlu0 %v1481
        %v1483 = vpop.xlane.xlu0 %1482
        %v1484 = vsel %vm1477, %v1455, -inf
        %1485 = vmax.xlane.f32.xlu0 %v1484
        %v1486 = vpop.xlane.xlu0 %1485
        %v1487 = vsel %vm1477, %v1474, -inf
        %1488 = vmax.xlane.f32.xlu0 %v1487
        %v1489 = vpop.xlane.xlu0 %1488
        %v1490 = vsub.f32 %v1417, %v1480
        %v1491 = vsub.f32 %v1436, %v1483
        %v1492 = vsub.f32 %v1455, %v1486
        %v1493 = vsub.f32 %v1474, %v1489
        %v1494 = vmul.f32 %v1490, 1.442695
        %v1495 = vpow.pop %v1494
        %v1496 = vmul.f32 %v1491, 1.442695
        %v1497 = vpow.pop %v1496
        %v1498 = vmul.f32 %v1492, 1.442695
        %v1499 = vpow.pop %v1498
        %v1500 = vmul.f32 %v1493, 1.442695
        %v1501 = vpow.pop %v1500
        %v1502 = vsel %vm1477, %v1495, 0.0
        %1503 = vadd.xlane.f32.xlu0 %v1502
        %v1504 = vpop.xlane.xlu0 %1503
        %v1505 = vsel %vm1477, %v1497, 0.0
        %1506 = vadd.xlane.f32.xlu0 %v1505
        %v1507 = vpop.xlane.xlu0 %1506
        %v1508 = vsel %vm1477, %v1499, 0.0
        %1509 = vadd.xlane.f32.xlu0 %v1508
        %v1510 = vpop.xlane.xlu0 %1509
        %v1511 = vsel %vm1477, %v1501, 0.0
        %1512 = vadd.xlane.f32.xlu0 %v1511
        %v1513 = vpop.xlane.xlu0 %1512
        %v1514 = vrcp.pop %v1504
        %v1515 = vrcp.pop %v1507
        %v1516 = vrcp.pop %v1510
        %v1517 = vrcp.pop %v1513
        %v1518 = vmul.f32 %v1495, %v1514
        %v1519 = vmul.f32 %v1497, %v1515
        %v1520 = vmul.f32 %v1499, %v1516
        %v1521 = vmul.f32 %v1501, %v1517
        %v1522 = vpack.c.bf16 %v1518, %v1518
        %v1523 = vpack.c.bf16 %v1519, %v1519
        %v1524 = vpack.c.bf16 %v1520, %v1520
        %v1525 = vpack.c.bf16 %v1521, %v1521
        %v1526 = vpack.c.bf16 %v1275, %v1275
        %v1527 = vpack.c.bf16 %v1312, %v1312
        %v1528 = vpack.c.bf16 %v1349, %v1349
        %v1529 = vpack.c.bf16 %v1386, %v1386
        %v1531 = vsel %vm1477, %v1522, 0
        %vm1533 = vcmask 1043456
        %v1535 = vsel %vm1533, %v1526, 0
        %1537 = vmatpush.bf16.msra.mxu0 0
        %1538 = vmatpush.bf16.msra.mxu0 0
        %1539 = vmatpush.bf16.msra.mxu0 0
        %1540 = vmatpush.bf16.msra.mxu0 0
        %1541 = vmatpush.bf16.msra.mxu0 0
        %1542 = vmatpush.bf16.msra.mxu0 0
        %1543 = vmatpush.bf16.msra.mxu0 0
        %1544 = vmatpush.bf16.msra.mxu0 %v1535
        %1545 = vmatmul.bf16.gmra.mxu0 %v1531
        %v1546 = vpop.f32.mrf.mxu0
        %v1547 = vadd.f32 0.0, %v1546
        %v1548 = vpop.f32.mrf.mxu0
        %1549 = vdwg.mxu0
        %v1551 = vsel %vm1477, %v1523, 0
        %v1554 = vsel %vm1533, %v1527, 0
        %1556 = vmatpush.bf16.msra.mxu0 0
        %1557 = vmatpush.bf16.msra.mxu0 0
        %1558 = vmatpush.bf16.msra.mxu0 0
        %1559 = vmatpush.bf16.msra.mxu0 0
        %1560 = vmatpush.bf16.msra.mxu0 0
        %1561 = vmatpush.bf16.msra.mxu0 0
        %1562 = vmatpush.bf16.msra.mxu0 0
        %1563 = vmatpush.bf16.msra.mxu0 %v1554
        %1564 = vmatmul.bf16.gmra.mxu0 %v1551
        %v1565 = vpop.f32.mrf.mxu0
        %v1566 = vadd.f32 0.0, %v1565
        %v1567 = vpop.f32.mrf.mxu0
        %1568 = vdwg.mxu0
        %v1570 = vsel %vm1477, %v1524, 0
        %v1573 = vsel %vm1533, %v1528, 0
        %1575 = vmatpush.bf16.msra.mxu0 0
        %1576 = vmatpush.bf16.msra.mxu0 0
        %1577 = vmatpush.bf16.msra.mxu0 0
        %1578 = vmatpush.bf16.msra.mxu0 0
        %1579 = vmatpush.bf16.msra.mxu0 0
        %1580 = vmatpush.bf16.msra.mxu0 0
        %1581 = vmatpush.bf16.msra.mxu0 0
        %1582 = vmatpush.bf16.msra.mxu0 %v1573
        %1583 = vmatmul.bf16.gmra.mxu0 %v1570
        %v1584 = vpop.f32.mrf.mxu0
        %v1585 = vadd.f32 0.0, %v1584
        %v1586 = vpop.f32.mrf.mxu0
        %1587 = vdwg.mxu0
        %v1589 = vsel %vm1477, %v1525, 0
        %v1592 = vsel %vm1533, %v1529, 0
        %1594 = vmatpush.bf16.msra.mxu0 0
        %1595 = vmatpush.bf16.msra.mxu0 0
        %1596 = vmatpush.bf16.msra.mxu0 0
        %1597 = vmatpush.bf16.msra.mxu0 0
        %1598 = vmatpush.bf16.msra.mxu0 0
        %1599 = vmatpush.bf16.msra.mxu0 0
        %1600 = vmatpush.bf16.msra.mxu0 0
        %1601 = vmatpush.bf16.msra.mxu0 %v1592
        %1602 = vmatmul.bf16.gmra.mxu0 %v1589
        %v1603 = vpop.f32.mrf.mxu0
        %v1604 = vadd.f32 0.0, %v1603
        %v1605 = vpop.f32.mrf.mxu0
        %1606 = vdwg.mxu0
        %v1607 = vpack.c.bf16 %v1547, %v1547
        %v1608 = vpack.c.bf16 %v1566, %v1566
        %v1609 = vpack.c.bf16 %v1585, %v1585
        %v1610 = vpack.c.bf16 %v1604, %v1604
        %v1611 = vld [vmem:[%s10] sm:$0xf]
        %v1612 = vld [vmem:[%s10 + $0x4] sm:$0xf]
        %v1613 = vld [vmem:[%s10 + $0x8] sm:$0xf]
        %v1614 = vld [vmem:[%s10 + $0xc] sm:$0xf]
        %v1615 = vld [vmem:[%s10 + $0x10] sm:$0xf]
        %v1616 = vld [vmem:[%s10 + $0x14] sm:$0xf]
        %v1617 = vld [vmem:[%s10 + $0x18] sm:$0xf]
        %v1618 = vld [vmem:[%s10 + $0x1c] sm:$0xf]
        %v1621 = vunpack.c.l.b16 %v1611
        %v1622 = vunpack.c.l.b16 %v1612
        %v1623 = vpack.c.b16 %v1622, %v1621
        %v1626 = vsel %vm689, %v1607, 0
        %1628 = vmatpush.bf16.msra.mxu0 0
        %1629 = vmatpush.bf16.msra.mxu0 0
        %1630 = vmatpush.bf16.msra.mxu0 0
        %1631 = vmatpush.bf16.msra.mxu0 0
        %1632 = vmatpush.bf16.msra.mxu0 0
        %1633 = vmatpush.bf16.msra.mxu0 0
        %1634 = vmatpush.bf16.msra.mxu0 0
        %1635 = vmatpush.bf16.msra.mxu0 %v1623
        %1636 = vmatmul.bf16.gmra.mxu0 %v1626
        %v1637 = vpop.f32.mrf.mxu0
        %v1638 = vadd.f32 0.0, %v1637
        %v1639 = vpop.f32.mrf.mxu0
        %1640 = vdwg.mxu0
        %v1643 = vunpack.c.l.b16 %v1613
        %v1644 = vunpack.c.l.b16 %v1614
        %v1645 = vpack.c.b16 %v1644, %v1643
        %v1648 = vsel %vm689, %v1608, 0
        %1650 = vmatpush.bf16.msra.mxu0 0
        %1651 = vmatpush.bf16.msra.mxu0 0
        %1652 = vmatpush.bf16.msra.mxu0 0
        %1653 = vmatpush.bf16.msra.mxu0 0
        %1654 = vmatpush.bf16.msra.mxu0 0
        %1655 = vmatpush.bf16.msra.mxu0 0
        %1656 = vmatpush.bf16.msra.mxu0 0
        %1657 = vmatpush.bf16.msra.mxu0 %v1645
        %1658 = vmatmul.bf16.gmra.mxu0 %v1648
        %v1659 = vpop.f32.mrf.mxu0
        %v1660 = vadd.f32 0.0, %v1659
        %v1661 = vpop.f32.mrf.mxu0
        %1662 = vdwg.mxu0
        %v1665 = vunpack.c.l.b16 %v1615
        %v1666 = vunpack.c.l.b16 %v1616
        %v1667 = vpack.c.b16 %v1666, %v1665
        %v1670 = vsel %vm689, %v1609, 0
        %1672 = vmatpush.bf16.msra.mxu0 0
        %1673 = vmatpush.bf16.msra.mxu0 0
        %1674 = vmatpush.bf16.msra.mxu0 0
        %1675 = vmatpush.bf16.msra.mxu0 0
        %1676 = vmatpush.bf16.msra.mxu0 0
        %1677 = vmatpush.bf16.msra.mxu0 0
        %1678 = vmatpush.bf16.msra.mxu0 0
        %1679 = vmatpush.bf16.msra.mxu0 %v1667
        %1680 = vmatmul.bf16.gmra.mxu0 %v1670
        %v1681 = vpop.f32.mrf.mxu0
        %v1682 = vadd.f32 0.0, %v1681
        %v1683 = vpop.f32.mrf.mxu0
        %1684 = vdwg.mxu0
        %v1687 = vunpack.c.l.b16 %v1617
        %v1688 = vunpack.c.l.b16 %v1618
        %v1689 = vpack.c.b16 %v1688, %v1687
        %v1692 = vsel %vm689, %v1610, 0
        %1694 = vmatpush.bf16.msra.mxu0 0
        %1695 = vmatpush.bf16.msra.mxu0 0
        %1696 = vmatpush.bf16.msra.mxu0 0
        %1697 = vmatpush.bf16.msra.mxu0 0
        %1698 = vmatpush.bf16.msra.mxu0 0
        %1699 = vmatpush.bf16.msra.mxu0 0
        %1700 = vmatpush.bf16.msra.mxu0 0
        %1701 = vmatpush.bf16.msra.mxu0 %v1689
        %1702 = vmatmul.bf16.gmra.mxu0 %v1692
        %v1703 = vpop.f32.mrf.mxu0
        %v1704 = vadd.f32 0.0, %v1703
        %v1705 = vpop.f32.mrf.mxu0
        %1706 = vdwg.mxu0
        %v1707 = vsel %vm755, %v1638, 0.0
        %v1708 = vsel %vm755, %v1660, 0.0
        %v1709 = vadd.f32 %v1707, %v1708
        %v1710 = vsel %vm755, %v1682, 0.0
        %v1711 = vadd.f32 %v1709, %v1710
        %v1712 = vsel %vm755, %v1704, 0.0
        %v1713 = vadd.f32 %v1711, %v1712
        %v1714 = vld [vmem:[%s11] sm:$0x1]
        %v1716 = vperm.slane %v1714, 0
        %v1718 = vadd.f32 %v1713, %v1716
        %v1719 = vadd.f32 %v1718, %v792
        %v1720 = vld [vmem:[%s12] sm:$0x1]
        %v1721 = vld [vmem:[%s13] sm:$0x1]
        %v1722 = vsel %vm755, %v1719, 0.0
        %1723 = vadd.xlane.f32.xlu0 %v1722
        %v1724 = vpop.xlane.xlu0 %1723
        %v1725 = vmul.f32 %v1724, %v765
        %v1726 = vsub.f32 %v1719, %v1725
        %v1727 = vmul.f32 %v1726, %v1726
        %v1728 = vsel %vm755, %v1727, 0.0
        %1729 = vadd.xlane.f32.xlu0 %v1728
        %v1730 = vpop.xlane.xlu0 %1729
        %v1731 = vmul.f32 %v1730, %v765
        %v1732 = vadd.f32 %v1731, 1e-05
        %v1733 = vrsqrt.pop %v1732
        %v1734 = vmul.f32 %v1733, %v1732
        %v1735 = vmul.f32 %v1734, %v1733
        %v1736 = vmul.f32 0.5, %v1735
        %v1737 = vsub.f32 1.5, %v1736
        %v1738 = vmul.f32 %v1733, %v1737
        %vm1739 = vweird.f32 %v1732
        %vm1740 = vweird.f32 %v1733
        %vm1741 = vmor %vm1739, %vm1740
        %v1742 = vsel %vm1741, %v1733, %v1738
        %v1743 = vmul.f32 %v1726, %v1742
        %v1745 = vperm.slane %v1720, 0
        %v1747 = vmul.f32 %v1743, %v1745
        %v1749 = vperm.slane %v1721, 0
        %v1751 = vadd.f32 %v1747, %v1749
        %v1752 = vpack.c.bf16 %v1751, %v1751
        %v1753 = vld [vmem:[%s14] sm:$0xf]
        %v1754 = vld [vmem:[%s14 + $0x4] sm:$0xf]
        %v1755 = vld [vmem:[%s14 + $0x8] sm:$0xf]
        %v1756 = vld [vmem:[%s14 + $0xc] sm:$0xf]
        %v1757 = vld [vmem:[%s14 + $0x10] sm:$0xf]
        %v1758 = vld [vmem:[%s14 + $0x14] sm:$0xf]
        %v1759 = vld [vmem:[%s14 + $0x18] sm:$0xf]
        %v1760 = vld [vmem:[%s14 + $0x1c] sm:$0xf]
        %v1761 = vld [vmem:[%s15] sm:$0x1]
        %v1763 = vperm.slane %v1761, 0
        %v1773 = vunpack.c.l.b16 %v1753
        %v1774 = vunpack.c.l.b16 %v1754
        %v1775 = vunpack.c.l.b16 %v1755
        %v1776 = vunpack.c.l.b16 %v1756
        %v1777 = vunpack.c.l.b16 %v1757
        %v1778 = vunpack.c.l.b16 %v1758
        %v1779 = vunpack.c.l.b16 %v1759
        %v1780 = vunpack.c.l.b16 %v1760
        %v1781 = vpack.c.b16 %v1774, %v1773
        %v1782 = vpack.c.b16 %v1776, %v1775
        %v1783 = vpack.c.b16 %v1778, %v1777
        %v1784 = vpack.c.b16 %v1780, %v1779
        %v1790 = vsel %vm755, %v1752, 0
        %1792 = vmatpush.bf16.msra.mxu0 0
        %1793 = vmatpush.bf16.msra.mxu0 0
        %1794 = vmatpush.bf16.msra.mxu0 0
        %1795 = vmatpush.bf16.msra.mxu0 0
        %1796 = vmatpush.bf16.msra.mxu0 %v1784
        %1797 = vmatpush.bf16.msra.mxu0 %v1783
        %1798 = vmatpush.bf16.msra.mxu0 %v1782
        %1799 = vmatpush.bf16.msra.mxu0 %v1781
        %1800 = vmatmul.bf16.gmra.mxu0 %v1790
        %v1801 = vpop.f32.mrf.mxu0
        %v1802 = vadd.f32 %v1763, %v1801
        %v1803 = vpop.f32.mrf.mxu0
        %1804 = vdwg.mxu0
        %v1805 = vmul.f32 %v1802, %v1802
        %v1806 = vmul.f32 %v1802, %v1805
        %v1807 = vmul.f32 %v1806, 0.044715
        %v1808 = vadd.f32 %v1802, %v1807
        %v1809 = vmul.f32 %v1808, 0.7978846
        %v1810 = vtanh.pop %v1809
        %v1811 = vadd.f32 %v1810, 1.0
        %v1812 = vmul.f32 %v1811, 0.5
        %v1813 = vmul.f32 %v1802, %v1812
        %v1814 = vpack.c.bf16 %v1813, %v1813
        %v1815 = vld [vmem:[%s16] sm:$0xf]
        %v1816 = vld [vmem:[%s16 + $0x4] sm:$0xf]
        %v1817 = vld [vmem:[%s16 + $0x8] sm:$0xf]
        %v1818 = vld [vmem:[%s16 + $0xc] sm:$0xf]
        %v1819 = vld [vmem:[%s16 + $0x10] sm:$0xf]
        %v1820 = vld [vmem:[%s16 + $0x14] sm:$0xf]
        %v1821 = vld [vmem:[%s16 + $0x18] sm:$0xf]
        %v1822 = vld [vmem:[%s16 + $0x1c] sm:$0xf]
        %v1823 = vld [vmem:[%s16 + $0x20] sm:$0xf]
        %v1824 = vld [vmem:[%s16 + $0x24] sm:$0xf]
        %v1825 = vld [vmem:[%s16 + $0x28] sm:$0xf]
        %v1826 = vld [vmem:[%s16 + $0x2c] sm:$0xf]
        %v1827 = vld [vmem:[%s16 + $0x30] sm:$0xf]
        %v1828 = vld [vmem:[%s16 + $0x34] sm:$0xf]
        %v1829 = vld [vmem:[%s16 + $0x38] sm:$0xf]
        %v1830 = vld [vmem:[%s16 + $0x3c] sm:$0xf]
        %v1831 = vld [vmem:[%s17] sm:$0x1]
        %v1833 = vperm.slane %v1831, 0
        %v1851 = vunpack.c.l.b16 %v1815
        %v1852 = vunpack.c.l.b16 %v1816
        %v1853 = vunpack.c.l.b16 %v1817
        %v1854 = vunpack.c.l.b16 %v1818
        %v1855 = vunpack.c.l.b16 %v1819
        %v1856 = vunpack.c.l.b16 %v1820
        %v1857 = vunpack.c.l.b16 %v1821
        %v1858 = vunpack.c.l.b16 %v1822
        %v1859 = vunpack.c.l.b16 %v1823
        %v1860 = vunpack.c.l.b16 %v1824
        %v1861 = vunpack.c.l.b16 %v1825
        %v1862 = vunpack.c.l.b16 %v1826
        %v1863 = vunpack.c.l.b16 %v1827
        %v1864 = vunpack.c.l.b16 %v1828
        %v1865 = vunpack.c.l.b16 %v1829
        %v1866 = vunpack.c.l.b16 %v1830
        %v1867 = vpack.c.b16 %v1852, %v1851
        %v1868 = vpack.c.b16 %v1854, %v1853
        %v1869 = vpack.c.b16 %v1856, %v1855
        %v1870 = vpack.c.b16 %v1858, %v1857
        %v1871 = vpack.c.b16 %v1860, %v1859
        %v1872 = vpack.c.b16 %v1862, %v1861
        %v1873 = vpack.c.b16 %v1864, %v1863
        %v1874 = vpack.c.b16 %v1866, %v1865
        %1883 = vmatpush.bf16.msra.mxu0 %v1874
        %1884 = vmatpush.bf16.msra.mxu0 %v1873
        %1885 = vmatpush.bf16.msra.mxu0 %v1872
        %1886 = vmatpush.bf16.msra.mxu0 %v1871
        %1887 = vmatpush.bf16.msra.mxu0 %v1870
        %1888 = vmatpush.bf16.msra.mxu0 %v1869
        %1889 = vmatpush.bf16.msra.mxu0 %v1868
        %1890 = vmatpush.bf16.msra.mxu0 %v1867
        %1891 = vmatmul.bf16.gmra.mxu0 %v1814
        %v1892 = vpop.f32.mrf.mxu0
        %v1893 = vadd.f32 %v1833, %v1892
        %v1894 = vpop.f32.mrf.mxu0
        %1895 = vdwg.mxu0
        %v1896 = vadd.f32 %v1893, %v1751
        %v1897 = vld [vmem:[%s18] sm:$0x1]
        %v1898 = vld [vmem:[%s19] sm:$0x1]
        %v1899 = vsel %vm755, %v1896, 0.0
        %1900 = vadd.xlane.f32.xlu0 %v1899
        %v1901 = vpop.xlane.xlu0 %1900
        %v1902 = vmul.f32 %v1901, %v765
        %v1903 = vsub.f32 %v1896, %v1902
        %v1904 = vmul.f32 %v1903, %v1903
        %v1905 = vsel %vm755, %v1904, 0.0
        %1906 = vadd.xlane.f32.xlu0 %v1905
        %v1907 = vpop.xlane.xlu0 %1906
        %v1908 = vmul.f32 %v1907, %v765
        %v1909 = vadd.f32 %v1908, 1e-05
        %v1910 = vrsqrt.pop %v1909
        %v1911 = vmul.f32 %v1910, %v1909
        %v1912 = vmul.f32 %v1911, %v1910
        %v1913 = vmul.f32 0.5, %v1912
        %v1914 = vsub.f32 1.5, %v1913
        %v1915 = vmul.f32 %v1910, %v1914
        %vm1916 = vweird.f32 %v1909
        %vm1917 = vweird.f32 %v1910
        %vm1918 = vmor %vm1916, %vm1917
        %v1919 = vsel %vm1918, %v1910, %v1915
        %v1920 = vmul.f32 %v1903, %v1919
        %v1922 = vperm.slane %v1897, 0
        %v1924 = vmul.f32 %v1920, %v1922
        %v1926 = vperm.slane %v1898, 0
        %v1928 = vadd.f32 %v1924, %v1926
        %v1929 = vpack.c.bf16 %v1928, %v1928
        %s1930 = scalar_lea.vmem %s8, 384
        %v1931 = vld [vmem:[%s1930] sm:$0xf]
        %v1932 = vld [vmem:[%s1930 + $0x4] sm:$0xf]
        %v1933 = vld [vmem:[%s1930 + $0x8] sm:$0xf]
        %v1934 = vld [vmem:[%s1930 + $0xc] sm:$0xf]
        %v1935 = vld [vmem:[%s1930 + $0x10] sm:$0xf]
        %v1936 = vld [vmem:[%s1930 + $0x14] sm:$0xf]
        %v1937 = vld [vmem:[%s1930 + $0x18] sm:$0xf]
        %v1938 = vld [vmem:[%s1930 + $0x1c] sm:$0xf]
        %v1939 = vld [vmem:[%s1930 + $0x20] sm:$0xf]
        %v1940 = vld [vmem:[%s1930 + $0x24] sm:$0xf]
        %v1941 = vld [vmem:[%s1930 + $0x28] sm:$0xf]
        %v1942 = vld [vmem:[%s1930 + $0x2c] sm:$0xf]
        %v1943 = vld [vmem:[%s1930 + $0x30] sm:$0xf]
        %v1944 = vld [vmem:[%s1930 + $0x34] sm:$0xf]
        %v1945 = vld [vmem:[%s1930 + $0x38] sm:$0xf]
        %v1946 = vld [vmem:[%s1930 + $0x3c] sm:$0xf]
        %v1947 = vld [vmem:[%s1930 + $0x40] sm:$0xf]
        %v1948 = vld [vmem:[%s1930 + $0x44] sm:$0xf]
        %v1949 = vld [vmem:[%s1930 + $0x48] sm:$0xf]
        %v1950 = vld [vmem:[%s1930 + $0x4c] sm:$0xf]
        %v1951 = vld [vmem:[%s1930 + $0x50] sm:$0xf]
        %v1952 = vld [vmem:[%s1930 + $0x54] sm:$0xf]
        %v1953 = vld [vmem:[%s1930 + $0x58] sm:$0xf]
        %v1954 = vld [vmem:[%s1930 + $0x5c] sm:$0xf]
        %v1955 = vld [vmem:[%s1930 + $0x60] sm:$0xf]
        %v1956 = vld [vmem:[%s1930 + $0x64] sm:$0xf]
        %v1957 = vld [vmem:[%s1930 + $0x68] sm:$0xf]
        %v1958 = vld [vmem:[%s1930 + $0x6c] sm:$0xf]
        %v1959 = vld [vmem:[%s1930 + $0x70] sm:$0xf]
        %v1960 = vld [vmem:[%s1930 + $0x74] sm:$0xf]
        %v1961 = vld [vmem:[%s1930 + $0x78] sm:$0xf]
        %v1962 = vld [vmem:[%s1930 + $0x7c] sm:$0xf]
        %v1963 = vld [vmem:[%s1930 + $0x80] sm:$0xf]
        %v1964 = vld [vmem:[%s1930 + $0x84] sm:$0xf]
        %v1965 = vld [vmem:[%s1930 + $0x88] sm:$0xf]
        %v1966 = vld [vmem:[%s1930 + $0x8c] sm:$0xf]
        %v1967 = vld [vmem:[%s1930 + $0x90] sm:$0xf]
        %v1968 = vld [vmem:[%s1930 + $0x94] sm:$0xf]
        %v1969 = vld [vmem:[%s1930 + $0x98] sm:$0xf]
        %v1970 = vld [vmem:[%s1930 + $0x9c] sm:$0xf]
        %v1971 = vld [vmem:[%s1930 + $0xa0] sm:$0xf]
        %v1972 = vld [vmem:[%s1930 + $0xa4] sm:$0xf]
        %v1973 = vld [vmem:[%s1930 + $0xa8] sm:$0xf]
        %v1974 = vld [vmem:[%s1930 + $0xac] sm:$0xf]
        %v1975 = vld [vmem:[%s1930 + $0xb0] sm:$0xf]
        %v1976 = vld [vmem:[%s1930 + $0xb4] sm:$0xf]
        %v1977 = vld [vmem:[%s1930 + $0xb8] sm:$0xf]
        %v1978 = vld [vmem:[%s1930 + $0xbc] sm:$0xf]
        %v1979 = vld [vmem:[%s1930 + $0xc0] sm:$0xf]
        %v1980 = vld [vmem:[%s1930 + $0xc4] sm:$0xf]
        %v1981 = vld [vmem:[%s1930 + $0xc8] sm:$0xf]
        %v1982 = vld [vmem:[%s1930 + $0xcc] sm:$0xf]
        %v1983 = vld [vmem:[%s1930 + $0xd0] sm:$0xf]
        %v1984 = vld [vmem:[%s1930 + $0xd4] sm:$0xf]
        %v1985 = vld [vmem:[%s1930 + $0xd8] sm:$0xf]
        %v1986 = vld [vmem:[%s1930 + $0xdc] sm:$0xf]
        %v1987 = vld [vmem:[%s1930 + $0xe0] sm:$0xf]
        %v1988 = vld [vmem:[%s1930 + $0xe4] sm:$0xf]
        %v1989 = vld [vmem:[%s1930 + $0xe8] sm:$0xf]
        %v1990 = vld [vmem:[%s1930 + $0xec] sm:$0xf]
        %v1991 = vld [vmem:[%s1930 + $0xf0] sm:$0xf]
        %v1992 = vld [vmem:[%s1930 + $0xf4] sm:$0xf]
        %v1993 = vld [vmem:[%s1930 + $0xf8] sm:$0xf]
        %v1994 = vld [vmem:[%s1930 + $0xfc] sm:$0xf]
        %v1995 = vld [vmem:[%s1930 + $0x100] sm:$0xf]
        %v1996 = vld [vmem:[%s1930 + $0x104] sm:$0xf]
        %v1997 = vld [vmem:[%s1930 + $0x108] sm:$0xf]
        %v1998 = vld [vmem:[%s1930 + $0x10c] sm:$0xf]
        %v1999 = vld [vmem:[%s1930 + $0x110] sm:$0xf]
        %v2000 = vld [vmem:[%s1930 + $0x114] sm:$0xf]
        %v2001 = vld [vmem:[%s1930 + $0x118] sm:$0xf]
        %v2002 = vld [vmem:[%s1930 + $0x11c] sm:$0xf]
        %v2003 = vld [vmem:[%s1930 + $0x120] sm:$0xf]
        %v2004 = vld [vmem:[%s1930 + $0x124] sm:$0xf]
        %v2005 = vld [vmem:[%s1930 + $0x128] sm:$0xf]
        %v2006 = vld [vmem:[%s1930 + $0x12c] sm:$0xf]
        %v2007 = vld [vmem:[%s1930 + $0x130] sm:$0xf]
        %v2008 = vld [vmem:[%s1930 + $0x134] sm:$0xf]
        %v2009 = vld [vmem:[%s1930 + $0x138] sm:$0xf]
        %v2010 = vld [vmem:[%s1930 + $0x13c] sm:$0xf]
        %v2011 = vld [vmem:[%s1930 + $0x140] sm:$0xf]
        %v2012 = vld [vmem:[%s1930 + $0x144] sm:$0xf]
        %v2013 = vld [vmem:[%s1930 + $0x148] sm:$0xf]
        %v2014 = vld [vmem:[%s1930 + $0x14c] sm:$0xf]
        %v2015 = vld [vmem:[%s1930 + $0x150] sm:$0xf]
        %v2016 = vld [vmem:[%s1930 + $0x154] sm:$0xf]
        %v2017 = vld [vmem:[%s1930 + $0x158] sm:$0xf]
        %v2018 = vld [vmem:[%s1930 + $0x15c] sm:$0xf]
        %v2019 = vld [vmem:[%s1930 + $0x160] sm:$0xf]
        %v2020 = vld [vmem:[%s1930 + $0x164] sm:$0xf]
        %v2021 = vld [vmem:[%s1930 + $0x168] sm:$0xf]
        %v2022 = vld [vmem:[%s1930 + $0x16c] sm:$0xf]
        %v2023 = vld [vmem:[%s1930 + $0x170] sm:$0xf]
        %v2024 = vld [vmem:[%s1930 + $0x174] sm:$0xf]
        %v2025 = vld [vmem:[%s1930 + $0x178] sm:$0xf]
        %v2026 = vld [vmem:[%s1930 + $0x17c] sm:$0xf]
        %s2027 = scalar_lea.vmem %s9, 12
        %v2028 = vld [vmem:[%s2027] sm:$0x1]
        %v2029 = vld [vmem:[%s2027 + $0x1] sm:$0x1]
        %v2030 = vld [vmem:[%s2027 + $0x2] sm:$0x1]
        %v2031 = vld [vmem:[%s2027 + $0x3] sm:$0x1]
        %v2032 = vld [vmem:[%s2027 + $0x4] sm:$0x1]
        %v2033 = vld [vmem:[%s2027 + $0x5] sm:$0x1]
        %v2034 = vld [vmem:[%s2027 + $0x6] sm:$0x1]
        %v2035 = vld [vmem:[%s2027 + $0x7] sm:$0x1]
        %v2036 = vld [vmem:[%s2027 + $0x8] sm:$0x1]
        %v2037 = vld [vmem:[%s2027 + $0x9] sm:$0x1]
        %v2038 = vld [vmem:[%s2027 + $0xa] sm:$0x1]
        %v2039 = vld [vmem:[%s2027 + $0xb] sm:$0x1]
        %v2052 = vperm.slane %v2028, 0
        %v2053 = vperm.slane %v2029, 0
        %v2054 = vperm.slane %v2030, 0
        %v2055 = vperm.slane %v2031, 0
        %v2056 = vperm.slane %v2032, 0
        %v2057 = vperm.slane %v2033, 0
        %v2058 = vperm.slane %v2034, 0
        %v2059 = vperm.slane %v2035, 0
        %v2060 = vperm.slane %v2036, 0
        %v2061 = vperm.slane %v2037, 0
        %v2062 = vperm.slane %v2038, 0
        %v2063 = vperm.slane %v2039, 0
        %v2084 = vunpack.c.l.b16 %v1931
        %v2085 = vunpack.c.l.b16 %v1932
        %v2086 = vunpack.c.l.b16 %v1933
        %v2087 = vunpack.c.l.b16 %v1934
        %v2088 = vunpack.c.l.b16 %v1935
        %v2089 = vunpack.c.l.b16 %v1936
        %v2090 = vunpack.c.l.b16 %v1937
        %v2091 = vunpack.c.l.b16 %v1938
        %v2092 = vpack.c.b16 %v2085, %v2084
        %v2093 = vpack.c.b16 %v2087, %v2086
        %v2094 = vpack.c.b16 %v2089, %v2088
        %v2095 = vpack.c.b16 %v2091, %v2090
        %v2101 = vsel %vm755, %v1929, 0
        %2103 = vmatpush.bf16.msra.mxu0 0
        %2104 = vmatpush.bf16.msra.mxu0 0
        %2105 = vmatpush.bf16.msra.mxu0 0
        %2106 = vmatpush.bf16.msra.mxu0 0
        %2107 = vmatpush.bf16.msra.mxu0 %v2095
        %2108 = vmatpush.bf16.msra.mxu0 %v2094
        %2109 = vmatpush.bf16.msra.mxu0 %v2093
        %2110 = vmatpush.bf16.msra.mxu0 %v2092
        %2111 = vmatmul.bf16.gmra.mxu0 %v2101
        %v2112 = vpop.f32.mrf.mxu0
        %v2113 = vadd.f32 %v2052, %v2112
        %v2114 = vpop.f32.mrf.mxu0
        %2115 = vdwg.mxu0
        %v2124 = vunpack.c.l.b16 %v1939
        %v2125 = vunpack.c.l.b16 %v1940
        %v2126 = vunpack.c.l.b16 %v1941
        %v2127 = vunpack.c.l.b16 %v1942
        %v2128 = vunpack.c.l.b16 %v1943
        %v2129 = vunpack.c.l.b16 %v1944
        %v2130 = vunpack.c.l.b16 %v1945
        %v2131 = vunpack.c.l.b16 %v1946
        %v2132 = vpack.c.b16 %v2125, %v2124
        %v2133 = vpack.c.b16 %v2127, %v2126
        %v2134 = vpack.c.b16 %v2129, %v2128
        %v2135 = vpack.c.b16 %v2131, %v2130
        %2140 = vmatpush.bf16.msra.mxu0 0
        %2141 = vmatpush.bf16.msra.mxu0 0
        %2142 = vmatpush.bf16.msra.mxu0 0
        %2143 = vmatpush.bf16.msra.mxu0 0
        %2144 = vmatpush.bf16.msra.mxu0 %v2135
        %2145 = vmatpush.bf16.msra.mxu0 %v2134
        %2146 = vmatpush.bf16.msra.mxu0 %v2133
        %2147 = vmatpush.bf16.msra.mxu0 %v2132
        %2148 = vmatmul.bf16.gmra.mxu0 %v2101
        %v2149 = vpop.f32.mrf.mxu0
        %v2150 = vadd.f32 %v2053, %v2149
        %v2151 = vpop.f32.mrf.mxu0
        %2152 = vdwg.mxu0
        %v2161 = vunpack.c.l.b16 %v1947
        %v2162 = vunpack.c.l.b16 %v1948
        %v2163 = vunpack.c.l.b16 %v1949
        %v2164 = vunpack.c.l.b16 %v1950
        %v2165 = vunpack.c.l.b16 %v1951
        %v2166 = vunpack.c.l.b16 %v1952
        %v2167 = vunpack.c.l.b16 %v1953
        %v2168 = vunpack.c.l.b16 %v1954
        %v2169 = vpack.c.b16 %v2162, %v2161
        %v2170 = vpack.c.b16 %v2164, %v2163
        %v2171 = vpack.c.b16 %v2166, %v2165
        %v2172 = vpack.c.b16 %v2168, %v2167
        %2177 = vmatpush.bf16.msra.mxu0 0
        %2178 = vmatpush.bf16.msra.mxu0 0
        %2179 = vmatpush.bf16.msra.mxu0 0
        %2180 = vmatpush.bf16.msra.mxu0 0
        %2181 = vmatpush.bf16.msra.mxu0 %v2172
        %2182 = vmatpush.bf16.msra.mxu0 %v2171
        %2183 = vmatpush.bf16.msra.mxu0 %v2170
        %2184 = vmatpush.bf16.msra.mxu0 %v2169
        %2185 = vmatmul.bf16.gmra.mxu0 %v2101
        %v2186 = vpop.f32.mrf.mxu0
        %v2187 = vadd.f32 %v2054, %v2186
        %v2188 = vpop.f32.mrf.mxu0
        %2189 = vdwg.mxu0
        %v2198 = vunpack.c.l.b16 %v1955
        %v2199 = vunpack.c.l.b16 %v1956
        %v2200 = vunpack.c.l.b16 %v1957
        %v2201 = vunpack.c.l.b16 %v1958
        %v2202 = vunpack.c.l.b16 %v1959
        %v2203 = vunpack.c.l.b16 %v1960
        %v2204 = vunpack.c.l.b16 %v1961
        %v2205 = vunpack.c.l.b16 %v1962
        %v2206 = vpack.c.b16 %v2199, %v2198
        %v2207 = vpack.c.b16 %v2201, %v2200
        %v2208 = vpack.c.b16 %v2203, %v2202
        %v2209 = vpack.c.b16 %v2205, %v2204
        %2214 = vmatpush.bf16.msra.mxu0 0
        %2215 = vmatpush.bf16.msra.mxu0 0
        %2216 = vmatpush.bf16.msra.mxu0 0
        %2217 = vmatpush.bf16.msra.mxu0 0
        %2218 = vmatpush.bf16.msra.mxu0 %v2209
        %2219 = vmatpush.bf16.msra.mxu0 %v2208
        %2220 = vmatpush.bf16.msra.mxu0 %v2207
        %2221 = vmatpush.bf16.msra.mxu0 %v2206
        %2222 = vmatmul.bf16.gmra.mxu0 %v2101
        %v2223 = vpop.f32.mrf.mxu0
        %v2224 = vadd.f32 %v2055, %v2223
        %v2225 = vpop.f32.mrf.mxu0
        %2226 = vdwg.mxu0
        %v2235 = vunpack.c.l.b16 %v1963
        %v2236 = vunpack.c.l.b16 %v1964
        %v2237 = vunpack.c.l.b16 %v1965
        %v2238 = vunpack.c.l.b16 %v1966
        %v2239 = vunpack.c.l.b16 %v1967
        %v2240 = vunpack.c.l.b16 %v1968
        %v2241 = vunpack.c.l.b16 %v1969
        %v2242 = vunpack.c.l.b16 %v1970
        %v2243 = vpack.c.b16 %v2236, %v2235
        %v2244 = vpack.c.b16 %v2238, %v2237
        %v2245 = vpack.c.b16 %v2240, %v2239
        %v2246 = vpack.c.b16 %v2242, %v2241
        %2251 = vmatpush.bf16.msra.mxu0 0
        %2252 = vmatpush.bf16.msra.mxu0 0
        %2253 = vmatpush.bf16.msra.mxu0 0
        %2254 = vmatpush.bf16.msra.mxu0 0
        %2255 = vmatpush.bf16.msra.mxu0 %v2246
        %2256 = vmatpush.bf16.msra.mxu0 %v2245
        %2257 = vmatpush.bf16.msra.mxu0 %v2244
        %2258 = vmatpush.bf16.msra.mxu0 %v2243
        %2259 = vmatmul.bf16.gmra.mxu0 %v2101
        %v2260 = vpop.f32.mrf.mxu0
        %v2261 = vadd.f32 %v2056, %v2260
        %v2262 = vpop.f32.mrf.mxu0
        %2263 = vdwg.mxu0
        %v2272 = vunpack.c.l.b16 %v1971
        %v2273 = vunpack.c.l.b16 %v1972
        %v2274 = vunpack.c.l.b16 %v1973
        %v2275 = vunpack.c.l.b16 %v1974
        %v2276 = vunpack.c.l.b16 %v1975
        %v2277 = vunpack.c.l.b16 %v1976
        %v2278 = vunpack.c.l.b16 %v1977
        %v2279 = vunpack.c.l.b16 %v1978
        %v2280 = vpack.c.b16 %v2273, %v2272
        %v2281 = vpack.c.b16 %v2275, %v2274
        %v2282 = vpack.c.b16 %v2277, %v2276
        %v2283 = vpack.c.b16 %v2279, %v2278
        %2288 = vmatpush.bf16.msra.mxu0 0
        %2289 = vmatpush.bf16.msra.mxu0 0
        %2290 = vmatpush.bf16.msra.mxu0 0
        %2291 = vmatpush.bf16.msra.mxu0 0
        %2292 = vmatpush.bf16.msra.mxu0 %v2283
        %2293 = vmatpush.bf16.msra.mxu0 %v2282
        %2294 = vmatpush.bf16.msra.mxu0 %v2281
        %2295 = vmatpush.bf16.msra.mxu0 %v2280
        %2296 = vmatmul.bf16.gmra.mxu0 %v2101
        %v2297 = vpop.f32.mrf.mxu0
        %v2298 = vadd.f32 %v2057, %v2297
        %v2299 = vpop.f32.mrf.mxu0
        %2300 = vdwg.mxu0
        %v2309 = vunpack.c.l.b16 %v1979
        %v2310 = vunpack.c.l.b16 %v1980
        %v2311 = vunpack.c.l.b16 %v1981
        %v2312 = vunpack.c.l.b16 %v1982
        %v2313 = vunpack.c.l.b16 %v1983
        %v2314 = vunpack.c.l.b16 %v1984
        %v2315 = vunpack.c.l.b16 %v1985
        %v2316 = vunpack.c.l.b16 %v1986
        %v2317 = vpack.c.b16 %v2310, %v2309
        %v2318 = vpack.c.b16 %v2312, %v2311
        %v2319 = vpack.c.b16 %v2314, %v2313
        %v2320 = vpack.c.b16 %v2316, %v2315
        %2325 = vmatpush.bf16.msra.mxu0 0
        %2326 = vmatpush.bf16.msra.mxu0 0
        %2327 = vmatpush.bf16.msra.mxu0 0
        %2328 = vmatpush.bf16.msra.mxu0 0
        %2329 = vmatpush.bf16.msra.mxu0 %v2320
        %2330 = vmatpush.bf16.msra.mxu0 %v2319
        %2331 = vmatpush.bf16.msra.mxu0 %v2318
        %2332 = vmatpush.bf16.msra.mxu0 %v2317
        %2333 = vmatmul.bf16.gmra.mxu0 %v2101
        %v2334 = vpop.f32.mrf.mxu0
        %v2335 = vadd.f32 %v2058, %v2334
        %v2336 = vpop.f32.mrf.mxu0
        %2337 = vdwg.mxu0
        %v2346 = vunpack.c.l.b16 %v1987
        %v2347 = vunpack.c.l.b16 %v1988
        %v2348 = vunpack.c.l.b16 %v1989
        %v2349 = vunpack.c.l.b16 %v1990
        %v2350 = vunpack.c.l.b16 %v1991
        %v2351 = vunpack.c.l.b16 %v1992
        %v2352 = vunpack.c.l.b16 %v1993
        %v2353 = vunpack.c.l.b16 %v1994
        %v2354 = vpack.c.b16 %v2347, %v2346
        %v2355 = vpack.c.b16 %v2349, %v2348
        %v2356 = vpack.c.b16 %v2351, %v2350
        %v2357 = vpack.c.b16 %v2353, %v2352
        %2362 = vmatpush.bf16.msra.mxu0 0
        %2363 = vmatpush.bf16.msra.mxu0 0
        %2364 = vmatpush.bf16.msra.mxu0 0
        %2365 = vmatpush.bf16.msra.mxu0 0
        %2366 = vmatpush.bf16.msra.mxu0 %v2357
        %2367 = vmatpush.bf16.msra.mxu0 %v2356
        %2368 = vmatpush.bf16.msra.mxu0 %v2355
        %2369 = vmatpush.bf16.msra.mxu0 %v2354
        %2370 = vmatmul.bf16.gmra.mxu0 %v2101
        %v2371 = vpop.f32.mrf.mxu0
        %v2372 = vadd.f32 %v2059, %v2371
        %v2373 = vpop.f32.mrf.mxu0
        %2374 = vdwg.mxu0
        %v2383 = vunpack.c.l.b16 %v1995
        %v2384 = vunpack.c.l.b16 %v1996
        %v2385 = vunpack.c.l.b16 %v1997
        %v2386 = vunpack.c.l.b16 %v1998
        %v2387 = vunpack.c.l.b16 %v1999
        %v2388 = vunpack.c.l.b16 %v2000
        %v2389 = vunpack.c.l.b16 %v2001
        %v2390 = vunpack.c.l.b16 %v2002
        %v2391 = vpack.c.b16 %v2384, %v2383
        %v2392 = vpack.c.b16 %v2386, %v2385
        %v2393 = vpack.c.b16 %v2388, %v2387
        %v2394 = vpack.c.b16 %v2390, %v2389
        %2399 = vmatpush.bf16.msra.mxu0 0
        %2400 = vmatpush.bf16.msra.mxu0 0
        %2401 = vmatpush.bf16.msra.mxu0 0
        %2402 = vmatpush.bf16.msra.mxu0 0
        %2403 = vmatpush.bf16.msra.mxu0 %v2394
        %2404 = vmatpush.bf16.msra.mxu0 %v2393
        %2405 = vmatpush.bf16.msra.mxu0 %v2392
        %2406 = vmatpush.bf16.msra.mxu0 %v2391
        %2407 = vmatmul.bf16.gmra.mxu0 %v2101
        %v2408 = vpop.f32.mrf.mxu0
        %v2409 = vadd.f32 %v2060, %v2408
        %v2410 = vpop.f32.mrf.mxu0
        %2411 = vdwg.mxu0
        %v2420 = vunpack.c.l.b16 %v2003
        %v2421 = vunpack.c.l.b16 %v2004
        %v2422 = vunpack.c.l.b16 %v2005
        %v2423 = vunpack.c.l.b16 %v2006
        %v2424 = vunpack.c.l.b16 %v2007
        %v2425 = vunpack.c.l.b16 %v2008
        %v2426 = vunpack.c.l.b16 %v2009
        %v2427 = vunpack.c.l.b16 %v2010
        %v2428 = vpack.c.b16 %v2421, %v2420
        %v2429 = vpack.c.b16 %v2423, %v2422
        %v2430 = vpack.c.b16 %v2425, %v2424
        %v2431 = vpack.c.b16 %v2427, %v2426
        %2436 = vmatpush.bf16.msra.mxu0 0
        %2437 = vmatpush.bf16.msra.mxu0 0
        %2438 = vmatpush.bf16.msra.mxu0 0
        %2439 = vmatpush.bf16.msra.mxu0 0
        %2440 = vmatpush.bf16.msra.mxu0 %v2431
        %2441 = vmatpush.bf16.msra.mxu0 %v2430
        %2442 = vmatpush.bf16.msra.mxu0 %v2429
        %2443 = vmatpush.bf16.msra.mxu0 %v2428
        %2444 = vmatmul.bf16.gmra.mxu0 %v2101
        %v2445 = vpop.f32.mrf.mxu0
        %v2446 = vadd.f32 %v2061, %v2445
        %v2447 = vpop.f32.mrf.mxu0
        %2448 = vdwg.mxu0
        %v2457 = vunpack.c.l.b16 %v2011
        %v2458 = vunpack.c.l.b16 %v2012
        %v2459 = vunpack.c.l.b16 %v2013
        %v2460 = vunpack.c.l.b16 %v2014
        %v2461 = vunpack.c.l.b16 %v2015
        %v2462 = vunpack.c.l.b16 %v2016
        %v2463 = vunpack.c.l.b16 %v2017
        %v2464 = vunpack.c.l.b16 %v2018
        %v2465 = vpack.c.b16 %v2458, %v2457
        %v2466 = vpack.c.b16 %v2460, %v2459
        %v2467 = vpack.c.b16 %v2462, %v2461
        %v2468 = vpack.c.b16 %v2464, %v2463
        %2473 = vmatpush.bf16.msra.mxu0 0
        %2474 = vmatpush.bf16.msra.mxu0 0
        %2475 = vmatpush.bf16.msra.mxu0 0
        %2476 = vmatpush.bf16.msra.mxu0 0
        %2477 = vmatpush.bf16.msra.mxu0 %v2468
        %2478 = vmatpush.bf16.msra.mxu0 %v2467
        %2479 = vmatpush.bf16.msra.mxu0 %v2466
        %2480 = vmatpush.bf16.msra.mxu0 %v2465
        %2481 = vmatmul.bf16.gmra.mxu0 %v2101
        %v2482 = vpop.f32.mrf.mxu0
        %v2483 = vadd.f32 %v2062, %v2482
        %v2484 = vpop.f32.mrf.mxu0
        %2485 = vdwg.mxu0
        %v2494 = vunpack.c.l.b16 %v2019
        %v2495 = vunpack.c.l.b16 %v2020
        %v2496 = vunpack.c.l.b16 %v2021
        %v2497 = vunpack.c.l.b16 %v2022
        %v2498 = vunpack.c.l.b16 %v2023
        %v2499 = vunpack.c.l.b16 %v2024
        %v2500 = vunpack.c.l.b16 %v2025
        %v2501 = vunpack.c.l.b16 %v2026
        %v2502 = vpack.c.b16 %v2495, %v2494
        %v2503 = vpack.c.b16 %v2497, %v2496
        %v2504 = vpack.c.b16 %v2499, %v2498
        %v2505 = vpack.c.b16 %v2501, %v2500
        %2510 = vmatpush.bf16.msra.mxu0 0
        %2511 = vmatpush.bf16.msra.mxu0 0
        %2512 = vmatpush.bf16.msra.mxu0 0
        %2513 = vmatpush.bf16.msra.mxu0 0
        %2514 = vmatpush.bf16.msra.mxu0 %v2505
        %2515 = vmatpush.bf16.msra.mxu0 %v2504
        %2516 = vmatpush.bf16.msra.mxu0 %v2503
        %2517 = vmatpush.bf16.msra.mxu0 %v2502
        %2518 = vmatmul.bf16.gmra.mxu0 %v2101
        %v2519 = vpop.f32.mrf.mxu0
        %v2520 = vadd.f32 %v2063, %v2519
        %v2521 = vpop.f32.mrf.mxu0
        %2522 = vdwg.mxu0
        %v2523 = vmul.f32 %v2113, 0.25
        %v2524 = vmul.f32 %v2150, 0.25
        %v2525 = vmul.f32 %v2187, 0.25
        %v2526 = vmul.f32 %v2224, 0.25
        %v2527 = vpack.c.bf16 %v2523, %v2523
        %v2528 = vpack.c.bf16 %v2524, %v2524
        %v2529 = vpack.c.bf16 %v2525, %v2525
        %v2530 = vpack.c.bf16 %v2526, %v2526
        %v2531 = vpack.c.bf16 %v2261, %v2261
        %v2532 = vpack.c.bf16 %v2298, %v2298
        %v2533 = vpack.c.bf16 %v2335, %v2335
        %v2534 = vpack.c.bf16 %v2372, %v2372
        %v2536 = vsel %vm689, %v2527, 0
        %v2539 = vsel %vm689, %v2531, 0
        %2541 = vmatpush.bf16.xpose.msra.mxu0 0
        %2542 = vmatpush.bf16.xpose.msra.mxu0 0
        %2543 = vmatpush.bf16.xpose.msra.mxu0 0
        %2544 = vmatpush.bf16.xpose.msra.mxu0 0
        %2545 = vmatpush.bf16.xpose.msra.mxu0 0
        %2546 = vmatpush.bf16.xpose.msra.mxu0 0
        %2547 = vmatpush.bf16.xpose.msra.mxu0 0
        %2548 = vmatpush.bf16.xpose.msra.mxu0 %v2539
        %2549 = vmatmul.bf16.gmra.mxu0 %v2536
        %v2550 = vpop.f32.mrf.mxu0
        %v2551 = vadd.f32 %v795, %v2550
        %v2552 = vpop.f32.mrf.mxu0
        %2553 = vdwg.mxu0
        %v2555 = vsel %vm689, %v2528, 0
        %v2558 = vsel %vm689, %v2532, 0
        %2560 = vmatpush.bf16.xpose.msra.mxu0 0
        %2561 = vmatpush.bf16.xpose.msra.mxu0 0
        %2562 = vmatpush.bf16.xpose.msra.mxu0 0
        %2563 = vmatpush.bf16.xpose.msra.mxu0 0
        %2564 = vmatpush.bf16.xpose.msra.mxu0 0
        %2565 = vmatpush.bf16.xpose.msra.mxu0 0
        %2566 = vmatpush.bf16.xpose.msra.mxu0 0
        %2567 = vmatpush.bf16.xpose.msra.mxu0 %v2558
        %2568 = vmatmul.bf16.gmra.mxu0 %v2555
        %v2569 = vpop.f32.mrf.mxu0
        %v2570 = vadd.f32 %v795, %v2569
        %v2571 = vpop.f32.mrf.mxu0
        %2572 = vdwg.mxu0
        %v2574 = vsel %vm689, %v2529, 0
        %v2577 = vsel %vm689, %v2533, 0
        %2579 = vmatpush.bf16.xpose.msra.mxu0 0
        %2580 = vmatpush.bf16.xpose.msra.mxu0 0
        %2581 = vmatpush.bf16.xpose.msra.mxu0 0
        %2582 = vmatpush.bf16.xpose.msra.mxu0 0
        %2583 = vmatpush.bf16.xpose.msra.mxu0 0
        %2584 = vmatpush.bf16.xpose.msra.mxu0 0
        %2585 = vmatpush.bf16.xpose.msra.mxu0 0
        %2586 = vmatpush.bf16.xpose.msra.mxu0 %v2577
        %2587 = vmatmul.bf16.gmra.mxu0 %v2574
        %v2588 = vpop.f32.mrf.mxu0
        %v2589 = vadd.f32 %v795, %v2588
        %v2590 = vpop.f32.mrf.mxu0
        %2591 = vdwg.mxu0
        %v2593 = vsel %vm689, %v2530, 0
        %v2596 = vsel %vm689, %v2534, 0
        %2598 = vmatpush.bf16.xpose.msra.mxu0 0
        %2599 = vmatpush.bf16.xpose.msra.mxu0 0
        %2600 = vmatpush.bf16.xpose.msra.mxu0 0
        %2601 = vmatpush.bf16.xpose.msra.mxu0 0
        %2602 = vmatpush.bf16.xpose.msra.mxu0 0
        %2603 = vmatpush.bf16.xpose.msra.mxu0 0
        %2604 = vmatpush.bf16.xpose.msra.mxu0 0
        %2605 = vmatpush.bf16.xpose.msra.mxu0 %v2596
        %2606 = vmatmul.bf16.gmra.mxu0 %v2593
        %v2607 = vpop.f32.mrf.mxu0
        %v2608 = vadd.f32 %v795, %v2607
        %v2609 = vpop.f32.mrf.mxu0
        %2610 = vdwg.mxu0
        %v2611 = vsel %vm1477, %v2551, -inf
        %2612 = vmax.xlane.f32.xlu0 %v2611
        %v2613 = vpop.xlane.xlu0 %2612
        %v2614 = vsel %vm1477, %v2570, -inf
        %2615 = vmax.xlane.f32.xlu0 %v2614
        %v2616 = vpop.xlane.xlu0 %2615
        %v2617 = vsel %vm1477, %v2589, -inf
        %2618 = vmax.xlane.f32.xlu0 %v2617
        %v2619 = vpop.xlane.xlu0 %2618
        %v2620 = vsel %vm1477, %v2608, -inf
        %2621 = vmax.xlane.f32.xlu0 %v2620
        %v2622 = vpop.xlane.xlu0 %2621
        %v2623 = vsub.f32 %v2551, %v2613
        %v2624 = vsub.f32 %v2570, %v2616
        %v2625 = vsub.f32 %v2589, %v2619
        %v2626 = vsub.f32 %v2608, %v2622
        %v2627 = vmul.f32 %v2623, 1.442695
        %v2628 = vpow.pop %v2627
        %v2629 = vmul.f32 %v2624, 1.442695
        %v2630 = vpow.pop %v2629
        %v2631 = vmul.f32 %v2625, 1.442695
        %v2632 = vpow.pop %v2631
        %v2633 = vmul.f32 %v2626, 1.442695
        %v2634 = vpow.pop %v2633
        %v2635 = vsel %vm1477, %v2628, 0.0
        %2636 = vadd.xlane.f32.xlu0 %v2635
        %v2637 = vpop.xlane.xlu0 %2636
        %v2638 = vsel %vm1477, %v2630, 0.0
        %2639 = vadd.xlane.f32.xlu0 %v2638
        %v2640 = vpop.xlane.xlu0 %2639
        %v2641 = vsel %vm1477, %v2632, 0.0
        %2642 = vadd.xlane.f32.xlu0 %v2641
        %v2643 = vpop.xlane.xlu0 %2642
        %v2644 = vsel %vm1477, %v2634, 0.0
        %2645 = vadd.xlane.f32.xlu0 %v2644
        %v2646 = vpop.xlane.xlu0 %2645
        %v2647 = vrcp.pop %v2637
        %v2648 = vrcp.pop %v2640
        %v2649 = vrcp.pop %v2643
        %v2650 = vrcp.pop %v2646
        %v2651 = vmul.f32 %v2628, %v2647
        %v2652 = vmul.f32 %v2630, %v2648
        %v2653 = vmul.f32 %v2632, %v2649
        %v2654 = vmul.f32 %v2634, %v2650
        %v2655 = vpack.c.bf16 %v2651, %v2651
        %v2656 = vpack.c.bf16 %v2652, %v2652
        %v2657 = vpack.c.bf16 %v2653, %v2653
        %v2658 = vpack.c.bf16 %v2654, %v2654
        %v2659 = vpack.c.bf16 %v2409, %v2409
        %v2660 = vpack.c.bf16 %v2446, %v2446
        %v2661 = vpack.c.bf16 %v2483, %v2483
        %v2662 = vpack.c.bf16 %v2520, %v2520
        %v2664 = vsel %vm1477, %v2655, 0
        %v2667 = vsel %vm1533, %v2659, 0
        %2669 = vmatpush.bf16.msra.mxu0 0
        %2670 = vmatpush.bf16.msra.mxu0 0
        %2671 = vmatpush.bf16.msra.mxu0 0
        %2672 = vmatpush.bf16.msra.mxu0 0
        %2673 = vmatpush.bf16.msra.mxu0 0
        %2674 = vmatpush.bf16.msra.mxu0 0
        %2675 = vmatpush.bf16.msra.mxu0 0
        %2676 = vmatpush.bf16.msra.mxu0 %v2667
        %2677 = vmatmul.bf16.gmra.mxu0 %v2664
        %v2678 = vpop.f32.mrf.mxu0
        %v2679 = vadd.f32 0.0, %v2678
        %v2680 = vpop.f32.mrf.mxu0
        %2681 = vdwg.mxu0
        %v2683 = vsel %vm1477, %v2656, 0
        %v2686 = vsel %vm1533, %v2660, 0
        %2688 = vmatpush.bf16.msra.mxu0 0
        %2689 = vmatpush.bf16.msra.mxu0 0
        %2690 = vmatpush.bf16.msra.mxu0 0
        %2691 = vmatpush.bf16.msra.mxu0 0
        %2692 = vmatpush.bf16.msra.mxu0 0
        %2693 = vmatpush.bf16.msra.mxu0 0
        %2694 = vmatpush.bf16.msra.mxu0 0
        %2695 = vmatpush.bf16.msra.mxu0 %v2686
        %2696 = vmatmul.bf16.gmra.mxu0 %v2683
        %v2697 = vpop.f32.mrf.mxu0
        %v2698 = vadd.f32 0.0, %v2697
        %v2699 = vpop.f32.mrf.mxu0
        %2700 = vdwg.mxu0
        %v2702 = vsel %vm1477, %v2657, 0
        %v2705 = vsel %vm1533, %v2661, 0
        %2707 = vmatpush.bf16.msra.mxu0 0
        %2708 = vmatpush.bf16.msra.mxu0 0
        %2709 = vmatpush.bf16.msra.mxu0 0
        %2710 = vmatpush.bf16.msra.mxu0 0
        %2711 = vmatpush.bf16.msra.mxu0 0
        %2712 = vmatpush.bf16.msra.mxu0 0
        %2713 = vmatpush.bf16.msra.mxu0 0
        %2714 = vmatpush.bf16.msra.mxu0 %v2705
        %2715 = vmatmul.bf16.gmra.mxu0 %v2702
        %v2716 = vpop.f32.mrf.mxu0
        %v2717 = vadd.f32 0.0, %v2716
        %v2718 = vpop.f32.mrf.mxu0
        %2719 = vdwg.mxu0
        %v2721 = vsel %vm1477, %v2658, 0
        %v2724 = vsel %vm1533, %v2662, 0
        %2726 = vmatpush.bf16.msra.mxu0 0
        %2727 = vmatpush.bf16.msra.mxu0 0
        %2728 = vmatpush.bf16.msra.mxu0 0
        %2729 = vmatpush.bf16.msra.mxu0 0
        %2730 = vmatpush.bf16.msra.mxu0 0
        %2731 = vmatpush.bf16.msra.mxu0 0
        %2732 = vmatpush.bf16.msra.mxu0 0
        %2733 = vmatpush.bf16.msra.mxu0 %v2724
        %2734 = vmatmul.bf16.gmra.mxu0 %v2721
        %v2735 = vpop.f32.mrf.mxu0
        %v2736 = vadd.f32 0.0, %v2735
        %v2737 = vpop.f32.mrf.mxu0
        %2738 = vdwg.mxu0
        %v2739 = vpack.c.bf16 %v2679, %v2679
        %v2740 = vpack.c.bf16 %v2698, %v2698
        %v2741 = vpack.c.bf16 %v2717, %v2717
        %v2742 = vpack.c.bf16 %v2736, %v2736
        %s2743 = scalar_lea.vmem %s10, 32
        %v2744 = vld [vmem:[%s2743] sm:$0xf]
        %v2745 = vld [vmem:[%s2743 + $0x4] sm:$0xf]
        %v2746 = vld [vmem:[%s2743 + $0x8] sm:$0xf]
        %v2747 = vld [vmem:[%s2743 + $0xc] sm:$0xf]
        %v2748 = vld [vmem:[%s2743 + $0x10] sm:$0xf]
        %v2749 = vld [vmem:[%s2743 + $0x14] sm:$0xf]
        %v2750 = vld [vmem:[%s2743 + $0x18] sm:$0xf]
        %v2751 = vld [vmem:[%s2743 + $0x1c] sm:$0xf]
        %v2754 = vunpack.c.l.b16 %v2744
        %v2755 = vunpack.c.l.b16 %v2745
        %v2756 = vpack.c.b16 %v2755, %v2754
        %v2759 = vsel %vm689, %v2739, 0
        %2761 = vmatpush.bf16.msra.mxu0 0
        %2762 = vmatpush.bf16.msra.mxu0 0
        %2763 = vmatpush.bf16.msra.mxu0 0
        %2764 = vmatpush.bf16.msra.mxu0 0
        %2765 = vmatpush.bf16.msra.mxu0 0
        %2766 = vmatpush.bf16.msra.mxu0 0
        %2767 = vmatpush.bf16.msra.mxu0 0
        %2768 = vmatpush.bf16.msra.mxu0 %v2756
        %2769 = vmatmul.bf16.gmra.mxu0 %v2759
        %v2770 = vpop.f32.mrf.mxu0
        %v2771 = vadd.f32 0.0, %v2770
        %v2772 = vpop.f32.mrf.mxu0
        %2773 = vdwg.mxu0
        %v2776 = vunpack.c.l.b16 %v2746
        %v2777 = vunpack.c.l.b16 %v2747
        %v2778 = vpack.c.b16 %v2777, %v2776
        %v2781 = vsel %vm689, %v2740, 0
        %2783 = vmatpush.bf16.msra.mxu0 0
        %2784 = vmatpush.bf16.msra.mxu0 0
        %2785 = vmatpush.bf16.msra.mxu0 0
        %2786 = vmatpush.bf16.msra.mxu0 0
        %2787 = vmatpush.bf16.msra.mxu0 0
        %2788 = vmatpush.bf16.msra.mxu0 0
        %2789 = vmatpush.bf16.msra.mxu0 0
        %2790 = vmatpush.bf16.msra.mxu0 %v2778
        %2791 = vmatmul.bf16.gmra.mxu0 %v2781
        %v2792 = vpop.f32.mrf.mxu0
        %v2793 = vadd.f32 0.0, %v2792
        %v2794 = vpop.f32.mrf.mxu0
        %2795 = vdwg.mxu0
        %v2798 = vunpack.c.l.b16 %v2748
        %v2799 = vunpack.c.l.b16 %v2749
        %v2800 = vpack.c.b16 %v2799, %v2798
        %v2803 = vsel %vm689, %v2741, 0
        %2805 = vmatpush.bf16.msra.mxu0 0
        %2806 = vmatpush.bf16.msra.mxu0 0
        %2807 = vmatpush.bf16.msra.mxu0 0
        %2808 = vmatpush.bf16.msra.mxu0 0
        %2809 = vmatpush.bf16.msra.mxu0 0
        %2810 = vmatpush.bf16.msra.mxu0 0
        %2811 = vmatpush.bf16.msra.mxu0 0
        %2812 = vmatpush.bf16.msra.mxu0 %v2800
        %2813 = vmatmul.bf16.gmra.mxu0 %v2803
        %v2814 = vpop.f32.mrf.mxu0
        %v2815 = vadd.f32 0.0, %v2814
        %v2816 = vpop.f32.mrf.mxu0
        %2817 = vdwg.mxu0
        %v2820 = vunpack.c.l.b16 %v2750
        %v2821 = vunpack.c.l.b16 %v2751
        %v2822 = vpack.c.b16 %v2821, %v2820
        %v2825 = vsel %vm689, %v2742, 0
        %2827 = vmatpush.bf16.msra.mxu0 0
        %2828 = vmatpush.bf16.msra.mxu0 0
        %2829 = vmatpush.bf16.msra.mxu0 0
        %2830 = vmatpush.bf16.msra.mxu0 0
        %2831 = vmatpush.bf16.msra.mxu0 0
        %2832 = vmatpush.bf16.msra.mxu0 0
        %2833 = vmatpush.bf16.msra.mxu0 0
        %2834 = vmatpush.bf16.msra.mxu0 %v2822
        %2835 = vmatmul.bf16.gmra.mxu0 %v2825
        %v2836 = vpop.f32.mrf.mxu0
        %v2837 = vadd.f32 0.0, %v2836
        %v2838 = vpop.f32.mrf.mxu0
        %2839 = vdwg.mxu0
        %v2840 = vsel %vm755, %v2771, 0.0
        %v2841 = vsel %vm755, %v2793, 0.0
        %v2842 = vadd.f32 %v2840, %v2841
        %v2843 = vsel %vm755, %v2815, 0.0
        %v2844 = vadd.f32 %v2842, %v2843
        %v2845 = vsel %vm755, %v2837, 0.0
        %v2846 = vadd.f32 %v2844, %v2845
        %s2847 = scalar_lea.vmem %s11, 1
        %v2848 = vld [vmem:[%s2847] sm:$0x1]
        %v2850 = vperm.slane %v2848, 0
        %v2852 = vadd.f32 %v2846, %v2850
        %v2853 = vadd.f32 %v2852, %v1928
        %s2854 = scalar_lea.vmem %s12, 1
        %v2855 = vld [vmem:[%s2854] sm:$0x1]
        %s2856 = scalar_lea.vmem %s13, 1
        %v2857 = vld [vmem:[%s2856] sm:$0x1]
        %v2858 = vsel %vm755, %v2853, 0.0
        %2859 = vadd.xlane.f32.xlu0 %v2858
        %v2860 = vpop.xlane.xlu0 %2859
        %v2861 = vmul.f32 %v2860, %v765
        %v2862 = vsub.f32 %v2853, %v2861
        %v2863 = vmul.f32 %v2862, %v2862
        %v2864 = vsel %vm755, %v2863, 0.0
        %2865 = vadd.xlane.f32.xlu0 %v2864
        %v2866 = vpop.xlane.xlu0 %2865
        %v2867 = vmul.f32 %v2866, %v765
        %v2868 = vadd.f32 %v2867, 1e-05
        %v2869 = vrsqrt.pop %v2868
        %v2870 = vmul.f32 %v2869, %v2868
        %v2871 = vmul.f32 %v2870, %v2869
        %v2872 = vmul.f32 0.5, %v2871
        %v2873 = vsub.f32 1.5, %v2872
        %v2874 = vmul.f32 %v2869, %v2873
        %vm2875 = vweird.f32 %v2868
        %vm2876 = vweird.f32 %v2869
        %vm2877 = vmor %vm2875, %vm2876
        %v2878 = vsel %vm2877, %v2869, %v2874
        %v2879 = vmul.f32 %v2862, %v2878
        %v2881 = vperm.slane %v2855, 0
        %v2883 = vmul.f32 %v2879, %v2881
        %v2885 = vperm.slane %v2857, 0
        %v2887 = vadd.f32 %v2883, %v2885
        %v2888 = vpack.c.bf16 %v2887, %v2887
        %s2889 = scalar_lea.vmem %s14, 32
        %v2890 = vld [vmem:[%s2889] sm:$0xf]
        %v2891 = vld [vmem:[%s2889 + $0x4] sm:$0xf]
        %v2892 = vld [vmem:[%s2889 + $0x8] sm:$0xf]
        %v2893 = vld [vmem:[%s2889 + $0xc] sm:$0xf]
        %v2894 = vld [vmem:[%s2889 + $0x10] sm:$0xf]
        %v2895 = vld [vmem:[%s2889 + $0x14] sm:$0xf]
        %v2896 = vld [vmem:[%s2889 + $0x18] sm:$0xf]
        %v2897 = vld [vmem:[%s2889 + $0x1c] sm:$0xf]
        %s2898 = scalar_lea.vmem %s15, 1
        %v2899 = vld [vmem:[%s2898] sm:$0x1]
        %v2901 = vperm.slane %v2899, 0
        %v2911 = vunpack.c.l.b16 %v2890
        %v2912 = vunpack.c.l.b16 %v2891
        %v2913 = vunpack.c.l.b16 %v2892
        %v2914 = vunpack.c.l.b16 %v2893
        %v2915 = vunpack.c.l.b16 %v2894
        %v2916 = vunpack.c.l.b16 %v2895
        %v2917 = vunpack.c.l.b16 %v2896
        %v2918 = vunpack.c.l.b16 %v2897
        %v2919 = vpack.c.b16 %v2912, %v2911
        %v2920 = vpack.c.b16 %v2914, %v2913
        %v2921 = vpack.c.b16 %v2916, %v2915
        %v2922 = vpack.c.b16 %v2918, %v2917
        %v2928 = vsel %vm755, %v2888, 0
        %2930 = vmatpush.bf16.msra.mxu0 0
        %2931 = vmatpush.bf16.msra.mxu0 0
        %2932 = vmatpush.bf16.msra.mxu0 0
        %2933 = vmatpush.bf16.msra.mxu0 0
        %2934 = vmatpush.bf16.msra.mxu0 %v2922
        %2935 = vmatpush.bf16.msra.mxu0 %v2921
        %2936 = vmatpush.bf16.msra.mxu0 %v2920
        %2937 = vmatpush.bf16.msra.mxu0 %v2919
        %2938 = vmatmul.bf16.gmra.mxu0 %v2928
        %v2939 = vpop.f32.mrf.mxu0
        %v2940 = vadd.f32 %v2901, %v2939
        %v2941 = vpop.f32.mrf.mxu0
        %2942 = vdwg.mxu0
        %v2943 = vmul.f32 %v2940, %v2940
        %v2944 = vmul.f32 %v2940, %v2943
        %v2945 = vmul.f32 %v2944, 0.044715
        %v2946 = vadd.f32 %v2940, %v2945
        %v2947 = vmul.f32 %v2946, 0.7978846
        %v2948 = vtanh.pop %v2947
        %v2949 = vadd.f32 %v2948, 1.0
        %v2950 = vmul.f32 %v2949, 0.5
        %v2951 = vmul.f32 %v2940, %v2950
        %v2952 = vpack.c.bf16 %v2951, %v2951
        %s2953 = scalar_lea.vmem %s16, 64
        %v2954 = vld [vmem:[%s2953] sm:$0xf]
        %v2955 = vld [vmem:[%s2953 + $0x4] sm:$0xf]
        %v2956 = vld [vmem:[%s2953 + $0x8] sm:$0xf]
        %v2957 = vld [vmem:[%s2953 + $0xc] sm:$0xf]
        %v2958 = vld [vmem:[%s2953 + $0x10] sm:$0xf]
        %v2959 = vld [vmem:[%s2953 + $0x14] sm:$0xf]
        %v2960 = vld [vmem:[%s2953 + $0x18] sm:$0xf]
        %v2961 = vld [vmem:[%s2953 + $0x1c] sm:$0xf]
        %v2962 = vld [vmem:[%s2953 + $0x20] sm:$0xf]
        %v2963 = vld [vmem:[%s2953 + $0x24] sm:$0xf]
        %v2964 = vld [vmem:[%s2953 + $0x28] sm:$0xf]
        %v2965 = vld [vmem:[%s2953 + $0x2c] sm:$0xf]
        %v2966 = vld [vmem:[%s2953 + $0x30] sm:$0xf]
        %v2967 = vld [vmem:[%s2953 + $0x34] sm:$0xf]
        %v2968 = vld [vmem:[%s2953 + $0x38] sm:$0xf]
        %v2969 = vld [vmem:[%s2953 + $0x3c] sm:$0xf]
        %s2970 = scalar_lea.vmem %s17, 1
        %v2971 = vld [vmem:[%s2970] sm:$0x1]
        %v2973 = vperm.slane %v2971, 0
        %v2991 = vunpack.c.l.b16 %v2954
        %v2992 = vunpack.c.l.b16 %v2955
        %v2993 = vunpack.c.l.b16 %v2956
        %v2994 = vunpack.c.l.b16 %v2957
        %v2995 = vunpack.c.l.b16 %v2958
        %v2996 = vunpack.c.l.b16 %v2959
        %v2997 = vunpack.c.l.b16 %v2960
        %v2998 = vunpack.c.l.b16 %v2961
        %v2999 = vunpack.c.l.b16 %v2962
        %v3000 = vunpack.c.l.b16 %v2963
        %v3001 = vunpack.c.l.b16 %v2964
        %v3002 = vunpack.c.l.b16 %v2965
        %v3003 = vunpack.c.l.b16 %v2966
        %v3004 = vunpack.c.l.b16 %v2967
        %v3005 = vunpack.c.l.b16 %v2968
        %v3006 = vunpack.c.l.b16 %v2969
        %v3007 = vpack.c.b16 %v2992, %v2991
        %v3008 = vpack.c.b16 %v2994, %v2993
        %v3009 = vpack.c.b16 %v2996, %v2995
        %v3010 = vpack.c.b16 %v2998, %v2997
        %v3011 = vpack.c.b16 %v3000, %v2999
        %v3012 = vpack.c.b16 %v3002, %v3001
        %v3013 = vpack.c.b16 %v3004, %v3003
        %v3014 = vpack.c.b16 %v3006, %v3005
        %3023 = vmatpush.bf16.msra.mxu0 %v3014
        %3024 = vmatpush.bf16.msra.mxu0 %v3013
        %3025 = vmatpush.bf16.msra.mxu0 %v3012
        %3026 = vmatpush.bf16.msra.mxu0 %v3011
        %3027 = vmatpush.bf16.msra.mxu0 %v3010
        %3028 = vmatpush.bf16.msra.mxu0 %v3009
        %3029 = vmatpush.bf16.msra.mxu0 %v3008
        %3030 = vmatpush.bf16.msra.mxu0 %v3007
        %3031 = vmatmul.bf16.gmra.mxu0 %v2952
        %v3032 = vpop.f32.mrf.mxu0
        %v3033 = vadd.f32 %v2973, %v3032
        %v3034 = vpop.f32.mrf.mxu0
        %3035 = vdwg.mxu0
        %v3036 = vadd.f32 %v3033, %v2887
        %s3037 = scalar_lea.vmem %s18, 1
        %v3038 = vld [vmem:[%s3037] sm:$0x1]
        %s3039 = scalar_lea.vmem %s19, 1
        %v3040 = vld [vmem:[%s3039] sm:$0x1]
        %v3041 = vsel %vm755, %v3036, 0.0
        %3042 = vadd.xlane.f32.xlu0 %v3041
        %v3043 = vpop.xlane.xlu0 %3042
        %v3044 = vmul.f32 %v3043, %v765
        %v3045 = vsub.f32 %v3036, %v3044
        %v3046 = vmul.f32 %v3045, %v3045
        %v3047 = vsel %vm755, %v3046, 0.0
        %3048 = vadd.xlane.f32.xlu0 %v3047
        %v3049 = vpop.xlane.xlu0 %3048
        %v3050 = vmul.f32 %v3049, %v765
        %v3051 = vadd.f32 %v3050, 1e-05
        %v3052 = vrsqrt.pop %v3051
        %v3053 = vmul.f32 %v3052, %v3051
        %v3054 = vmul.f32 %v3053, %v3052
        %v3055 = vmul.f32 0.5, %v3054
        %v3056 = vsub.f32 1.5, %v3055
        %v3057 = vmul.f32 %v3052, %v3056
        %vm3058 = vweird.f32 %v3051
        %vm3059 = vweird.f32 %v3052
        %vm3060 = vmor %vm3058, %vm3059
        %v3061 = vsel %vm3060, %v3052, %v3057
        %v3062 = vmul.f32 %v3045, %v3061
        %v3064 = vperm.slane %v3038, 0
        %v3066 = vmul.f32 %v3062, %v3064
        %v3068 = vperm.slane %v3040, 0
        %v3070 = vadd.f32 %v3066, %v3068
        %vm3071 = vcmask 516096
        %3072 = vst.msk [vmem:[%s643] sm:$0x1] %vm3071, %v3070
        %s3073 = sand.u32 %s477, 1
        %s3074 = scalar_lea.sflag [#allocation3], %s3073
        %s3075 = sand.u32 %s477, 1
        %s3076 = scalar_lea.vmem [#allocation2], %s3075
        // Predicated region
        $region101: #{distilroberta_encoder_forward.1} parent=99 // pred_check
          %p3077 = pneg %p487
        $region102: #{distilroberta_encoder_forward.1} parent=99 // pred_check_branch
          %3079 = sbr.rel (%p3077) target = $region104
        $region103: #{distilroberta_encoder_forward.1} parent=99 // pred_region
          %3081 = vsyncadd %s3074, 0
          %s3082 = scalar_lea.hbm %s20, %s34
          %s3084 = sshll.u32 %s3076, 4
          %s3085 = int_to_ptr.vmem [resolvable:$true] %s3084
          %s3086 = sshll.u32 %s3082, 4
          %s3087 = int_to_ptr.hbm [resolvable:$true] %s3086
          %3089 = dma.vmem_to_hbm [thread:$0]  %s3085, 16, %s3087, %s3074
        $region104: #{distilroberta_encoder_forward.1} parent=99 // pred_fallthru
          _
      $region100: #{distilroberta_encoder_forward.1} parent=5 // pred_fallthru
        _
      %p3090 = scmp.le.s32.totalorder 2, %s29
      // Predicated region
      $region105: #{distilroberta_encoder_forward.1} parent=5 // pred_check
        %p3091 = pneg %p3090
      $region106: #{distilroberta_encoder_forward.1} parent=5 // pred_check_branch
        %3093 = sbr.rel (%p3091) target = $region108
      $region107: #{distilroberta_encoder_forward.1} parent=5 // pred_region
        %s3094 = ssub.s32 %s29, 2
        // Predicated region
        $region109: #{distilroberta_encoder_forward.1} parent=107 // pred_check
          %p3095 = pneg %p493
        $region110: #{distilroberta_encoder_forward.1} parent=107 // pred_check_branch
          %3097 = sbr.rel (%p3095) target = $region112
        $region111: #{distilroberta_encoder_forward.1} parent=107 // pred_region
          %s3098 = sand.u32 %s478, 1
          %s3099 = scalar_lea.sflag [#allocation3], %s3098
          %s3100 = sand.u32 %s478, 1
          %s3101 = scalar_lea.vmem [#allocation2], %s3100
          %3103 = dma.done %s3099, 16
        $region112: #{distilroberta_encoder_forward.1} parent=107 // pred_fallthru
          _
      $region108: #{distilroberta_encoder_forward.1} parent=5 // pred_fallthru
        _
    $region6: #{distilroberta_encoder_forward.1} parent=1 // loop_footer
      %s33 = sadd.s32 1, %s29
    $region7: #{distilroberta_encoder_forward.1} parent=1 // loop_footer_branch
      %28 = sbr.rel target = $region3
    $region8: #{distilroberta_encoder_forward.1} parent=1 // loop_exit
      _
    %3104 = vsyncpa [#allocation3], 1
    %s3105 = scalar_lea.sflag [#allocation3], 1
    %3106 = vsyncpa %s3105, 1

</llo_original>
